<compile_context>
chip_gen: v5e
topology: v5e:2x2
jax: 0.10.0
libtpu: 0.0.40
codegen_flags: <defaults>
</compile_context>

<pallas_src>
import functools
import math

import numpy as np
import jax
import jax.numpy as jnp
from jax.experimental import pallas as pl
from jax.experimental.pallas import tpu as pltpu

_LN_EPS = 1e-5
_NUM_HEADS = 6          # hard-coded in the PyTorch SelfAttention (head_dim = C // 6)


# ----------------------------------------------------------------------------
# static (host-side) helpers: shifted-window mask & relative-position bias
# ----------------------------------------------------------------------------
def _attn_mask(H, W, w):
    ap = np.zeros((H, W), np.float32)
    slices = [slice(0, -w), slice(-w, -w // 2), slice(-w // 2, None)]
    idx = 0
    for hs in slices:
        for ws_ in slices:
            ap[hs, ws_] = idx
            idx += 1
    ap = ap.reshape(H // w, w, W // w, w).transpose(0, 2, 1, 3).reshape(-1, w * w)
    diff = ap[:, None, :] - ap[:, :, None]          # [win, i, j] = ap[win, j] - ap[win, i]
    return np.where(diff != 0, -100.0, 0.0).astype(np.float32)


def _rel_index(w):
    coords = np.stack(np.meshgrid(np.arange(w), np.arange(w), indexing="ij"))
    cf = coords.reshape(2, -1).astype(np.int64)     # (2, N)
    rel = cf[:, :, None] - cf[:, None, :]           # [c, i, j] = cf[c, i] - cf[c, j]
    rel[0] += w - 1
    rel[0] *= 2 * w - 1
    rel[1] += w - 1
    return (rel[0] + rel[1]).reshape(-1).astype(np.int32)


def precompute_rel_bias(bias_matrix, wsize):
    """(2w-1)^2 x nh parameter -> (nh, N, N) relative-position bias (done once)."""
    N = wsize * wsize
    rel_idx = jnp.asarray(_rel_index(wsize))
    rb = jnp.take(bias_matrix, rel_idx, axis=0)        # (N*N, nh)
    return rb.reshape(N, N, -1).transpose(2, 0, 1)     # (nh, N, N)


def prepare_params(params, wsize):
    p = dict(params)
    p["rel_bias"] = precompute_rel_bias(params["bias_matrix"], wsize)
    return p


def _pick_wb(n_win, nW, N, *, max_rows=1024, min_steps=8):
    """Windows per block: largest divisor of nW with <= max_rows tokens per block
    and at least min(min_steps, n_win) grid steps (>= 4 steps/TC on 2-TC v7x)."""
    best = 1
    for wb in range(1, nW + 1):
        if wb * N > max_rows:
            break
        if nW % wb != 0:
            continue
        if n_win // wb >= min(min_steps, n_win):
            best = wb
    return best


# ----------------------------------------------------------------------------
# fused STL kernel:  LN1 -> QKV -> window attention -> proj -> +res
#                    -> LN2 -> MLP(GELU) -> +res
# ----------------------------------------------------------------------------
def _stl_fused_kernel(x_ref, mask_ref, rbias_ref,
                      ln1_g_ref, ln1_b_ref, wqkv_ref,
                      wproj_ref, bproj_ref,
                      ln2_g_ref, ln2_b_ref,
                      w1_ref, fb1_ref, w2_ref, fb2_ref,
                      o_ref, *, num_heads, scale):
    wb, N, C = x_ref.shape
    d = C // num_heads
    R = wb * N

    x = x_ref[...].reshape(R, C)                       # (R, C) f32

    # --- LayerNorm 1 ---
    mu = jnp.mean(x, axis=-1, keepdims=True)
    xc = x - mu
    var = jnp.mean(xc * xc, axis=-1, keepdims=True)
    h1 = xc * jax.lax.rsqrt(var + _LN_EPS) * ln1_g_ref[...] + ln1_b_ref[...]

    # --- QKV projection: one lane-dense matmul; heads stay packed along lanes ---
    qkv = jnp.dot(h1, wqkv_ref[...], preferred_element_type=jnp.float32)  # (R, 3C)
    qkv = qkv.reshape(wb, N, 3 * C)

    mask = mask_ref[...]                               # (wb, N, N)

    # --- per-head attention; fold head-merge into the output projection so no
    #     trailing-d array is ever stored (y += o_h @ wproj[h]) ---
    y = jnp.zeros((R, C), jnp.float32)
    for h in range(num_heads):
        q = qkv[:, :, h * d:(h + 1) * d] * scale               # scale folded into Q
        k = qkv[:, :, C + h * d:C + (h + 1) * d]
        v = qkv[:, :, 2 * C + h * d:2 * C + (h + 1) * d]
        s = jnp.einsum("wnd,wmd->wnm", q, k,
                       preferred_element_type=jnp.float32)     # (wb, N, N)
        s = s + rbias_ref[h][None, :, :] + mask
        s = s - jnp.max(s, axis=-1, keepdims=True)
        p = jnp.exp(s)
        p = p * pl.reciprocal(jnp.sum(p, axis=-1, keepdims=True), approx=True)
        o_h = jnp.einsum("wnm,wmd->wnd", p, v,
                         preferred_element_type=jnp.float32)   # (wb, N, d)
        y = y + jnp.dot(o_h.reshape(R, d), wproj_ref[h],
                        preferred_element_type=jnp.float32)
    y = y + bproj_ref[...]

    # --- first residual ---
    r = y + x

    # --- LayerNorm 2 ---
    mu2 = jnp.mean(r, axis=-1, keepdims=True)
    rc = r - mu2
    var2 = jnp.mean(rc * rc, axis=-1, keepdims=True)
    h2 = rc * jax.lax.rsqrt(var2 + _LN_EPS) * ln2_g_ref[...] + ln2_b_ref[...]

    # --- MLP ---
    m = jnp.dot(h2, w1_ref[...], preferred_element_type=jnp.float32) + fb1_ref[...]
    # TODO(synk): PyTorch nn.GELU default is the exact erf form; the tanh
    # approximation is used here (and in the reference) for guaranteed lowering.
    c = math.sqrt(2.0 / math.pi)
    m = 0.5 * m * (1.0 + jnp.tanh(c * (m + 0.044715 * (m * m * m))))
    m = jnp.dot(m, w2_ref[...], preferred_element_type=jnp.float32) + fb2_ref[...]

    # --- second residual ---
    o_ref[...] = (m + r).reshape(wb, N, C).astype(o_ref.dtype)


# ----------------------------------------------------------------------------
# full STL forward
# ----------------------------------------------------------------------------
def stl_forward(cvrt_img, params, *, wsize, cycShft):
    B, H, W, C = cvrt_img.shape
    nh = _NUM_HEADS
    assert C % nh == 0 and H % wsize == 0 and W % wsize == 0
    d = C // nh
    w = wsize
    N = w * w
    nW = (H // w) * (W // w)
    n_win = B * nW

    # ---- cyclic shift + window partition (permutation only; per-token LN /
    #      residual / MLP commute with it, so they live inside the kernel) ----
    if cycShft:
        xr = jnp.roll(cvrt_img, (-w // 2, -w // 2), axis=(1, 2))
        mask = jnp.asarray(_attn_mask(H, W, w))               # (nW, N, N)
    else:
        xr = cvrt_img
        mask = jnp.zeros((nW, N, N), jnp.float32)
    x_win = xr.reshape(B, H // w, w, W // w, w, C).transpose(0, 1, 3, 2, 4, 5)
    x_win = x_win.reshape(n_win, N, C)

    rel_bias = params.get("rel_bias")
    if rel_bias is None:                                      # fallback (per-call)
        rel_bias = precompute_rel_bias(params["bias_matrix"], w)
    wproj3 = params["wproj"].reshape(nh, d, C)                # head-major input dim

    wb = _pick_wb(n_win, nW, N)
    mask_blocks = nW // wb

    def const(shape):
        n = len(shape)
        return pl.BlockSpec(shape, lambda i, _n=None: (0,) * n)

    out = pl.pallas_call(
        functools.partial(_stl_fused_kernel, num_heads=nh, scale=1.0 / math.sqrt(d)),
        out_shape=jax.ShapeDtypeStruct((n_win, N, C), cvrt_img.dtype),
        grid_spec=pltpu.PrefetchScalarGridSpec(
            num_scalar_prefetch=0,
            grid=(n_win // wb,),
            in_specs=[
                pl.BlockSpec((wb, N, C), lambda i: (i, 0, 0)),              # tokens
                pl.BlockSpec((wb, N, N), lambda i: (i % mask_blocks, 0, 0)),  # mask
                const((nh, N, N)),                                          # rel bias
                const((1, C)), const((1, C)),                               # LN1
                const((C, 3 * C)),                                          # Wqkv
                const((nh, d, C)), const((1, C)),                           # proj
                const((1, C)), const((1, C)),                               # LN2
                const((C, 2 * C)), const((1, 2 * C)),                       # MLP fc1
                const((2 * C, C)), const((1, C)),                           # MLP fc2
            ],
            out_specs=pl.BlockSpec((wb, N, C), lambda i: (i, 0, 0)),
        ),
        # Single parallel axis -> megacore splits blocks across v7x's 2 TCs.
        # Live VMEM (blocks + resident weights + intermediates) is only a few
        # MiB even at the max block size, so no vmem_limit_bytes override is
        # needed on any generation (v5e 16 MiB / v7x 32 MiB scoped defaults).
        compiler_params=pltpu.CompilerParams(dimension_semantics=("parallel",)),
    )(x_win, mask, rel_bias,
      params["ln1_g"].reshape(1, C), params["ln1_b"].reshape(1, C),
      params["wqkv"],
      wproj3, params["bproj"].reshape(1, C),
      params["ln2_g"].reshape(1, C), params["ln2_b"].reshape(1, C),
      params["w1"], params["b1"].reshape(1, 2 * C),
      params["w2"], params["b2"].reshape(1, C))

    # ---- window merge (inverse permutation) ----
    out = out.reshape(B, H // w, W // w, w, w, C).transpose(0, 1, 3, 2, 4, 5)
    out = out.reshape(B, H, W, C)
    if cycShft:
        out = jnp.roll(out, (w // 2, w // 2), axis=(1, 2))
    return out


# ----------------------------------------------------------------------------
# pure-JAX reference (mirrors the PyTorch code path op-for-op)
# ----------------------------------------------------------------------------
def stl_reference(x, p, *, wsize, cycShft):
    B, H, W, C = x.shape
    nh = _NUM_HEADS
    d = C // nh
    w = wsize
    N = w * w
    nW = (H // w) * (W // w)
    hp = jax.lax.Precision.HIGHEST

    def ln(t, g, b):
        mu = jnp.mean(t, -1, keepdims=True)
        var = jnp.mean((t - mu) ** 2, -1, keepdims=True)
        return (t - mu) * jax.lax.rsqrt(var + _LN_EPS) * g + b

    h1 = ln(x, p["ln1_g"], p["ln1_b"])
    if cycShft:
        xr = jnp.roll(h1, (-w // 2, -w // 2), axis=(1, 2))
        mask = jnp.asarray(_attn_mask(H, W, w))
    else:
        xr = h1
        mask = jnp.zeros((nW, N, N), jnp.float32)
    win = xr.reshape(B, H // w, w, W // w, w, C).transpose(0, 1, 3, 2, 4, 5)
    win = win.reshape(-1, N, C)
    qkv = jnp.einsum("bnc,ck->bnk", win, p["wqkv"], precision=hp)
    qkv = qkv.reshape(-1, N, 3, nh, d).transpose(2, 0, 3, 1, 4)
    q, k, v = qkv[0], qkv[1], qkv[2]
    s = jnp.einsum("bhnd,bhmd->bhnm", q, k, precision=hp) / math.sqrt(d)
    rel = jnp.take(p["bias_matrix"], jnp.asarray(_rel_index(w)), axis=0)
    rel = rel.reshape(N, N, nh).transpose(2, 0, 1)
    s = s + rel[None]
    s = s.reshape(B, nW, nh, N, N) + mask[None, :, None]
    s = s.reshape(-1, nh, N, N)
    a = jax.nn.softmax(s, axis=-1)
    o = jnp.einsum("bhnm,bhmd->bhnd", a, v, precision=hp)
    o = o.transpose(0, 2, 1, 3).reshape(-1, N, C)
    o = jnp.einsum("bnc,ck->bnk", o, p["wproj"], precision=hp) + p["bproj"]
    o = o.reshape(B, H // w, W // w, w, w, C).transpose(0, 1, 3, 2, 4, 5).reshape(B, H, W, C)
    if cycShft:
        o = jnp.roll(o, (w // 2, w // 2), axis=(1, 2))
    z = o + x
    h2 = ln(z, p["ln2_g"], p["ln2_b"])
    m = jnp.einsum("bhwc,ck->bhwk", h2, p["w1"], precision=hp) + p["b1"]
    m = jax.nn.gelu(m, approximate=True)
    m = jnp.einsum("bhwk,kc->bhwc", m, p["w2"], precision=hp) + p["b2"]
    return m + z


# ----------------------------------------------------------------------------
# params
# ----------------------------------------------------------------------------
def init_params(key, channel, wsize, nh=_NUM_HEADS):
    C = channel
    ks = jax.random.split(key, 8)

    def lin(k, fin, fout):
        bound = 1.0 / math.sqrt(fin)
        return jax.random.uniform(k, (fin, fout), jnp.float32, -bound, bound)

    return dict(
        ln1_g=jnp.ones((C,), jnp.float32),
        ln1_b=jnp.zeros((C,), jnp.float32),
        wqkv=lin(ks[0], C, 3 * C),
        bias_matrix=0.5 * jax.random.normal(ks[1], ((2 * wsize - 1) ** 2, nh), jnp.float32),
        wproj=lin(ks[2], C, C),
        bproj=0.1 * jax.random.normal(ks[3], (C,), jnp.float32),
        ln2_g=jnp.ones((C,), jnp.float32),
        ln2_b=jnp.zeros((C,), jnp.float32),
        w1=lin(ks[4], C, 2 * C),
        b1=0.1 * jax.random.normal(ks[5], (2 * C,), jnp.float32),
        w2=lin(ks[6], 2 * C, C),
        b2=0.1 * jax.random.normal(ks[7], (C,), jnp.float32),
    )


if __name__ == "__main__":
    key = jax.random.PRNGKey(0)
    kx, kp = jax.random.split(key)

    B, H, W = 2, 16, 16
    channel = 24          # must be divisible by 6 heads
    wsize = 8

    x = jax.random.normal(kx, (B, H, W, channel), jnp.float32)
    params = init_params(kp, channel, wsize)
    params = prepare_params(params, wsize)     # hoist rel-bias gather out of forward

    for order in (1, 0):                       # odd -> shifted windows, even -> plain
        cyc = (order % 2 != 0)
        fwd = jax.jit(functools.partial(stl_forward, wsize=wsize, cycShft=cyc))
        y = jax.block_until_ready(fwd(x, params))
        y_ref = stl_reference(x, params, wsize=wsize, cycShft=cyc)
        assert y.shape == (B, H, W, channel)
        err = float(jnp.max(jnp.abs(y - y_ref)))
        assert jnp.allclose(y, y_ref, atol=2e-2, rtol=2e-2), f"order={order} max_err={err}"

    print("KERNEL_OK")
</pallas_src>

<mosaic_0001>
module attributes {stable_mosaic.version = 11 : i64} {
  func.func @_stl_fused_kernel(%arg0: i32, %arg1: memref<1x64x24xf32, #tpu.memory_space<vmem>>, %arg2: memref<1x64x64xf32, #tpu.memory_space<vmem>>, %arg3: memref<6x64x64xf32, #tpu.memory_space<vmem>>, %arg4: memref<1x24xf32, #tpu.memory_space<vmem>>, %arg5: memref<1x24xf32, #tpu.memory_space<vmem>>, %arg6: memref<24x72xf32, #tpu.memory_space<vmem>>, %arg7: memref<6x4x24xf32, #tpu.memory_space<vmem>>, %arg8: memref<1x24xf32, #tpu.memory_space<vmem>>, %arg9: memref<1x24xf32, #tpu.memory_space<vmem>>, %arg10: memref<1x24xf32, #tpu.memory_space<vmem>>, %arg11: memref<24x48xf32, #tpu.memory_space<vmem>>, %arg12: memref<1x48xf32, #tpu.memory_space<vmem>>, %arg13: memref<48x24xf32, #tpu.memory_space<vmem>>, %arg14: memref<1x24xf32, #tpu.memory_space<vmem>>, %arg15: memref<1x64x24xf32, #tpu.memory_space<vmem>>) attributes {dimension_semantics = [#tpu.dimension_semantics<parallel>], iteration_bounds = array<i64: 8>, scalar_prefetch = 0 : i64, scratch_operands = 0 : i64, tpu.core_type = #tpu.core_type<tc>, window_params = [{transform_indices = @transform_0, window_bounds = array<i64: 1, 64, 24>}, {transform_indices = @transform_1, window_bounds = array<i64: 1, 64, 64>}, {pipeline_mode = #tpu.pipeline_mode<synchronous>, transform_indices = @transform_2, window_bounds = array<i64: 6, 64, 64>}, {pipeline_mode = #tpu.pipeline_mode<synchronous>, transform_indices = @transform_3, window_bounds = array<i64: 1, 24>}, {pipeline_mode = #tpu.pipeline_mode<synchronous>, transform_indices = @transform_4, window_bounds = array<i64: 1, 24>}, {pipeline_mode = #tpu.pipeline_mode<synchronous>, transform_indices = @transform_5, window_bounds = array<i64: 24, 72>}, {pipeline_mode = #tpu.pipeline_mode<synchronous>, transform_indices = @transform_6, window_bounds = array<i64: 6, 4, 24>}, {pipeline_mode = #tpu.pipeline_mode<synchronous>, transform_indices = @transform_7, window_bounds = array<i64: 1, 24>}, {pipeline_mode = #tpu.pipeline_mode<synchronous>, transform_indices = @transform_8, window_bounds = array<i64: 1, 24>}, {pipeline_mode = #tpu.pipeline_mode<synchronous>, transform_indices = @transform_9, window_bounds = array<i64: 1, 24>}, {pipeline_mode = #tpu.pipeline_mode<synchronous>, transform_indices = @transform_10, window_bounds = array<i64: 24, 48>}, {pipeline_mode = #tpu.pipeline_mode<synchronous>, transform_indices = @transform_11, window_bounds = array<i64: 1, 48>}, {pipeline_mode = #tpu.pipeline_mode<synchronous>, transform_indices = @transform_12, window_bounds = array<i64: 48, 24>}, {pipeline_mode = #tpu.pipeline_mode<synchronous>, transform_indices = @transform_13, window_bounds = array<i64: 1, 24>}, {transform_indices = @transform_14, window_bounds = array<i64: 1, 64, 24>}]} {
    %c0 = arith.constant 0 : index
    %c0_0 = arith.constant 0 : index
    %c0_1 = arith.constant 0 : index
    %0 = vector.load %arg1[%c0, %c0_0, %c0_1] : memref<1x64x24xf32, #tpu.memory_space<vmem>>, vector<1x64x24xf32>
    %1 = vector.shape_cast %0 : vector<1x64x24xf32> to vector<64x24xf32>
    %cst = arith.constant dense<0.000000e+00> : vector<64xf32>
    %2 = vector.multi_reduction <add>, %1, %cst [1] : vector<64x24xf32> to vector<64xf32>
    %3 = vector.shape_cast %2 : vector<64xf32> to vector<64x1xf32>
    %cst_2 = arith.constant 2.400000e+01 : f32
    %4 = vector.broadcast %cst_2 : f32 to vector<64x1xf32>
    %5 = arith.divf %3, %4 : vector<64x1xf32>
    %6 = vector.broadcast %5 : vector<64x1xf32> to vector<64x24xf32>
    %7 = arith.subf %1, %6 : vector<64x24xf32>
    %8 = arith.mulf %7, %7 : vector<64x24xf32>
    %cst_3 = arith.constant dense<0.000000e+00> : vector<64xf32>
    %9 = vector.multi_reduction <add>, %8, %cst_3 [1] : vector<64x24xf32> to vector<64xf32>
    %10 = vector.shape_cast %9 : vector<64xf32> to vector<64x1xf32>
    %cst_4 = arith.constant 2.400000e+01 : f32
    %11 = vector.broadcast %cst_4 : f32 to vector<64x1xf32>
    %12 = arith.divf %10, %11 : vector<64x1xf32>
    %cst_5 = arith.constant 9.99999974E-6 : f32
    %13 = vector.broadcast %cst_5 : f32 to vector<64x1xf32>
    %14 = arith.addf %12, %13 : vector<64x1xf32>
    %15 = math.rsqrt %14 : vector<64x1xf32>
    %16 = vector.broadcast %15 : vector<64x1xf32> to vector<64x24xf32>
    %17 = arith.mulf %7, %16 : vector<64x24xf32>
    %c0_6 = arith.constant 0 : index
    %c0_7 = arith.constant 0 : index
    %18 = vector.load %arg4[%c0_6, %c0_7] : memref<1x24xf32, #tpu.memory_space<vmem>>, vector<1x24xf32>
    %19 = vector.broadcast %18 : vector<1x24xf32> to vector<64x24xf32>
    %20 = arith.mulf %17, %19 : vector<64x24xf32>
    %c0_8 = arith.constant 0 : index
    %c0_9 = arith.constant 0 : index
    %21 = vector.load %arg5[%c0_8, %c0_9] : memref<1x24xf32, #tpu.memory_space<vmem>>, vector<1x24xf32>
    %22 = vector.broadcast %21 : vector<1x24xf32> to vector<64x24xf32>
    %23 = arith.addf %20, %22 : vector<64x24xf32>
    %c0_10 = arith.constant 0 : index
    %c0_11 = arith.constant 0 : index
    %24 = vector.load %arg6[%c0_10, %c0_11] : memref<24x72xf32, #tpu.memory_space<vmem>>, vector<24x72xf32>
    %cst_12 = arith.constant dense<0.000000e+00> : vector<64x72xf32>
    %25 = tpu.matmul %23, %24, %cst_12 {dimension_numbers = #tpu.dot_dimension_numbers<[1], [0], [0], [1], [0, 0, 1, 1], [], []>} : vector<64x24xf32>, vector<24x72xf32>, vector<64x72xf32> -> vector<64x72xf32>
    %26 = vector.shape_cast %25 : vector<64x72xf32> to vector<1x64x72xf32>
    %c0_13 = arith.constant 0 : index
    %c0_14 = arith.constant 0 : index
    %c0_15 = arith.constant 0 : index
    %27 = vector.load %arg2[%c0_13, %c0_14, %c0_15] : memref<1x64x64xf32, #tpu.memory_space<vmem>>, vector<1x64x64xf32>
    %cst_16 = arith.constant 0.000000e+00 : f32
    %28 = vector.broadcast %cst_16 : f32 to vector<64x24xf32>
    %29 = vector.extract_strided_slice %26 {offsets = [0, 0, 0], sizes = [1, 64, 4], strides = [1, 1, 1]} : vector<1x64x72xf32> to vector<1x64x4xf32>
    %cst_17 = arith.constant 5.000000e-01 : f32
    %30 = vector.broadcast %cst_17 : f32 to vector<1x64x4xf32>
    %31 = arith.mulf %29, %30 : vector<1x64x4xf32>
    %32 = vector.extract_strided_slice %26 {offsets = [0, 0, 24], sizes = [1, 64, 4], strides = [1, 1, 1]} : vector<1x64x72xf32> to vector<1x64x4xf32>
    %33 = vector.extract_strided_slice %26 {offsets = [0, 0, 48], sizes = [1, 64, 4], strides = [1, 1, 1]} : vector<1x64x72xf32> to vector<1x64x4xf32>
    "tpu.trace_start"() <{level = 10 : i32, message = "wnd,wmd->wnm"}> : () -> ()
    %cst_18 = arith.constant dense<0.000000e+00> : vector<1x64x64xf32>
    %34 = tpu.matmul %31, %32, %cst_18 {dimension_numbers = #tpu.dot_dimension_numbers<[2], [2], [1], [1], [0, 0, 0, 1, 1, 1], [0], [0]>} : vector<1x64x4xf32>, vector<1x64x4xf32>, vector<1x64x64xf32> -> vector<1x64x64xf32>
    "tpu.trace_stop"() : () -> ()
    %c0_19 = arith.constant 0 : index
    %c0_20 = arith.constant 0 : index
    %c0_21 = arith.constant 0 : index
    %35 = vector.load %arg3[%c0_19, %c0_20, %c0_21] : memref<6x64x64xf32, #tpu.memory_space<vmem>>, vector<1x64x64xf32>
    %36 = vector.shape_cast %35 : vector<1x64x64xf32> to vector<64x64xf32>
    %37 = vector.shape_cast %36 : vector<64x64xf32> to vector<1x64x64xf32>
    %38 = arith.addf %34, %37 : vector<1x64x64xf32>
    %39 = arith.addf %38, %27 : vector<1x64x64xf32>
    %cst_22 = arith.constant dense<0xFF800000> : vector<1x64xf32>
    %40 = vector.multi_reduction <maximumf>, %39, %cst_22 [2] : vector<1x64x64xf32> to vector<1x64xf32>
    %41 = vector.shape_cast %40 : vector<1x64xf32> to vector<1x64x1xf32>
    %42 = vector.broadcast %41 : vector<1x64x1xf32> to vector<1x64x64xf32>
    %43 = arith.subf %39, %42 : vector<1x64x64xf32>
    %44 = math.exp %43 : vector<1x64x64xf32>
    %cst_23 = arith.constant dense<0.000000e+00> : vector<1x64xf32>
    %45 = vector.multi_reduction <add>, %44, %cst_23 [2] : vector<1x64x64xf32> to vector<1x64xf32>
    %46 = vector.shape_cast %45 : vector<1x64xf32> to vector<1x64x1xf32>
    %47 = tpu.reciprocal %46 {approx = true} : vector<1x64x1xf32> -> vector<1x64x1xf32>
    %48 = vector.broadcast %47 : vector<1x64x1xf32> to vector<1x64x64xf32>
    %49 = arith.mulf %44, %48 : vector<1x64x64xf32>
    "tpu.trace_start"() <{level = 10 : i32, message = "wnm,wmd->wnd"}> : () -> ()
    %cst_24 = arith.constant dense<0.000000e+00> : vector<1x64x4xf32>
    %50 = tpu.matmul %49, %33, %cst_24 {dimension_numbers = #tpu.dot_dimension_numbers<[2], [1], [1], [2], [0, 0, 0, 1, 1, 2], [0], [0]>} : vector<1x64x64xf32>, vector<1x64x4xf32>, vector<1x64x4xf32> -> vector<1x64x4xf32>
    "tpu.trace_stop"() : () -> ()
    %51 = vector.shape_cast %50 : vector<1x64x4xf32> to vector<64x4xf32>
    %c0_25 = arith.constant 0 : index
    %c0_26 = arith.constant 0 : index
    %c0_27 = arith.constant 0 : index
    %52 = vector.load %arg7[%c0_25, %c0_26, %c0_27] : memref<6x4x24xf32, #tpu.memory_space<vmem>>, vector<1x4x24xf32>
    %53 = vector.shape_cast %52 : vector<1x4x24xf32> to vector<4x24xf32>
    %cst_28 = arith.constant dense<0.000000e+00> : vector<64x24xf32>
    %54 = tpu.matmul %51, %53, %cst_28 {dimension_numbers = #tpu.dot_dimension_numbers<[1], [0], [0], [1], [0, 0, 1, 1], [], []>} : vector<64x4xf32>, vector<4x24xf32>, vector<64x24xf32> -> vector<64x24xf32>
    %55 = arith.addf %28, %54 : vector<64x24xf32>
    %56 = vector.extract_strided_slice %26 {offsets = [0, 0, 4], sizes = [1, 64, 4], strides = [1, 1, 1]} : vector<1x64x72xf32> to vector<1x64x4xf32>
    %cst_29 = arith.constant 5.000000e-01 : f32
    %57 = vector.broadcast %cst_29 : f32 to vector<1x64x4xf32>
    %58 = arith.mulf %56, %57 : vector<1x64x4xf32>
    %59 = vector.extract_strided_slice %26 {offsets = [0, 0, 28], sizes = [1, 64, 4], strides = [1, 1, 1]} : vector<1x64x72xf32> to vector<1x64x4xf32>
    %60 = vector.extract_strided_slice %26 {offsets = [0, 0, 52], sizes = [1, 64, 4], strides = [1, 1, 1]} : vector<1x64x72xf32> to vector<1x64x4xf32>
    "tpu.trace_start"() <{level = 10 : i32, message = "wnd,wmd->wnm"}> : () -> ()
    %cst_30 = arith.constant dense<0.000000e+00> : vector<1x64x64xf32>
    %61 = tpu.matmul %58, %59, %cst_30 {dimension_numbers = #tpu.dot_dimension_numbers<[2], [2], [1], [1], [0, 0, 0, 1, 1, 1], [0], [0]>} : vector<1x64x4xf32>, vector<1x64x4xf32>, vector<1x64x64xf32> -> vector<1x64x64xf32>
    "tpu.trace_stop"() : () -> ()
    %c1 = arith.constant 1 : index
    %c0_31 = arith.constant 0 : index
    %c0_32 = arith.constant 0 : index
    %62 = vector.load %arg3[%c1, %c0_31, %c0_32] : memref<6x64x64xf32, #tpu.memory_space<vmem>>, vector<1x64x64xf32>
    %63 = vector.shape_cast %62 : vector<1x64x64xf32> to vector<64x64xf32>
    %64 = vector.shape_cast %63 : vector<64x64xf32> to vector<1x64x64xf32>
    %65 = arith.addf %61, %64 : vector<1x64x64xf32>
    %66 = arith.addf %65, %27 : vector<1x64x64xf32>
    %cst_33 = arith.constant dense<0xFF800000> : vector<1x64xf32>
    %67 = vector.multi_reduction <maximumf>, %66, %cst_33 [2] : vector<1x64x64xf32> to vector<1x64xf32>
    %68 = vector.shape_cast %67 : vector<1x64xf32> to vector<1x64x1xf32>
    %69 = vector.broadcast %68 : vector<1x64x1xf32> to vector<1x64x64xf32>
    %70 = arith.subf %66, %69 : vector<1x64x64xf32>
    %71 = math.exp %70 : vector<1x64x64xf32>
    %cst_34 = arith.constant dense<0.000000e+00> : vector<1x64xf32>
    %72 = vector.multi_reduction <add>, %71, %cst_34 [2] : vector<1x64x64xf32> to vector<1x64xf32>
    %73 = vector.shape_cast %72 : vector<1x64xf32> to vector<1x64x1xf32>
    %74 = tpu.reciprocal %73 {approx = true} : vector<1x64x1xf32> -> vector<1x64x1xf32>
    %75 = vector.broadcast %74 : vector<1x64x1xf32> to vector<1x64x64xf32>
    %76 = arith.mulf %71, %75 : vector<1x64x64xf32>
    "tpu.trace_start"() <{level = 10 : i32, message = "wnm,wmd->wnd"}> : () -> ()
    %cst_35 = arith.constant dense<0.000000e+00> : vector<1x64x4xf32>
    %77 = tpu.matmul %76, %60, %cst_35 {dimension_numbers = #tpu.dot_dimension_numbers<[2], [1], [1], [2], [0, 0, 0, 1, 1, 2], [0], [0]>} : vector<1x64x64xf32>, vector<1x64x4xf32>, vector<1x64x4xf32> -> vector<1x64x4xf32>
    "tpu.trace_stop"() : () -> ()
    %78 = vector.shape_cast %77 : vector<1x64x4xf32> to vector<64x4xf32>
    %c1_36 = arith.constant 1 : index
    %c0_37 = arith.constant 0 : index
    %c0_38 = arith.constant 0 : index
    %79 = vector.load %arg7[%c1_36, %c0_37, %c0_38] : memref<6x4x24xf32, #tpu.memory_space<vmem>>, vector<1x4x24xf32>
    %80 = vector.shape_cast %79 : vector<1x4x24xf32> to vector<4x24xf32>
    %cst_39 = arith.constant dense<0.000000e+00> : vector<64x24xf32>
    %81 = tpu.matmul %78, %80, %cst_39 {dimension_numbers = #tpu.dot_dimension_numbers<[1], [0], [0], [1], [0, 0, 1, 1], [], []>} : vector<64x4xf32>, vector<4x24xf32>, vector<64x24xf32> -> vector<64x24xf32>
    %82 = arith.addf %55, %81 : vector<64x24xf32>
    %83 = vector.extract_strided_slice %26 {offsets = [0, 0, 8], sizes = [1, 64, 4], strides = [1, 1, 1]} : vector<1x64x72xf32> to vector<1x64x4xf32>
    %cst_40 = arith.constant 5.000000e-01 : f32
    %84 = vector.broadcast %cst_40 : f32 to vector<1x64x4xf32>
    %85 = arith.mulf %83, %84 : vector<1x64x4xf32>
    %86 = vector.extract_strided_slice %26 {offsets = [0, 0, 32], sizes = [1, 64, 4], strides = [1, 1, 1]} : vector<1x64x72xf32> to vector<1x64x4xf32>
    %87 = vector.extract_strided_slice %26 {offsets = [0, 0, 56], sizes = [1, 64, 4], strides = [1, 1, 1]} : vector<1x64x72xf32> to vector<1x64x4xf32>
    "tpu.trace_start"() <{level = 10 : i32, message = "wnd,wmd->wnm"}> : () -> ()
    %cst_41 = arith.constant dense<0.000000e+00> : vector<1x64x64xf32>
    %88 = tpu.matmul %85, %86, %cst_41 {dimension_numbers = #tpu.dot_dimension_numbers<[2], [2], [1], [1], [0, 0, 0, 1, 1, 1], [0], [0]>} : vector<1x64x4xf32>, vector<1x64x4xf32>, vector<1x64x64xf32> -> vector<1x64x64xf32>
    "tpu.trace_stop"() : () -> ()
    %c2 = arith.constant 2 : index
    %c0_42 = arith.constant 0 : index
    %c0_43 = arith.constant 0 : index
    %89 = vector.load %arg3[%c2, %c0_42, %c0_43] : memref<6x64x64xf32, #tpu.memory_space<vmem>>, vector<1x64x64xf32>
    %90 = vector.shape_cast %89 : vector<1x64x64xf32> to vector<64x64xf32>
    %91 = vector.shape_cast %90 : vector<64x64xf32> to vector<1x64x64xf32>
    %92 = arith.addf %88, %91 : vector<1x64x64xf32>
    %93 = arith.addf %92, %27 : vector<1x64x64xf32>
    %cst_44 = arith.constant dense<0xFF800000> : vector<1x64xf32>
    %94 = vector.multi_reduction <maximumf>, %93, %cst_44 [2] : vector<1x64x64xf32> to vector<1x64xf32>
    %95 = vector.shape_cast %94 : vector<1x64xf32> to vector<1x64x1xf32>
    %96 = vector.broadcast %95 : vector<1x64x1xf32> to vector<1x64x64xf32>
    %97 = arith.subf %93, %96 : vector<1x64x64xf32>
    %98 = math.exp %97 : vector<1x64x64xf32>
    %cst_45 = arith.constant dense<0.000000e+00> : vector<1x64xf32>
    %99 = vector.multi_reduction <add>, %98, %cst_45 [2] : vector<1x64x64xf32> to vector<1x64xf32>
    %100 = vector.shape_cast %99 : vector<1x64xf32> to vector<1x64x1xf32>
    %101 = tpu.reciprocal %100 {approx = true} : vector<1x64x1xf32> -> vector<1x64x1xf32>
    %102 = vector.broadcast %101 : vector<1x64x1xf32> to vector<1x64x64xf32>
    %103 = arith.mulf %98, %102 : vector<1x64x64xf32>
    "tpu.trace_start"() <{level = 10 : i32, message = "wnm,wmd->wnd"}> : () -> ()
    %cst_46 = arith.constant dense<0.000000e+00> : vector<1x64x4xf32>
    %104 = tpu.matmul %103, %87, %cst_46 {dimension_numbers = #tpu.dot_dimension_numbers<[2], [1], [1], [2], [0, 0, 0, 1, 1, 2], [0], [0]>} : vector<1x64x64xf32>, vector<1x64x4xf32>, vector<1x64x4xf32> -> vector<1x64x4xf32>
    "tpu.trace_stop"() : () -> ()
    %105 = vector.shape_cast %104 : vector<1x64x4xf32> to vector<64x4xf32>
    %c2_47 = arith.constant 2 : index
    %c0_48 = arith.constant 0 : index
    %c0_49 = arith.constant 0 : index
    %106 = vector.load %arg7[%c2_47, %c0_48, %c0_49] : memref<6x4x24xf32, #tpu.memory_space<vmem>>, vector<1x4x24xf32>
    %107 = vector.shape_cast %106 : vector<1x4x24xf32> to vector<4x24xf32>
    %cst_50 = arith.constant dense<0.000000e+00> : vector<64x24xf32>
    %108 = tpu.matmul %105, %107, %cst_50 {dimension_numbers = #tpu.dot_dimension_numbers<[1], [0], [0], [1], [0, 0, 1, 1], [], []>} : vector<64x4xf32>, vector<4x24xf32>, vector<64x24xf32> -> vector<64x24xf32>
    %109 = arith.addf %82, %108 : vector<64x24xf32>
    %110 = vector.extract_strided_slice %26 {offsets = [0, 0, 12], sizes = [1, 64, 4], strides = [1, 1, 1]} : vector<1x64x72xf32> to vector<1x64x4xf32>
    %cst_51 = arith.constant 5.000000e-01 : f32
    %111 = vector.broadcast %cst_51 : f32 to vector<1x64x4xf32>
    %112 = arith.mulf %110, %111 : vector<1x64x4xf32>
    %113 = vector.extract_strided_slice %26 {offsets = [0, 0, 36], sizes = [1, 64, 4], strides = [1, 1, 1]} : vector<1x64x72xf32> to vector<1x64x4xf32>
    %114 = vector.extract_strided_slice %26 {offsets = [0, 0, 60], sizes = [1, 64, 4], strides = [1, 1, 1]} : vector<1x64x72xf32> to vector<1x64x4xf32>
    "tpu.trace_start"() <{level = 10 : i32, message = "wnd,wmd->wnm"}> : () -> ()
    %cst_52 = arith.constant dense<0.000000e+00> : vector<1x64x64xf32>
    %115 = tpu.matmul %112, %113, %cst_52 {dimension_numbers = #tpu.dot_dimension_numbers<[2], [2], [1], [1], [0, 0, 0, 1, 1, 1], [0], [0]>} : vector<1x64x4xf32>, vector<1x64x4xf32>, vector<1x64x64xf32> -> vector<1x64x64xf32>
    "tpu.trace_stop"() : () -> ()
    %c3 = arith.constant 3 : index
    %c0_53 = arith.constant 0 : index
    %c0_54 = arith.constant 0 : index
    %116 = vector.load %arg3[%c3, %c0_53, %c0_54] : memref<6x64x64xf32, #tpu.memory_space<vmem>>, vector<1x64x64xf32>
    %117 = vector.shape_cast %116 : vector<1x64x64xf32> to vector<64x64xf32>
    %118 = vector.shape_cast %117 : vector<64x64xf32> to vector<1x64x64xf32>
    %119 = arith.addf %115, %118 : vector<1x64x64xf32>
    %120 = arith.addf %119, %27 : vector<1x64x64xf32>
    %cst_55 = arith.constant dense<0xFF800000> : vector<1x64xf32>
    %121 = vector.multi_reduction <maximumf>, %120, %cst_55 [2] : vector<1x64x64xf32> to vector<1x64xf32>
    %122 = vector.shape_cast %121 : vector<1x64xf32> to vector<1x64x1xf32>
    %123 = vector.broadcast %122 : vector<1x64x1xf32> to vector<1x64x64xf32>
    %124 = arith.subf %120, %123 : vector<1x64x64xf32>
    %125 = math.exp %124 : vector<1x64x64xf32>
    %cst_56 = arith.constant dense<0.000000e+00> : vector<1x64xf32>
    %126 = vector.multi_reduction <add>, %125, %cst_56 [2] : vector<1x64x64xf32> to vector<1x64xf32>
    %127 = vector.shape_cast %126 : vector<1x64xf32> to vector<1x64x1xf32>
    %128 = tpu.reciprocal %127 {approx = true} : vector<1x64x1xf32> -> vector<1x64x1xf32>
    %129 = vector.broadcast %128 : vector<1x64x1xf32> to vector<1x64x64xf32>
    %130 = arith.mulf %125, %129 : vector<1x64x64xf32>
    "tpu.trace_start"() <{level = 10 : i32, message = "wnm,wmd->wnd"}> : () -> ()
    %cst_57 = arith.constant dense<0.000000e+00> : vector<1x64x4xf32>
    %131 = tpu.matmul %130, %114, %cst_57 {dimension_numbers = #tpu.dot_dimension_numbers<[2], [1], [1], [2], [0, 0, 0, 1, 1, 2], [0], [0]>} : vector<1x64x64xf32>, vector<1x64x4xf32>, vector<1x64x4xf32> -> vector<1x64x4xf32>
    "tpu.trace_stop"() : () -> ()
    %132 = vector.shape_cast %131 : vector<1x64x4xf32> to vector<64x4xf32>
    %c3_58 = arith.constant 3 : index
    %c0_59 = arith.constant 0 : index
    %c0_60 = arith.constant 0 : index
    %133 = vector.load %arg7[%c3_58, %c0_59, %c0_60] : memref<6x4x24xf32, #tpu.memory_space<vmem>>, vector<1x4x24xf32>
    %134 = vector.shape_cast %133 : vector<1x4x24xf32> to vector<4x24xf32>
    %cst_61 = arith.constant dense<0.000000e+00> : vector<64x24xf32>
    %135 = tpu.matmul %132, %134, %cst_61 {dimension_numbers = #tpu.dot_dimension_numbers<[1], [0], [0], [1], [0, 0, 1, 1], [], []>} : vector<64x4xf32>, vector<4x24xf32>, vector<64x24xf32> -> vector<64x24xf32>
    %136 = arith.addf %109, %135 : vector<64x24xf32>
    %137 = vector.extract_strided_slice %26 {offsets = [0, 0, 16], sizes = [1, 64, 4], strides = [1, 1, 1]} : vector<1x64x72xf32> to vector<1x64x4xf32>
    %cst_62 = arith.constant 5.000000e-01 : f32
    %138 = vector.broadcast %cst_62 : f32 to vector<1x64x4xf32>
    %139 = arith.mulf %137, %138 : vector<1x64x4xf32>
    %140 = vector.extract_strided_slice %26 {offsets = [0, 0, 40], sizes = [1, 64, 4], strides = [1, 1, 1]} : vector<1x64x72xf32> to vector<1x64x4xf32>
    %141 = vector.extract_strided_slice %26 {offsets = [0, 0, 64], sizes = [1, 64, 4], strides = [1, 1, 1]} : vector<1x64x72xf32> to vector<1x64x4xf32>
    "tpu.trace_start"() <{level = 10 : i32, message = "wnd,wmd->wnm"}> : () -> ()
    %cst_63 = arith.constant dense<0.000000e+00> : vector<1x64x64xf32>
    %142 = tpu.matmul %139, %140, %cst_63 {dimension_numbers = #tpu.dot_dimension_numbers<[2], [2], [1], [1], [0, 0, 0, 1, 1, 1], [0], [0]>} : vector<1x64x4xf32>, vector<1x64x4xf32>, vector<1x64x64xf32> -> vector<1x64x64xf32>
    "tpu.trace_stop"() : () -> ()
    %c4 = arith.constant 4 : index
    %c0_64 = arith.constant 0 : index
    %c0_65 = arith.constant 0 : index
    %143 = vector.load %arg3[%c4, %c0_64, %c0_65] : memref<6x64x64xf32, #tpu.memory_space<vmem>>, vector<1x64x64xf32>
    %144 = vector.shape_cast %143 : vector<1x64x64xf32> to vector<64x64xf32>
    %145 = vector.shape_cast %144 : vector<64x64xf32> to vector<1x64x64xf32>
    %146 = arith.addf %142, %145 : vector<1x64x64xf32>
    %147 = arith.addf %146, %27 : vector<1x64x64xf32>
    %cst_66 = arith.constant dense<0xFF800000> : vector<1x64xf32>
    %148 = vector.multi_reduction <maximumf>, %147, %cst_66 [2] : vector<1x64x64xf32> to vector<1x64xf32>
    %149 = vector.shape_cast %148 : vector<1x64xf32> to vector<1x64x1xf32>
    %150 = vector.broadcast %149 : vector<1x64x1xf32> to vector<1x64x64xf32>
    %151 = arith.subf %147, %150 : vector<1x64x64xf32>
    %152 = math.exp %151 : vector<1x64x64xf32>
    %cst_67 = arith.constant dense<0.000000e+00> : vector<1x64xf32>
    %153 = vector.multi_reduction <add>, %152, %cst_67 [2] : vector<1x64x64xf32> to vector<1x64xf32>
    %154 = vector.shape_cast %153 : vector<1x64xf32> to vector<1x64x1xf32>
    %155 = tpu.reciprocal %154 {approx = true} : vector<1x64x1xf32> -> vector<1x64x1xf32>
    %156 = vector.broadcast %155 : vector<1x64x1xf32> to vector<1x64x64xf32>
    %157 = arith.mulf %152, %156 : vector<1x64x64xf32>
    "tpu.trace_start"() <{level = 10 : i32, message = "wnm,wmd->wnd"}> : () -> ()
    %cst_68 = arith.constant dense<0.000000e+00> : vector<1x64x4xf32>
    %158 = tpu.matmul %157, %141, %cst_68 {dimension_numbers = #tpu.dot_dimension_numbers<[2], [1], [1], [2], [0, 0, 0, 1, 1, 2], [0], [0]>} : vector<1x64x64xf32>, vector<1x64x4xf32>, vector<1x64x4xf32> -> vector<1x64x4xf32>
    "tpu.trace_stop"() : () -> ()
    %159 = vector.shape_cast %158 : vector<1x64x4xf32> to vector<64x4xf32>
    %c4_69 = arith.constant 4 : index
    %c0_70 = arith.constant 0 : index
    %c0_71 = arith.constant 0 : index
    %160 = vector.load %arg7[%c4_69, %c0_70, %c0_71] : memref<6x4x24xf32, #tpu.memory_space<vmem>>, vector<1x4x24xf32>
    %161 = vector.shape_cast %160 : vector<1x4x24xf32> to vector<4x24xf32>
    %cst_72 = arith.constant dense<0.000000e+00> : vector<64x24xf32>
    %162 = tpu.matmul %159, %161, %cst_72 {dimension_numbers = #tpu.dot_dimension_numbers<[1], [0], [0], [1], [0, 0, 1, 1], [], []>} : vector<64x4xf32>, vector<4x24xf32>, vector<64x24xf32> -> vector<64x24xf32>
    %163 = arith.addf %136, %162 : vector<64x24xf32>
    %164 = vector.extract_strided_slice %26 {offsets = [0, 0, 20], sizes = [1, 64, 4], strides = [1, 1, 1]} : vector<1x64x72xf32> to vector<1x64x4xf32>
    %cst_73 = arith.constant 5.000000e-01 : f32
    %165 = vector.broadcast %cst_73 : f32 to vector<1x64x4xf32>
    %166 = arith.mulf %164, %165 : vector<1x64x4xf32>
    %167 = vector.extract_strided_slice %26 {offsets = [0, 0, 44], sizes = [1, 64, 4], strides = [1, 1, 1]} : vector<1x64x72xf32> to vector<1x64x4xf32>
    %168 = vector.extract_strided_slice %26 {offsets = [0, 0, 68], sizes = [1, 64, 4], strides = [1, 1, 1]} : vector<1x64x72xf32> to vector<1x64x4xf32>
    "tpu.trace_start"() <{level = 10 : i32, message = "wnd,wmd->wnm"}> : () -> ()
    %cst_74 = arith.constant dense<0.000000e+00> : vector<1x64x64xf32>
    %169 = tpu.matmul %166, %167, %cst_74 {dimension_numbers = #tpu.dot_dimension_numbers<[2], [2], [1], [1], [0, 0, 0, 1, 1, 1], [0], [0]>} : vector<1x64x4xf32>, vector<1x64x4xf32>, vector<1x64x64xf32> -> vector<1x64x64xf32>
    "tpu.trace_stop"() : () -> ()
    %c5 = arith.constant 5 : index
    %c0_75 = arith.constant 0 : index
    %c0_76 = arith.constant 0 : index
    %170 = vector.load %arg3[%c5, %c0_75, %c0_76] : memref<6x64x64xf32, #tpu.memory_space<vmem>>, vector<1x64x64xf32>
    %171 = vector.shape_cast %170 : vector<1x64x64xf32> to vector<64x64xf32>
    %172 = vector.shape_cast %171 : vector<64x64xf32> to vector<1x64x64xf32>
    %173 = arith.addf %169, %172 : vector<1x64x64xf32>
    %174 = arith.addf %173, %27 : vector<1x64x64xf32>
    %cst_77 = arith.constant dense<0xFF800000> : vector<1x64xf32>
    %175 = vector.multi_reduction <maximumf>, %174, %cst_77 [2] : vector<1x64x64xf32> to vector<1x64xf32>
    %176 = vector.shape_cast %175 : vector<1x64xf32> to vector<1x64x1xf32>
    %177 = vector.broadcast %176 : vector<1x64x1xf32> to vector<1x64x64xf32>
    %178 = arith.subf %174, %177 : vector<1x64x64xf32>
    %179 = math.exp %178 : vector<1x64x64xf32>
    %cst_78 = arith.constant dense<0.000000e+00> : vector<1x64xf32>
    %180 = vector.multi_reduction <add>, %179, %cst_78 [2] : vector<1x64x64xf32> to vector<1x64xf32>
    %181 = vector.shape_cast %180 : vector<1x64xf32> to vector<1x64x1xf32>
    %182 = tpu.reciprocal %181 {approx = true} : vector<1x64x1xf32> -> vector<1x64x1xf32>
    %183 = vector.broadcast %182 : vector<1x64x1xf32> to vector<1x64x64xf32>
    %184 = arith.mulf %179, %183 : vector<1x64x64xf32>
    "tpu.trace_start"() <{level = 10 : i32, message = "wnm,wmd->wnd"}> : () -> ()
    %cst_79 = arith.constant dense<0.000000e+00> : vector<1x64x4xf32>
    %185 = tpu.matmul %184, %168, %cst_79 {dimension_numbers = #tpu.dot_dimension_numbers<[2], [1], [1], [2], [0, 0, 0, 1, 1, 2], [0], [0]>} : vector<1x64x64xf32>, vector<1x64x4xf32>, vector<1x64x4xf32> -> vector<1x64x4xf32>
    "tpu.trace_stop"() : () -> ()
    %186 = vector.shape_cast %185 : vector<1x64x4xf32> to vector<64x4xf32>
    %c5_80 = arith.constant 5 : index
    %c0_81 = arith.constant 0 : index
    %c0_82 = arith.constant 0 : index
    %187 = vector.load %arg7[%c5_80, %c0_81, %c0_82] : memref<6x4x24xf32, #tpu.memory_space<vmem>>, vector<1x4x24xf32>
    %188 = vector.shape_cast %187 : vector<1x4x24xf32> to vector<4x24xf32>
    %cst_83 = arith.constant dense<0.000000e+00> : vector<64x24xf32>
    %189 = tpu.matmul %186, %188, %cst_83 {dimension_numbers = #tpu.dot_dimension_numbers<[1], [0], [0], [1], [0, 0, 1, 1], [], []>} : vector<64x4xf32>, vector<4x24xf32>, vector<64x24xf32> -> vector<64x24xf32>
    %190 = arith.addf %163, %189 : vector<64x24xf32>
    %c0_84 = arith.constant 0 : index
    %c0_85 = arith.constant 0 : index
    %191 = vector.load %arg8[%c0_84, %c0_85] : memref<1x24xf32, #tpu.memory_space<vmem>>, vector<1x24xf32>
    %192 = vector.broadcast %191 : vector<1x24xf32> to vector<64x24xf32>
    %193 = arith.addf %190, %192 : vector<64x24xf32>
    %194 = arith.addf %193, %1 : vector<64x24xf32>
    %cst_86 = arith.constant dense<0.000000e+00> : vector<64xf32>
    %195 = vector.multi_reduction <add>, %194, %cst_86 [1] : vector<64x24xf32> to vector<64xf32>
    %196 = vector.shape_cast %195 : vector<64xf32> to vector<64x1xf32>
    %cst_87 = arith.constant 2.400000e+01 : f32
    %197 = vector.broadcast %cst_87 : f32 to vector<64x1xf32>
    %198 = arith.divf %196, %197 : vector<64x1xf32>
    %199 = vector.broadcast %198 : vector<64x1xf32> to vector<64x24xf32>
    %200 = arith.subf %194, %199 : vector<64x24xf32>
    %201 = arith.mulf %200, %200 : vector<64x24xf32>
    %cst_88 = arith.constant dense<0.000000e+00> : vector<64xf32>
    %202 = vector.multi_reduction <add>, %201, %cst_88 [1] : vector<64x24xf32> to vector<64xf32>
    %203 = vector.shape_cast %202 : vector<64xf32> to vector<64x1xf32>
    %cst_89 = arith.constant 2.400000e+01 : f32
    %204 = vector.broadcast %cst_89 : f32 to vector<64x1xf32>
    %205 = arith.divf %203, %204 : vector<64x1xf32>
    %cst_90 = arith.constant 9.99999974E-6 : f32
    %206 = vector.broadcast %cst_90 : f32 to vector<64x1xf32>
    %207 = arith.addf %205, %206 : vector<64x1xf32>
    %208 = math.rsqrt %207 : vector<64x1xf32>
    %209 = vector.broadcast %208 : vector<64x1xf32> to vector<64x24xf32>
    %210 = arith.mulf %200, %209 : vector<64x24xf32>
    %c0_91 = arith.constant 0 : index
    %c0_92 = arith.constant 0 : index
    %211 = vector.load %arg9[%c0_91, %c0_92] : memref<1x24xf32, #tpu.memory_space<vmem>>, vector<1x24xf32>
    %212 = vector.broadcast %211 : vector<1x24xf32> to vector<64x24xf32>
    %213 = arith.mulf %210, %212 : vector<64x24xf32>
    %c0_93 = arith.constant 0 : index
    %c0_94 = arith.constant 0 : index
    %214 = vector.load %arg10[%c0_93, %c0_94] : memref<1x24xf32, #tpu.memory_space<vmem>>, vector<1x24xf32>
    %215 = vector.broadcast %214 : vector<1x24xf32> to vector<64x24xf32>
    %216 = arith.addf %213, %215 : vector<64x24xf32>
    %c0_95 = arith.constant 0 : index
    %c0_96 = arith.constant 0 : index
    %217 = vector.load %arg11[%c0_95, %c0_96] : memref<24x48xf32, #tpu.memory_space<vmem>>, vector<24x48xf32>
    %cst_97 = arith.constant dense<0.000000e+00> : vector<64x48xf32>
    %218 = tpu.matmul %216, %217, %cst_97 {dimension_numbers = #tpu.dot_dimension_numbers<[1], [0], [0], [1], [0, 0, 1, 1], [], []>} : vector<64x24xf32>, vector<24x48xf32>, vector<64x48xf32> -> vector<64x48xf32>
    %c0_98 = arith.constant 0 : index
    %c0_99 = arith.constant 0 : index
    %219 = vector.load %arg12[%c0_98, %c0_99] : memref<1x48xf32, #tpu.memory_space<vmem>>, vector<1x48xf32>
    %220 = vector.broadcast %219 : vector<1x48xf32> to vector<64x48xf32>
    %221 = arith.addf %218, %220 : vector<64x48xf32>
    %cst_100 = arith.constant 5.000000e-01 : f32
    %222 = vector.broadcast %cst_100 : f32 to vector<64x48xf32>
    %223 = arith.mulf %222, %221 : vector<64x48xf32>
    %224 = arith.mulf %221, %221 : vector<64x48xf32>
    %225 = arith.mulf %224, %221 : vector<64x48xf32>
    %cst_101 = arith.constant 4.471500e-02 : f32
    %226 = vector.broadcast %cst_101 : f32 to vector<64x48xf32>
    %227 = arith.mulf %226, %225 : vector<64x48xf32>
    %228 = arith.addf %221, %227 : vector<64x48xf32>
    %cst_102 = arith.constant 0.797884583 : f32
    %229 = vector.broadcast %cst_102 : f32 to vector<64x48xf32>
    %230 = arith.mulf %229, %228 : vector<64x48xf32>
    %231 = math.tanh %230 : vector<64x48xf32>
    %cst_103 = arith.constant 1.000000e+00 : f32
    %232 = vector.broadcast %cst_103 : f32 to vector<64x48xf32>
    %233 = arith.addf %232, %231 : vector<64x48xf32>
    %234 = arith.mulf %223, %233 : vector<64x48xf32>
    %c0_104 = arith.constant 0 : index
    %c0_105 = arith.constant 0 : index
    %235 = vector.load %arg13[%c0_104, %c0_105] : memref<48x24xf32, #tpu.memory_space<vmem>>, vector<48x24xf32>
    %cst_106 = arith.constant dense<0.000000e+00> : vector<64x24xf32>
    %236 = tpu.matmul %234, %235, %cst_106 {dimension_numbers = #tpu.dot_dimension_numbers<[1], [0], [0], [1], [0, 0, 1, 1], [], []>} : vector<64x48xf32>, vector<48x24xf32>, vector<64x24xf32> -> vector<64x24xf32>
    %c0_107 = arith.constant 0 : index
    %c0_108 = arith.constant 0 : index
    %237 = vector.load %arg14[%c0_107, %c0_108] : memref<1x24xf32, #tpu.memory_space<vmem>>, vector<1x24xf32>
    %238 = vector.broadcast %237 : vector<1x24xf32> to vector<64x24xf32>
    %239 = arith.addf %236, %238 : vector<64x24xf32>
    %240 = arith.addf %239, %194 : vector<64x24xf32>
    %241 = vector.shape_cast %240 : vector<64x24xf32> to vector<1x64x24xf32>
    %c0_109 = arith.constant 0 : index
    %c0_110 = arith.constant 0 : index
    %c0_111 = arith.constant 0 : index
    %242 = vector.load %arg15[%c0_109, %c0_110, %c0_111] : memref<1x64x24xf32, #tpu.memory_space<vmem>>, vector<1x64x24xf32>
    tpu.vector_store %arg15[%c0_109, %c0_110, %c0_111], %241 {strides = array<i32>} : memref<1x64x24xf32, #tpu.memory_space<vmem>>, vector<1x64x24xf32>,
    return
  }
  func.func @transform_0(%arg0: i32) -> (i32, i32, i32) {
    %c0_i32 = arith.constant 0 : i32
    %c0_i32_0 = arith.constant 0 : i32
    %c0_i32_1 = arith.constant 0 : i32
    return %arg0, %c0_i32, %c0_i32_0 : i32, i32, i32
  }
  func.func @transform_1(%arg0: i32) -> (i32, i32, i32) {
    %c4_i32 = arith.constant 4 : i32
    %c0_i32 = arith.constant 0 : i32
    %0 = arith.cmpi eq, %c4_i32, %c0_i32 : i32
    %c1_i32 = arith.constant 1 : i32
    %1 = arith.select %0, %c1_i32, %c4_i32 : i32
    %2 = arith.remsi %arg0, %1 : i32
    %c0_i32_0 = arith.constant 0 : i32
    %3 = arith.cmpi ne, %2, %c0_i32_0 : i32
    %c0_i32_1 = arith.constant 0 : i32
    %4 = arith.cmpi slt, %2, %c0_i32_1 : i32
    %c0_i32_2 = arith.constant 0 : i32
    %5 = arith.cmpi slt, %1, %c0_i32_2 : i32
    %6 = arith.xori %4, %5 : i1
    %7 = arith.andi %6, %3 : i1
    %8 = arith.addi %2, %1 : i32
    %9 = arith.select %7, %8, %2 : i32
    %c0_i32_3 = arith.constant 0 : i32
    %c0_i32_4 = arith.constant 0 : i32
    %c0_i32_5 = arith.constant 0 : i32
    return %9, %c0_i32_3, %c0_i32_4 : i32, i32, i32
  }
  func.func @transform_2(%arg0: i32) -> (i32, i32, i32) {
    %c0_i32 = arith.constant 0 : i32
    %c0_i32_0 = arith.constant 0 : i32
    %c0_i32_1 = arith.constant 0 : i32
    %c0_i32_2 = arith.constant 0 : i32
    return %c0_i32, %c0_i32_0, %c0_i32_1 : i32, i32, i32
  }
  func.func @transform_3(%arg0: i32) -> (i32, i32) {
    %c0_i32 = arith.constant 0 : i32
    %c0_i32_0 = arith.constant 0 : i32
    %c0_i32_1 = arith.constant 0 : i32
    return %c0_i32, %c0_i32_0 : i32, i32
  }
  func.func @transform_4(%arg0: i32) -> (i32, i32) {
    %c0_i32 = arith.constant 0 : i32
    %c0_i32_0 = arith.constant 0 : i32
    %c0_i32_1 = arith.constant 0 : i32
    return %c0_i32, %c0_i32_0 : i32, i32
  }
  func.func @transform_5(%arg0: i32) -> (i32, i32) {
    %c0_i32 = arith.constant 0 : i32
    %c0_i32_0 = arith.constant 0 : i32
    %c0_i32_1 = arith.constant 0 : i32
    return %c0_i32, %c0_i32_0 : i32, i32
  }
  func.func @transform_6(%arg0: i32) -> (i32, i32, i32) {
    %c0_i32 = arith.constant 0 : i32
    %c0_i32_0 = arith.constant 0 : i32
    %c0_i32_1 = arith.constant 0 : i32
    %c0_i32_2 = arith.constant 0 : i32
    return %c0_i32, %c0_i32_0, %c0_i32_1 : i32, i32, i32
  }
  func.func @transform_7(%arg0: i32) -> (i32, i32) {
    %c0_i32 = arith.constant 0 : i32
    %c0_i32_0 = arith.constant 0 : i32
    %c0_i32_1 = arith.constant 0 : i32
    return %c0_i32, %c0_i32_0 : i32, i32
  }
  func.func @transform_8(%arg0: i32) -> (i32, i32) {
    %c0_i32 = arith.constant 0 : i32
    %c0_i32_0 = arith.constant 0 : i32
    %c0_i32_1 = arith.constant 0 : i32
    return %c0_i32, %c0_i32_0 : i32, i32
  }
  func.func @transform_9(%arg0: i32) -> (i32, i32) {
    %c0_i32 = arith.constant 0 : i32
    %c0_i32_0 = arith.constant 0 : i32
    %c0_i32_1 = arith.constant 0 : i32
    return %c0_i32, %c0_i32_0 : i32, i32
  }
  func.func @transform_10(%arg0: i32) -> (i32, i32) {
    %c0_i32 = arith.constant 0 : i32
    %c0_i32_0 = arith.constant 0 : i32
    %c0_i32_1 = arith.constant 0 : i32
    return %c0_i32, %c0_i32_0 : i32, i32
  }
  func.func @transform_11(%arg0: i32) -> (i32, i32) {
    %c0_i32 = arith.constant 0 : i32
    %c0_i32_0 = arith.constant 0 : i32
    %c0_i32_1 = arith.constant 0 : i32
    return %c0_i32, %c0_i32_0 : i32, i32
  }
  func.func @transform_12(%arg0: i32) -> (i32, i32) {
    %c0_i32 = arith.constant 0 : i32
    %c0_i32_0 = arith.constant 0 : i32
    %c0_i32_1 = arith.constant 0 : i32
    return %c0_i32, %c0_i32_0 : i32, i32
  }
  func.func @transform_13(%arg0: i32) -> (i32, i32) {
    %c0_i32 = arith.constant 0 : i32
    %c0_i32_0 = arith.constant 0 : i32
    %c0_i32_1 = arith.constant 0 : i32
    return %c0_i32, %c0_i32_0 : i32, i32
  }
  func.func @transform_14(%arg0: i32) -> (i32, i32, i32) {
    %c0_i32 = arith.constant 0 : i32
    %c0_i32_0 = arith.constant 0 : i32
    %c0_i32_1 = arith.constant 0 : i32
    return %arg0, %c0_i32, %c0_i32_0 : i32, i32, i32
  }
}

</mosaic_0001>

<llo_original>
// kernel: stl_forward.1
$region0: #{stl_forward.1}
  #allocation0 [shape = 'u32[]', space=smem, size = 0x4, offset = 0x4, fixed_abs, tag = 'smem constant byte address 0x4 - core index']
  #allocation1 [shape = 'u32[72,128]{1,0:T(1,128)}', space=vmem, size = 0x9000, scoped, tag = 'internal scratch']
  %s0 = inlined_call_operand.vmem [shape: f32[8,64,24], index: 0, kind: input, shape index: {}]
  %s1 = inlined_call_operand.vmem [shape: f32[4,64,64], index: 1, kind: input, shape index: {}]
  %s2 = inlined_call_operand.vmem [shape: f32[6,64,64], index: 2, kind: input, shape index: {}]
  %s3 = inlined_call_operand.vmem [shape: f32[1,24], index: 3, kind: input, shape index: {}]
  %s4 = inlined_call_operand.vmem [shape: f32[1,24], index: 4, kind: input, shape index: {}]
  %s5 = inlined_call_operand.vmem [shape: f32[24,72], index: 5, kind: input, shape index: {}]
  %s6 = inlined_call_operand.vmem [shape: f32[6,4,24], index: 6, kind: input, shape index: {}]
  %s7 = inlined_call_operand.vmem [shape: f32[1,24], index: 7, kind: input, shape index: {}]
  %s8 = inlined_call_operand.vmem [shape: f32[1,24], index: 8, kind: input, shape index: {}]
  %s9 = inlined_call_operand.vmem [shape: f32[1,24], index: 9, kind: input, shape index: {}]
  %s10 = inlined_call_operand.vmem [shape: f32[24,48], index: 10, kind: input, shape index: {}]
  %s11 = inlined_call_operand.vmem [shape: f32[1,48], index: 11, kind: input, shape index: {}]
  %s12 = inlined_call_operand.vmem [shape: f32[48,24], index: 12, kind: input, shape index: {}]
  %s13 = inlined_call_operand.vmem [shape: f32[1,24], index: 13, kind: input, shape index: {}]
  %s14 = inlined_call_operand.vmem [shape: f32[8,64,24], index: 14, kind: output, shape index: {}]
  %s15 = sld [smem:[#allocation0]]
  $region89: #{stl_forward.1} parent=0
    _
  %s17 = ssub.s32 1, %s15
  %s18 = scalar_select 0, %s17, %s15
  loop: start=0, step=1, limit=10
  $region2: #{stl_forward.1} parent=0 // loop_pre_header
    _
  $region3: #{stl_forward.1} parent=0 // loop_header
    %s20 = sphi 0, %s24
    %p21 = scmp.ge.s32.totalorder %s20, 10
    %s30 = sphi 0, %s32
    %s33 = sphi 0, %s30
    %s34 = sphi 0, %s33
    %s50 = sphi 0, %s34
    %s80 = sphi 0, %s82
    %s83 = sphi 0, %s80
    %s84 = sphi 0, %s83
    %s100 = sphi 0, %s84
    %s104 = sphi 0, %s104
    %s106 = sphi 0, %s104
    %s107 = sphi 0, %s106
    %s121 = sphi 0, %s107
    %s125 = sphi 0, %s125
    %s127 = sphi 0, %s125
    %s128 = sphi 0, %s127
    %s142 = sphi 0, %s128
    %s146 = sphi 0, %s146
    %s148 = sphi 0, %s146
    %s149 = sphi 0, %s148
    %s163 = sphi 0, %s149
    %s167 = sphi 0, %s167
    %s169 = sphi 0, %s167
    %s170 = sphi 0, %s169
    %s184 = sphi 0, %s170
    %s188 = sphi 0, %s188
    %s190 = sphi 0, %s188
    %s191 = sphi 0, %s190
    %s205 = sphi 0, %s191
    %s209 = sphi 0, %s209
    %s211 = sphi 0, %s209
    %s212 = sphi 0, %s211
    %s226 = sphi 0, %s212
    %s230 = sphi 0, %s230
    %s232 = sphi 0, %s230
    %s233 = sphi 0, %s232
    %s247 = sphi 0, %s233
    %s251 = sphi 0, %s251
    %s253 = sphi 0, %s251
    %s254 = sphi 0, %s253
    %s268 = sphi 0, %s254
    %s272 = sphi 0, %s272
    %s274 = sphi 0, %s272
    %s275 = sphi 0, %s274
    %s289 = sphi 0, %s275
    %s293 = sphi 0, %s293
    %s295 = sphi 0, %s293
    %s296 = sphi 0, %s295
    %s310 = sphi 0, %s296
    %s314 = sphi 0, %s314
    %s316 = sphi 0, %s314
    %s317 = sphi 0, %s316
    %s331 = sphi 0, %s317
    %s335 = sphi 0, %s335
    %s337 = sphi 0, %s335
    %s338 = sphi 0, %s337
    %s352 = sphi 0, %s338
    %s358 = sphi 0, %s360
    %s361 = sphi 0, %s358
    %s362 = sphi 0, %s361
    %s378 = sphi 0, %s362
  $region4: #{stl_forward.1} parent=0 // loop_header_branch
    %23 = sbr.rel (%p21) target = $region8
  $region5: #{stl_forward.1} parent=0 // loop_body
    %s25 = ssub.s32 %s20, 1
    %s26 = ssub.s32 %s20, 2
    %s27 = sadd.s32 %s20, 1
    %s28 = ssub.s32 %s20, %s27
    %p29 = scmp.eq.s32.totalorder %s28, 0
    %s31 = sadd.s32 %s30, 1
    %s32 = scalar_select %p29, %s30, %s31
    %p35 = pneg %p29
    %p36 = scmp.eq.s32.totalorder %s20, 7
    %p37 = por %p35, %p36
    %p38 = scmp.ne.s32.totalorder %s30, %s33
    %p39 = scmp.eq.s32.totalorder %s20, 0
    %p40 = por %p38, %p39
    %p41 = scmp.ne.s32.totalorder %s30, %s33
    %p42 = scmp.eq.s32.totalorder %s25, 7
    %p43 = por %p41, %p42
    %p44 = scmp.ne.s32.totalorder %s33, %s34
    %p45 = scmp.eq.s32.totalorder %s25, 0
    %p46 = por %p44, %p45
    %p47 = scmp.ne.s32.totalorder %s33, %s34
    %p48 = scmp.eq.s32.totalorder %s26, 7
    %p49 = por %p47, %p48
    %p51 = scmp.ne.s32.totalorder %s34, %s50
    %p52 = scmp.eq.s32.totalorder %s26, 0
    %p53 = por %p51, %p52
    %p54 = scmp.lt.s32.totalorder %s20, 0
    %s55 = ssub.s32 0, %s20
    %s56 = scalar_select %p54, %s55, %s20
    %s57 = sand.u32 %s56, 3
    %s58 = ssub.s32 0, %s57
    %s59 = scalar_select %p54, %s58, %s57
    %p60 = scmp.ne.s32.totalorder %s59, 0
    %p61 = scmp.lt.s32.totalorder %s59, 0
    %p62 = pnand %p61, %p60
    %p63 = pneg %p62
    %s64 = sadd.s32 %s59, 4
    %s65 = scalar_select %p63, %s64, %s59
    %p66 = scmp.lt.s32.totalorder %s27, 0
    %s67 = ssub.s32 0, %s27
    %s68 = scalar_select %p66, %s67, %s27
    %s69 = sand.u32 %s68, 3
    %s70 = ssub.s32 0, %s69
    %s71 = scalar_select %p66, %s70, %s69
    %p72 = scmp.ne.s32.totalorder %s71, 0
    %p73 = scmp.lt.s32.totalorder %s71, 0
    %p74 = pnand %p73, %p72
    %p75 = pneg %p74
    %s76 = sadd.s32 %s71, 4
    %s77 = scalar_select %p75, %s76, %s71
    %s78 = ssub.s32 %s65, %s77
    %p79 = scmp.eq.s32.totalorder %s78, 0
    %s81 = sadd.s32 %s80, 1
    %s82 = scalar_select %p79, %s80, %s81
    %p85 = pneg %p79
    %p86 = scmp.eq.s32.totalorder %s20, 7
    %p87 = por %p85, %p86
    %p88 = scmp.ne.s32.totalorder %s80, %s83
    %p89 = scmp.eq.s32.totalorder %s20, 0
    %p90 = por %p88, %p89
    %p91 = scmp.ne.s32.totalorder %s80, %s83
    %p92 = scmp.eq.s32.totalorder %s25, 7
    %p93 = por %p91, %p92
    %p94 = scmp.ne.s32.totalorder %s83, %s84
    %p95 = scmp.eq.s32.totalorder %s25, 0
    %p96 = por %p94, %p95
    %p97 = scmp.ne.s32.totalorder %s83, %s84
    %p98 = scmp.eq.s32.totalorder %s26, 7
    %p99 = por %p97, %p98
    %p101 = scmp.ne.s32.totalorder %s84, %s100
    %p102 = scmp.eq.s32.totalorder %s26, 0
    %p103 = por %p101, %p102
    %s105 = sadd.s32 %s104, 1
    %p108 = scmp.eq.s32.totalorder %s20, 7
    %p109 = scmp.ne.s32.totalorder %s104, %s106
    %p110 = scmp.eq.s32.totalorder %s20, 0
    %p111 = por %p109, %p110
    %p112 = scmp.ne.s32.totalorder %s104, %s106
    %p113 = scmp.eq.s32.totalorder %s25, 7
    %p114 = por %p112, %p113
    %p115 = scmp.ne.s32.totalorder %s106, %s107
    %p116 = scmp.eq.s32.totalorder %s25, 0
    %p117 = por %p115, %p116
    %p118 = scmp.ne.s32.totalorder %s106, %s107
    %p119 = scmp.eq.s32.totalorder %s26, 7
    %p120 = por %p118, %p119
    %p122 = scmp.ne.s32.totalorder %s107, %s121
    %p123 = scmp.eq.s32.totalorder %s26, 0
    %p124 = por %p122, %p123
    %s126 = sadd.s32 %s125, 1
    %p129 = scmp.eq.s32.totalorder %s20, 7
    %p130 = scmp.ne.s32.totalorder %s125, %s127
    %p131 = scmp.eq.s32.totalorder %s20, 0
    %p132 = por %p130, %p131
    %p133 = scmp.ne.s32.totalorder %s125, %s127
    %p134 = scmp.eq.s32.totalorder %s25, 7
    %p135 = por %p133, %p134
    %p136 = scmp.ne.s32.totalorder %s127, %s128
    %p137 = scmp.eq.s32.totalorder %s25, 0
    %p138 = por %p136, %p137
    %p139 = scmp.ne.s32.totalorder %s127, %s128
    %p140 = scmp.eq.s32.totalorder %s26, 7
    %p141 = por %p139, %p140
    %p143 = scmp.ne.s32.totalorder %s128, %s142
    %p144 = scmp.eq.s32.totalorder %s26, 0
    %p145 = por %p143, %p144
    %s147 = sadd.s32 %s146, 1
    %p150 = scmp.eq.s32.totalorder %s20, 7
    %p151 = scmp.ne.s32.totalorder %s146, %s148
    %p152 = scmp.eq.s32.totalorder %s20, 0
    %p153 = por %p151, %p152
    %p154 = scmp.ne.s32.totalorder %s146, %s148
    %p155 = scmp.eq.s32.totalorder %s25, 7
    %p156 = por %p154, %p155
    %p157 = scmp.ne.s32.totalorder %s148, %s149
    %p158 = scmp.eq.s32.totalorder %s25, 0
    %p159 = por %p157, %p158
    %p160 = scmp.ne.s32.totalorder %s148, %s149
    %p161 = scmp.eq.s32.totalorder %s26, 7
    %p162 = por %p160, %p161
    %p164 = scmp.ne.s32.totalorder %s149, %s163
    %p165 = scmp.eq.s32.totalorder %s26, 0
    %p166 = por %p164, %p165
    %s168 = sadd.s32 %s167, 1
    %p171 = scmp.eq.s32.totalorder %s20, 7
    %p172 = scmp.ne.s32.totalorder %s167, %s169
    %p173 = scmp.eq.s32.totalorder %s20, 0
    %p174 = por %p172, %p173
    %p175 = scmp.ne.s32.totalorder %s167, %s169
    %p176 = scmp.eq.s32.totalorder %s25, 7
    %p177 = por %p175, %p176
    %p178 = scmp.ne.s32.totalorder %s169, %s170
    %p179 = scmp.eq.s32.totalorder %s25, 0
    %p180 = por %p178, %p179
    %p181 = scmp.ne.s32.totalorder %s169, %s170
    %p182 = scmp.eq.s32.totalorder %s26, 7
    %p183 = por %p181, %p182
    %p185 = scmp.ne.s32.totalorder %s170, %s184
    %p186 = scmp.eq.s32.totalorder %s26, 0
    %p187 = por %p185, %p186
    %s189 = sadd.s32 %s188, 1
    %p192 = scmp.eq.s32.totalorder %s20, 7
    %p193 = scmp.ne.s32.totalorder %s188, %s190
    %p194 = scmp.eq.s32.totalorder %s20, 0
    %p195 = por %p193, %p194
    %p196 = scmp.ne.s32.totalorder %s188, %s190
    %p197 = scmp.eq.s32.totalorder %s25, 7
    %p198 = por %p196, %p197
    %p199 = scmp.ne.s32.totalorder %s190, %s191
    %p200 = scmp.eq.s32.totalorder %s25, 0
    %p201 = por %p199, %p200
    %p202 = scmp.ne.s32.totalorder %s190, %s191
    %p203 = scmp.eq.s32.totalorder %s26, 7
    %p204 = por %p202, %p203
    %p206 = scmp.ne.s32.totalorder %s191, %s205
    %p207 = scmp.eq.s32.totalorder %s26, 0
    %p208 = por %p206, %p207
    %s210 = sadd.s32 %s209, 1
    %p213 = scmp.eq.s32.totalorder %s20, 7
    %p214 = scmp.ne.s32.totalorder %s209, %s211
    %p215 = scmp.eq.s32.totalorder %s20, 0
    %p216 = por %p214, %p215
    %p217 = scmp.ne.s32.totalorder %s209, %s211
    %p218 = scmp.eq.s32.totalorder %s25, 7
    %p219 = por %p217, %p218
    %p220 = scmp.ne.s32.totalorder %s211, %s212
    %p221 = scmp.eq.s32.totalorder %s25, 0
    %p222 = por %p220, %p221
    %p223 = scmp.ne.s32.totalorder %s211, %s212
    %p224 = scmp.eq.s32.totalorder %s26, 7
    %p225 = por %p223, %p224
    %p227 = scmp.ne.s32.totalorder %s212, %s226
    %p228 = scmp.eq.s32.totalorder %s26, 0
    %p229 = por %p227, %p228
    %s231 = sadd.s32 %s230, 1
    %p234 = scmp.eq.s32.totalorder %s20, 7
    %p235 = scmp.ne.s32.totalorder %s230, %s232
    %p236 = scmp.eq.s32.totalorder %s20, 0
    %p237 = por %p235, %p236
    %p238 = scmp.ne.s32.totalorder %s230, %s232
    %p239 = scmp.eq.s32.totalorder %s25, 7
    %p240 = por %p238, %p239
    %p241 = scmp.ne.s32.totalorder %s232, %s233
    %p242 = scmp.eq.s32.totalorder %s25, 0
    %p243 = por %p241, %p242
    %p244 = scmp.ne.s32.totalorder %s232, %s233
    %p245 = scmp.eq.s32.totalorder %s26, 7
    %p246 = por %p244, %p245
    %p248 = scmp.ne.s32.totalorder %s233, %s247
    %p249 = scmp.eq.s32.totalorder %s26, 0
    %p250 = por %p248, %p249
    %s252 = sadd.s32 %s251, 1
    %p255 = scmp.eq.s32.totalorder %s20, 7
    %p256 = scmp.ne.s32.totalorder %s251, %s253
    %p257 = scmp.eq.s32.totalorder %s20, 0
    %p258 = por %p256, %p257
    %p259 = scmp.ne.s32.totalorder %s251, %s253
    %p260 = scmp.eq.s32.totalorder %s25, 7
    %p261 = por %p259, %p260
    %p262 = scmp.ne.s32.totalorder %s253, %s254
    %p263 = scmp.eq.s32.totalorder %s25, 0
    %p264 = por %p262, %p263
    %p265 = scmp.ne.s32.totalorder %s253, %s254
    %p266 = scmp.eq.s32.totalorder %s26, 7
    %p267 = por %p265, %p266
    %p269 = scmp.ne.s32.totalorder %s254, %s268
    %p270 = scmp.eq.s32.totalorder %s26, 0
    %p271 = por %p269, %p270
    %s273 = sadd.s32 %s272, 1
    %p276 = scmp.eq.s32.totalorder %s20, 7
    %p277 = scmp.ne.s32.totalorder %s272, %s274
    %p278 = scmp.eq.s32.totalorder %s20, 0
    %p279 = por %p277, %p278
    %p280 = scmp.ne.s32.totalorder %s272, %s274
    %p281 = scmp.eq.s32.totalorder %s25, 7
    %p282 = por %p280, %p281
    %p283 = scmp.ne.s32.totalorder %s274, %s275
    %p284 = scmp.eq.s32.totalorder %s25, 0
    %p285 = por %p283, %p284
    %p286 = scmp.ne.s32.totalorder %s274, %s275
    %p287 = scmp.eq.s32.totalorder %s26, 7
    %p288 = por %p286, %p287
    %p290 = scmp.ne.s32.totalorder %s275, %s289
    %p291 = scmp.eq.s32.totalorder %s26, 0
    %p292 = por %p290, %p291
    %s294 = sadd.s32 %s293, 1
    %p297 = scmp.eq.s32.totalorder %s20, 7
    %p298 = scmp.ne.s32.totalorder %s293, %s295
    %p299 = scmp.eq.s32.totalorder %s20, 0
    %p300 = por %p298, %p299
    %p301 = scmp.ne.s32.totalorder %s293, %s295
    %p302 = scmp.eq.s32.totalorder %s25, 7
    %p303 = por %p301, %p302
    %p304 = scmp.ne.s32.totalorder %s295, %s296
    %p305 = scmp.eq.s32.totalorder %s25, 0
    %p306 = por %p304, %p305
    %p307 = scmp.ne.s32.totalorder %s295, %s296
    %p308 = scmp.eq.s32.totalorder %s26, 7
    %p309 = por %p307, %p308
    %p311 = scmp.ne.s32.totalorder %s296, %s310
    %p312 = scmp.eq.s32.totalorder %s26, 0
    %p313 = por %p311, %p312
    %s315 = sadd.s32 %s314, 1
    %p318 = scmp.eq.s32.totalorder %s20, 7
    %p319 = scmp.ne.s32.totalorder %s314, %s316
    %p320 = scmp.eq.s32.totalorder %s20, 0
    %p321 = por %p319, %p320
    %p322 = scmp.ne.s32.totalorder %s314, %s316
    %p323 = scmp.eq.s32.totalorder %s25, 7
    %p324 = por %p322, %p323
    %p325 = scmp.ne.s32.totalorder %s316, %s317
    %p326 = scmp.eq.s32.totalorder %s25, 0
    %p327 = por %p325, %p326
    %p328 = scmp.ne.s32.totalorder %s316, %s317
    %p329 = scmp.eq.s32.totalorder %s26, 7
    %p330 = por %p328, %p329
    %p332 = scmp.ne.s32.totalorder %s317, %s331
    %p333 = scmp.eq.s32.totalorder %s26, 0
    %p334 = por %p332, %p333
    %s336 = sadd.s32 %s335, 1
    %p339 = scmp.eq.s32.totalorder %s20, 7
    %p340 = scmp.ne.s32.totalorder %s335, %s337
    %p341 = scmp.eq.s32.totalorder %s20, 0
    %p342 = por %p340, %p341
    %p343 = scmp.ne.s32.totalorder %s335, %s337
    %p344 = scmp.eq.s32.totalorder %s25, 7
    %p345 = por %p343, %p344
    %p346 = scmp.ne.s32.totalorder %s337, %s338
    %p347 = scmp.eq.s32.totalorder %s25, 0
    %p348 = por %p346, %p347
    %p349 = scmp.ne.s32.totalorder %s337, %s338
    %p350 = scmp.eq.s32.totalorder %s26, 7
    %p351 = por %p349, %p350
    %p353 = scmp.ne.s32.totalorder %s338, %s352
    %p354 = scmp.eq.s32.totalorder %s26, 0
    %p355 = por %p353, %p354
    %s356 = ssub.s32 %s20, %s27
    %p357 = scmp.eq.s32.totalorder %s356, 0
    %s359 = sadd.s32 %s358, 1
    %s360 = scalar_select %p357, %s358, %s359
    %p363 = pneg %p357
    %p364 = scmp.eq.s32.totalorder %s20, 7
    %p365 = por %p363, %p364
    %p366 = scmp.ne.s32.totalorder %s358, %s361
    %p367 = scmp.eq.s32.totalorder %s20, 0
    %p368 = por %p366, %p367
    %p369 = scmp.ne.s32.totalorder %s358, %s361
    %p370 = scmp.eq.s32.totalorder %s25, 7
    %p371 = por %p369, %p370
    %p372 = scmp.ne.s32.totalorder %s361, %s362
    %p373 = scmp.eq.s32.totalorder %s25, 0
    %p374 = por %p372, %p373
    %p375 = scmp.ne.s32.totalorder %s361, %s362
    %p376 = scmp.eq.s32.totalorder %s26, 7
    %p377 = por %p375, %p376
    %p379 = scmp.ne.s32.totalorder %s362, %s378
    %p380 = scmp.eq.s32.totalorder %s26, 0
    %p381 = por %p379, %p380
    %p382 = scmp.le.s32.totalorder 1, %s20
    %p383 = scmp.lt.s32.totalorder %s20, 9
    %p384 = pnand %p382, %p383
    %p385 = pneg %p384
    // Predicated region
    $region9: #{stl_forward.1} parent=5 // pred_check
      _
    $region10: #{stl_forward.1} parent=5 // pred_check_branch
      %387 = sbr.rel (%p384) target = $region12
    $region11: #{stl_forward.1} parent=5 // pred_region
      %s388 = ssub.s32 %s20, 1
      // Predicated region
      $region13: #{stl_forward.1} parent=11 // pred_check
        %p389 = pneg %p117
      $region14: #{stl_forward.1} parent=11 // pred_check_branch
        %391 = sbr.rel (%p389) target = $region16
      $region15: #{stl_forward.1} parent=11 // pred_region
        _
      $region16: #{stl_forward.1} parent=11 // pred_fallthru
        _
      // Predicated region
      $region17: #{stl_forward.1} parent=11 // pred_check
        %p392 = pneg %p138
      $region18: #{stl_forward.1} parent=11 // pred_check_branch
        %394 = sbr.rel (%p392) target = $region20
      $region19: #{stl_forward.1} parent=11 // pred_region
        _
      $region20: #{stl_forward.1} parent=11 // pred_fallthru
        _
      // Predicated region
      $region21: #{stl_forward.1} parent=11 // pred_check
        %p395 = pneg %p159
      $region22: #{stl_forward.1} parent=11 // pred_check_branch
        %397 = sbr.rel (%p395) target = $region24
      $region23: #{stl_forward.1} parent=11 // pred_region
        _
      $region24: #{stl_forward.1} parent=11 // pred_fallthru
        _
      // Predicated region
      $region25: #{stl_forward.1} parent=11 // pred_check
        %p398 = pneg %p180
      $region26: #{stl_forward.1} parent=11 // pred_check_branch
        %400 = sbr.rel (%p398) target = $region28
      $region27: #{stl_forward.1} parent=11 // pred_region
        _
      $region28: #{stl_forward.1} parent=11 // pred_fallthru
        _
      // Predicated region
      $region29: #{stl_forward.1} parent=11 // pred_check
        %p401 = pneg %p201
      $region30: #{stl_forward.1} parent=11 // pred_check_branch
        %403 = sbr.rel (%p401) target = $region32
      $region31: #{stl_forward.1} parent=11 // pred_region
        _
      $region32: #{stl_forward.1} parent=11 // pred_fallthru
        _
      // Predicated region
      $region33: #{stl_forward.1} parent=11 // pred_check
        %p404 = pneg %p222
      $region34: #{stl_forward.1} parent=11 // pred_check_branch
        %406 = sbr.rel (%p404) target = $region36
      $region35: #{stl_forward.1} parent=11 // pred_region
        _
      $region36: #{stl_forward.1} parent=11 // pred_fallthru
        _
      // Predicated region
      $region37: #{stl_forward.1} parent=11 // pred_check
        %p407 = pneg %p243
      $region38: #{stl_forward.1} parent=11 // pred_check_branch
        %409 = sbr.rel (%p407) target = $region40
      $region39: #{stl_forward.1} parent=11 // pred_region
        _
      $region40: #{stl_forward.1} parent=11 // pred_fallthru
        _
      // Predicated region
      $region41: #{stl_forward.1} parent=11 // pred_check
        %p410 = pneg %p264
      $region42: #{stl_forward.1} parent=11 // pred_check_branch
        %412 = sbr.rel (%p410) target = $region44
      $region43: #{stl_forward.1} parent=11 // pred_region
        _
      $region44: #{stl_forward.1} parent=11 // pred_fallthru
        _
      // Predicated region
      $region45: #{stl_forward.1} parent=11 // pred_check
        %p413 = pneg %p285
      $region46: #{stl_forward.1} parent=11 // pred_check_branch
        %415 = sbr.rel (%p413) target = $region48
      $region47: #{stl_forward.1} parent=11 // pred_region
        _
      $region48: #{stl_forward.1} parent=11 // pred_fallthru
        _
      // Predicated region
      $region49: #{stl_forward.1} parent=11 // pred_check
        %p416 = pneg %p306
      $region50: #{stl_forward.1} parent=11 // pred_check_branch
        %418 = sbr.rel (%p416) target = $region52
      $region51: #{stl_forward.1} parent=11 // pred_region
        _
      $region52: #{stl_forward.1} parent=11 // pred_fallthru
        _
      // Predicated region
      $region53: #{stl_forward.1} parent=11 // pred_check
        %p419 = pneg %p327
      $region54: #{stl_forward.1} parent=11 // pred_check_branch
        %421 = sbr.rel (%p419) target = $region56
      $region55: #{stl_forward.1} parent=11 // pred_region
        _
      $region56: #{stl_forward.1} parent=11 // pred_fallthru
        _
      // Predicated region
      $region57: #{stl_forward.1} parent=11 // pred_check
        %p422 = pneg %p348
      $region58: #{stl_forward.1} parent=11 // pred_check_branch
        %424 = sbr.rel (%p422) target = $region60
      $region59: #{stl_forward.1} parent=11 // pred_region
        _
      $region60: #{stl_forward.1} parent=11 // pred_fallthru
        _
    $region12: #{stl_forward.1} parent=5 // pred_fallthru
      _
    %p425 = scmp.lt.s32.totalorder %s20, 8
    // Predicated region
    $region61: #{stl_forward.1} parent=5 // pred_check
      %p426 = pneg %p425
    $region62: #{stl_forward.1} parent=5 // pred_check_branch
      %428 = sbr.rel (%p426) target = $region64
    $region63: #{stl_forward.1} parent=5 // pred_region
      // Predicated region
      $region65: #{stl_forward.1} parent=63 // pred_check
        %p429 = pneg %p40
      $region66: #{stl_forward.1} parent=63 // pred_check_branch
        %431 = sbr.rel (%p429) target = $region68
      $region67: #{stl_forward.1} parent=63 // pred_region
        %p432 = scmp.lt.s32.totalorder %s20, 7
        %s433 = scalar_select %p432, %s20, 7
        %s434 = smul.addr %s433, 8
        %s435 = smul.addr %s434, 8
        %s436 = scalar_lea.vmem %s0, %s435
      $region68: #{stl_forward.1} parent=63 // pred_fallthru
        _
      // Predicated region
      $region69: #{stl_forward.1} parent=63 // pred_check
        %p437 = pneg %p90
      $region70: #{stl_forward.1} parent=63 // pred_check_branch
        %439 = sbr.rel (%p437) target = $region72
      $region71: #{stl_forward.1} parent=63 // pred_region
        %p440 = scmp.lt.s32.totalorder %s20, 0
        %s441 = ssub.s32 0, %s20
        %s442 = scalar_select %p440, %s441, %s20
        %s443 = sand.u32 %s442, 3
        %s444 = ssub.s32 0, %s443
        %s445 = scalar_select %p440, %s444, %s443
        %p446 = scmp.ne.s32.totalorder %s445, 0
        %p447 = scmp.lt.s32.totalorder %s445, 0
        %p448 = pnand %p447, %p446
        %p449 = pneg %p448
        %s450 = sadd.s32 %s445, 4
        %s451 = scalar_select %p449, %s450, %s445
        %p452 = scmp.lt.s32.totalorder %s451, 3
        %s453 = scalar_select %p452, %s451, 3
        %s454 = smul.addr %s453, 8
        %s455 = smul.addr %s454, 8
        %s456 = scalar_lea.vmem %s1, %s455
        %p457 = scmp.lt.s32.totalorder %s20, 0
        %s458 = ssub.s32 0, %s20
        %s459 = scalar_select %p457, %s458, %s20
        %s460 = sand.u32 %s459, 3
        %s461 = ssub.s32 0, %s460
        %s462 = scalar_select %p457, %s461, %s460
        %p463 = scmp.ne.s32.totalorder %s462, 0
        %p464 = scmp.lt.s32.totalorder %s462, 0
        %p465 = pnand %p464, %p463
        %p466 = pneg %p465
        %s467 = sadd.s32 %s462, 4
        %s468 = scalar_select %p466, %s467, %s462
      $region72: #{stl_forward.1} parent=63 // pred_fallthru
        _
    $region64: #{stl_forward.1} parent=5 // pred_fallthru
      _
    %p469 = scmp.le.s32.totalorder 1, %s20
    %p470 = scmp.lt.s32.totalorder %s20, 9
    %p471 = pnand %p469, %p470
    %p472 = pneg %p471
    // Predicated region
    $region73: #{stl_forward.1} parent=5 // pred_check
      _
    $region74: #{stl_forward.1} parent=5 // pred_check_branch
      %474 = sbr.rel (%p471) target = $region76
    $region75: #{stl_forward.1} parent=5 // pred_region
      %s475 = ssub.s32 %s20, 1
      %p476 = scmp.lt.s32.totalorder %s25, 7
      %s477 = scalar_select %p476, %s25, 7
      %s478 = smul.addr %s477, 8
      %s479 = smul.addr %s478, 8
      %s480 = scalar_lea.vmem %s0, %s479
      %p481 = pneg %p46
      %p482 = pneg %p43
      %p483 = scmp.lt.s32.totalorder %s25, 0
      %s484 = ssub.s32 0, %s25
      %s485 = scalar_select %p483, %s484, %s25
      %s486 = sand.u32 %s485, 3
      %s487 = ssub.s32 0, %s486
      %s488 = scalar_select %p483, %s487, %s486
      %p489 = scmp.ne.s32.totalorder %s488, 0
      %p490 = scmp.lt.s32.totalorder %s488, 0
      %p491 = pnand %p490, %p489
      %p492 = pneg %p491
      %s493 = sadd.s32 %s488, 4
      %s494 = scalar_select %p492, %s493, %s488
      %p495 = scmp.lt.s32.totalorder %s494, 3
      %s496 = scalar_select %p495, %s494, 3
      %s497 = smul.addr %s496, 8
      %s498 = smul.addr %s497, 8
      %s499 = scalar_lea.vmem %s1, %s498
      %p500 = pneg %p96
      %p501 = pneg %p93
      %p502 = pneg %p117
      %p503 = pneg %p114
      %p504 = pneg %p138
      %p505 = pneg %p135
      %p506 = pneg %p159
      %p507 = pneg %p156
      %p508 = pneg %p180
      %p509 = pneg %p177
      %p510 = pneg %p201
      %p511 = pneg %p198
      %p512 = pneg %p222
      %p513 = pneg %p219
      %p514 = pneg %p243
      %p515 = pneg %p240
      %p516 = pneg %p264
      %p517 = pneg %p261
      %p518 = pneg %p285
      %p519 = pneg %p282
      %p520 = pneg %p306
      %p521 = pneg %p303
      %p522 = pneg %p327
      %p523 = pneg %p324
      %p524 = pneg %p348
      %p525 = pneg %p345
      %p526 = pneg %p374
      %p527 = pneg %p371
      %p528 = scmp.lt.s32.totalorder %s25, 7
      %s529 = scalar_select %p528, %s25, 7
      %s530 = smul.addr %s529, 8
      %s531 = smul.addr %s530, 8
      %s532 = scalar_lea.vmem %s14, %s531
      %p533 = scmp.lt.s32.totalorder %s25, 7
      %s534 = scalar_select %p533, %s25, 7
      %s535 = smul.addr %s534, 8
      %s536 = smul.addr %s535, 8
      %s537 = scalar_lea.vmem %s0, %s536
      %p538 = scmp.lt.s32.totalorder %s25, 0
      %s539 = ssub.s32 0, %s25
      %s540 = scalar_select %p538, %s539, %s25
      %s541 = sand.u32 %s540, 3
      %s542 = ssub.s32 0, %s541
      %s543 = scalar_select %p538, %s542, %s541
      %p544 = scmp.ne.s32.totalorder %s543, 0
      %p545 = scmp.lt.s32.totalorder %s543, 0
      %p546 = pnand %p545, %p544
      %p547 = pneg %p546
      %s548 = sadd.s32 %s543, 4
      %s549 = scalar_select %p547, %s548, %s543
      %p550 = scmp.lt.s32.totalorder %s549, 3
      %s551 = scalar_select %p550, %s549, 3
      %s552 = smul.addr %s551, 8
      %s553 = smul.addr %s552, 8
      %s554 = scalar_lea.vmem %s1, %s553
      %p555 = scmp.lt.s32.totalorder %s25, 0
      %s556 = ssub.s32 0, %s25
      %s557 = scalar_select %p555, %s556, %s25
      %s558 = sand.u32 %s557, 3
      %s559 = ssub.s32 0, %s558
      %s560 = scalar_select %p555, %s559, %s558
      %p561 = scmp.ne.s32.totalorder %s560, 0
      %p562 = scmp.lt.s32.totalorder %s560, 0
      %p563 = pnand %p562, %p561
      %p564 = pneg %p563
      %s565 = sadd.s32 %s560, 4
      %s566 = scalar_select %p564, %s565, %s560
      %p567 = scmp.lt.s32.totalorder %s25, 7
      %s568 = scalar_select %p567, %s25, 7
      %s569 = smul.addr %s568, 8
      %s570 = smul.addr %s569, 8
      %s571 = scalar_lea.vmem %s14, %s570
      %v572 = vld [vmem:[%s537] sm:$0xff]
      %v573 = vld [vmem:[%s537 + $0x8] sm:$0xff]
      %v574 = vld [vmem:[%s537 + $0x10] sm:$0xff]
      %v575 = vld [vmem:[%s537 + $0x18] sm:$0xff]
      %v576 = vld [vmem:[%s537 + $0x20] sm:$0xff]
      %v577 = vld [vmem:[%s537 + $0x28] sm:$0xff]
      %v578 = vld [vmem:[%s537 + $0x30] sm:$0xff]
      %v579 = vld [vmem:[%s537 + $0x38] sm:$0xff]
      %vm580 = vcmask 195584
      %v581 = vsel %vm580, %v572, 0.0
      %582 = vadd.xlane.f32.xlu0 %v581
      %v583 = vpop.xlane.xlu0 %582
      %v584 = vsel %vm580, %v573, 0.0
      %585 = vadd.xlane.f32.xlu0 %v584
      %v586 = vpop.xlane.xlu0 %585
      %v587 = vsel %vm580, %v574, 0.0
      %588 = vadd.xlane.f32.xlu0 %v587
      %v589 = vpop.xlane.xlu0 %588
      %v590 = vsel %vm580, %v575, 0.0
      %591 = vadd.xlane.f32.xlu0 %v590
      %v592 = vpop.xlane.xlu0 %591
      %v593 = vsel %vm580, %v576, 0.0
      %594 = vadd.xlane.f32.xlu0 %v593
      %v595 = vpop.xlane.xlu0 %594
      %v596 = vsel %vm580, %v577, 0.0
      %597 = vadd.xlane.f32.xlu0 %v596
      %v598 = vpop.xlane.xlu0 %597
      %v599 = vsel %vm580, %v578, 0.0
      %600 = vadd.xlane.f32.xlu0 %v599
      %v601 = vpop.xlane.xlu0 %600
      %v602 = vsel %vm580, %v579, 0.0
      %603 = vadd.xlane.f32.xlu0 %v602
      %v604 = vpop.xlane.xlu0 %603
      %v605 = vrcp.pop 24.0
      %v606 = vmul.f32 24.0, %v605
      %v607 = vsub.f32 1.0, %v606
      %v608 = vmul.f32 %v605, %v607
      %v609 = vadd.f32 %v605, %v608
      %vm610 = vweird.f32 %v605
      %v611 = vsel %vm610, %v605, %v609
      %v612 = vmul.f32 %v583, %v611
      %v613 = vmul.f32 %v586, %v611
      %v614 = vmul.f32 %v589, %v611
      %v615 = vmul.f32 %v592, %v611
      %v616 = vmul.f32 %v595, %v611
      %v617 = vmul.f32 %v598, %v611
      %v618 = vmul.f32 %v601, %v611
      %v619 = vmul.f32 %v604, %v611
      %v620 = vsub.f32 %v572, %v612
      %v621 = vsub.f32 %v573, %v613
      %v622 = vsub.f32 %v574, %v614
      %v623 = vsub.f32 %v575, %v615
      %v624 = vsub.f32 %v576, %v616
      %v625 = vsub.f32 %v577, %v617
      %v626 = vsub.f32 %v578, %v618
      %v627 = vsub.f32 %v579, %v619
      %v628 = vmul.f32 %v620, %v620
      %v629 = vmul.f32 %v621, %v621
      %v630 = vmul.f32 %v622, %v622
      %v631 = vmul.f32 %v623, %v623
      %v632 = vmul.f32 %v624, %v624
      %v633 = vmul.f32 %v625, %v625
      %v634 = vmul.f32 %v626, %v626
      %v635 = vmul.f32 %v627, %v627
      %v636 = vsel %vm580, %v628, 0.0
      %637 = vadd.xlane.f32.xlu0 %v636
      %v638 = vpop.xlane.xlu0 %637
      %v639 = vsel %vm580, %v629, 0.0
      %640 = vadd.xlane.f32.xlu0 %v639
      %v641 = vpop.xlane.xlu0 %640
      %v642 = vsel %vm580, %v630, 0.0
      %643 = vadd.xlane.f32.xlu0 %v642
      %v644 = vpop.xlane.xlu0 %643
      %v645 = vsel %vm580, %v631, 0.0
      %646 = vadd.xlane.f32.xlu0 %v645
      %v647 = vpop.xlane.xlu0 %646
      %v648 = vsel %vm580, %v632, 0.0
      %649 = vadd.xlane.f32.xlu0 %v648
      %v650 = vpop.xlane.xlu0 %649
      %v651 = vsel %vm580, %v633, 0.0
      %652 = vadd.xlane.f32.xlu0 %v651
      %v653 = vpop.xlane.xlu0 %652
      %v654 = vsel %vm580, %v634, 0.0
      %655 = vadd.xlane.f32.xlu0 %v654
      %v656 = vpop.xlane.xlu0 %655
      %v657 = vsel %vm580, %v635, 0.0
      %658 = vadd.xlane.f32.xlu0 %v657
      %v659 = vpop.xlane.xlu0 %658
      %v660 = vmul.f32 %v638, %v611
      %v661 = vmul.f32 %v641, %v611
      %v662 = vmul.f32 %v644, %v611
      %v663 = vmul.f32 %v647, %v611
      %v664 = vmul.f32 %v650, %v611
      %v665 = vmul.f32 %v653, %v611
      %v666 = vmul.f32 %v656, %v611
      %v667 = vmul.f32 %v659, %v611
      %v668 = vadd.f32 %v660, 1e-05
      %v669 = vadd.f32 %v661, 1e-05
      %v670 = vadd.f32 %v662, 1e-05
      %v671 = vadd.f32 %v663, 1e-05
      %v672 = vadd.f32 %v664, 1e-05
      %v673 = vadd.f32 %v665, 1e-05
      %v674 = vadd.f32 %v666, 1e-05
      %v675 = vadd.f32 %v667, 1e-05
      %v676 = vrsqrt.pop %v668
      %v677 = vmul.f32 %v676, %v668
      %v678 = vmul.f32 %v677, %v676
      %v679 = vmul.f32 0.5, %v678
      %v680 = vsub.f32 1.5, %v679
      %v681 = vmul.f32 %v676, %v680
      %vm682 = vweird.f32 %v668
      %vm683 = vweird.f32 %v676
      %vm684 = vmor %vm682, %vm683
      %v685 = vsel %vm684, %v676, %v681
      %v686 = vrsqrt.pop %v669
      %v687 = vmul.f32 %v686, %v669
      %v688 = vmul.f32 %v687, %v686
      %v689 = vmul.f32 0.5, %v688
      %v690 = vsub.f32 1.5, %v689
      %v691 = vmul.f32 %v686, %v690
      %vm692 = vweird.f32 %v669
      %vm693 = vweird.f32 %v686
      %vm694 = vmor %vm692, %vm693
      %v695 = vsel %vm694, %v686, %v691
      %v696 = vrsqrt.pop %v670
      %v697 = vmul.f32 %v696, %v670
      %v698 = vmul.f32 %v697, %v696
      %v699 = vmul.f32 0.5, %v698
      %v700 = vsub.f32 1.5, %v699
      %v701 = vmul.f32 %v696, %v700
      %vm702 = vweird.f32 %v670
      %vm703 = vweird.f32 %v696
      %vm704 = vmor %vm702, %vm703
      %v705 = vsel %vm704, %v696, %v701
      %v706 = vrsqrt.pop %v671
      %v707 = vmul.f32 %v706, %v671
      %v708 = vmul.f32 %v707, %v706
      %v709 = vmul.f32 0.5, %v708
      %v710 = vsub.f32 1.5, %v709
      %v711 = vmul.f32 %v706, %v710
      %vm712 = vweird.f32 %v671
      %vm713 = vweird.f32 %v706
      %vm714 = vmor %vm712, %vm713
      %v715 = vsel %vm714, %v706, %v711
      %v716 = vrsqrt.pop %v672
      %v717 = vmul.f32 %v716, %v672
      %v718 = vmul.f32 %v717, %v716
      %v719 = vmul.f32 0.5, %v718
      %v720 = vsub.f32 1.5, %v719
      %v721 = vmul.f32 %v716, %v720
      %vm722 = vweird.f32 %v672
      %vm723 = vweird.f32 %v716
      %vm724 = vmor %vm722, %vm723
      %v725 = vsel %vm724, %v716, %v721
      %v726 = vrsqrt.pop %v673
      %v727 = vmul.f32 %v726, %v673
      %v728 = vmul.f32 %v727, %v726
      %v729 = vmul.f32 0.5, %v728
      %v730 = vsub.f32 1.5, %v729
      %v731 = vmul.f32 %v726, %v730
      %vm732 = vweird.f32 %v673
      %vm733 = vweird.f32 %v726
      %vm734 = vmor %vm732, %vm733
      %v735 = vsel %vm734, %v726, %v731
      %v736 = vrsqrt.pop %v674
      %v737 = vmul.f32 %v736, %v674
      %v738 = vmul.f32 %v737, %v736
      %v739 = vmul.f32 0.5, %v738
      %v740 = vsub.f32 1.5, %v739
      %v741 = vmul.f32 %v736, %v740
      %vm742 = vweird.f32 %v674
      %vm743 = vweird.f32 %v736
      %vm744 = vmor %vm742, %vm743
      %v745 = vsel %vm744, %v736, %v741
      %v746 = vrsqrt.pop %v675
      %v747 = vmul.f32 %v746, %v675
      %v748 = vmul.f32 %v747, %v746
      %v749 = vmul.f32 0.5, %v748
      %v750 = vsub.f32 1.5, %v749
      %v751 = vmul.f32 %v746, %v750
      %vm752 = vweird.f32 %v675
      %vm753 = vweird.f32 %v746
      %vm754 = vmor %vm752, %vm753
      %v755 = vsel %vm754, %v746, %v751
      %v756 = vmul.f32 %v620, %v685
      %v757 = vmul.f32 %v621, %v695
      %v758 = vmul.f32 %v622, %v705
      %v759 = vmul.f32 %v623, %v715
      %v760 = vmul.f32 %v624, %v725
      %v761 = vmul.f32 %v625, %v735
      %v762 = vmul.f32 %v626, %v745
      %v763 = vmul.f32 %v627, %v755
      %v764 = vld [vmem:[%s3] sm:$0x1]
      %v766 = vperm.slane %v764, 0
      %v768 = vmul.f32 %v756, %v766
      %v769 = vmul.f32 %v757, %v766
      %v770 = vmul.f32 %v758, %v766
      %v771 = vmul.f32 %v759, %v766
      %v772 = vmul.f32 %v760, %v766
      %v773 = vmul.f32 %v761, %v766
      %v774 = vmul.f32 %v762, %v766
      %v775 = vmul.f32 %v763, %v766
      %v776 = vld [vmem:[%s4] sm:$0x1]
      %v778 = vperm.slane %v776, 0
      %v780 = vadd.f32 %v768, %v778
      %v781 = vadd.f32 %v769, %v778
      %v782 = vadd.f32 %v770, %v778
      %v783 = vadd.f32 %v771, %v778
      %v784 = vadd.f32 %v772, %v778
      %v785 = vadd.f32 %v773, %v778
      %v786 = vadd.f32 %v774, %v778
      %v787 = vadd.f32 %v775, %v778
      %v788 = vld [vmem:[%s5] sm:$0xff]
      %v789 = vld [vmem:[%s5 + $0x8] sm:$0xff]
      %v790 = vld [vmem:[%s5 + $0x10] sm:$0xff]
      %v792 = vsel %vm580, %v780, 0
      %v795 = vsel %vm580, %v781, 0
      %v798 = vsel %vm580, %v782, 0
      %v801 = vsel %vm580, %v783, 0
      %v804 = vsel %vm580, %v784, 0
      %v807 = vsel %vm580, %v785, 0
      %v810 = vsel %vm580, %v786, 0
      %v813 = vsel %vm580, %v787, 0
      %815 = vmatpush.msra.mxu0 0.0
      %816 = vmatpush.msra.mxu0 0.0
      %817 = vmatpush.msra.mxu0 0.0
      %818 = vmatpush.msra.mxu0 0.0
      %819 = vmatpush.msra.mxu0 0.0
      %820 = vmatpush.msra.mxu0 0.0
      %821 = vmatpush.msra.mxu0 0.0
      %822 = vmatpush.msra.mxu0 0.0
      %823 = vmatpush.msra.mxu0 0.0
      %824 = vmatpush.msra.mxu0 0.0
      %825 = vmatpush.msra.mxu0 0.0
      %826 = vmatpush.msra.mxu0 0.0
      %827 = vmatpush.msra.mxu0 0.0
      %828 = vmatpush.msra.mxu0 %v790
      %829 = vmatpush.msra.mxu0 %v789
      %830 = vmatpush.msra.mxu0 %v788
      %831 = vmatmul.f32.gmra.mxu0 %v792
      %v832 = vpop.f32.mrf.mxu0
      %v833 = vadd.f32 0.0, %v832
      %834 = vmatmul.f32.gmra.mxu0 %v795
      %v835 = vpop.f32.mrf.mxu0
      %v836 = vadd.f32 0.0, %v835
      %837 = vmatmul.f32.gmra.mxu0 %v798
      %v838 = vpop.f32.mrf.mxu0
      %v839 = vadd.f32 0.0, %v838
      %840 = vmatmul.f32.gmra.mxu0 %v801
      %v841 = vpop.f32.mrf.mxu0
      %v842 = vadd.f32 0.0, %v841
      %843 = vmatmul.f32.gmra.mxu0 %v804
      %v844 = vpop.f32.mrf.mxu0
      %v845 = vadd.f32 0.0, %v844
      %846 = vmatmul.f32.gmra.mxu0 %v807
      %v847 = vpop.f32.mrf.mxu0
      %v848 = vadd.f32 0.0, %v847
      %849 = vmatmul.f32.gmra.mxu0 %v810
      %v850 = vpop.f32.mrf.mxu0
      %v851 = vadd.f32 0.0, %v850
      %852 = vmatmul.f32.gmra.mxu0 %v813
      %v853 = vpop.f32.mrf.mxu0
      %v854 = vadd.f32 0.0, %v853
      %855 = vdwg.mxu0
      %v856 = vld [vmem:[%s554] sm:$0xff]
      %v857 = vld [vmem:[%s554 + $0x8] sm:$0xff]
      %v858 = vld [vmem:[%s554 + $0x10] sm:$0xff]
      %v859 = vld [vmem:[%s554 + $0x18] sm:$0xff]
      %v860 = vld [vmem:[%s554 + $0x20] sm:$0xff]
      %v861 = vld [vmem:[%s554 + $0x28] sm:$0xff]
      %v862 = vld [vmem:[%s554 + $0x30] sm:$0xff]
      %v863 = vld [vmem:[%s554 + $0x38] sm:$0xff]
      %v864 = vmul.f32 %v833, 0.5
      %v865 = vmul.f32 %v836, 0.5
      %v866 = vmul.f32 %v839, 0.5
      %v867 = vmul.f32 %v842, 0.5
      %v868 = vmul.f32 %v845, 0.5
      %v869 = vmul.f32 %v848, 0.5
      %v870 = vmul.f32 %v851, 0.5
      %v871 = vmul.f32 %v854, 0.5
      %v872 = vld [vmem:[%s2] sm:$0xff]
      %v873 = vld [vmem:[%s2 + $0x8] sm:$0xff]
      %v874 = vld [vmem:[%s2 + $0x10] sm:$0xff]
      %v875 = vld [vmem:[%s2 + $0x18] sm:$0xff]
      %v876 = vld [vmem:[%s2 + $0x20] sm:$0xff]
      %v877 = vld [vmem:[%s2 + $0x28] sm:$0xff]
      %v878 = vld [vmem:[%s2 + $0x30] sm:$0xff]
      %v879 = vld [vmem:[%s2 + $0x38] sm:$0xff]
      %888 = vrot.lane.b32.xlu0 %v833, 104
      %v889 = vpop.permute.xlu0 %888
      %890 = vrot.lane.b32.xlu0 %v836, 104
      %v891 = vpop.permute.xlu0 %890
      %892 = vrot.lane.b32.xlu0 %v839, 104
      %v893 = vpop.permute.xlu0 %892
      %894 = vrot.lane.b32.xlu0 %v842, 104
      %v895 = vpop.permute.xlu0 %894
      %896 = vrot.lane.b32.xlu0 %v845, 104
      %v897 = vpop.permute.xlu0 %896
      %898 = vrot.lane.b32.xlu0 %v848, 104
      %v899 = vpop.permute.xlu0 %898
      %900 = vrot.lane.b32.xlu0 %v851, 104
      %v901 = vpop.permute.xlu0 %900
      %902 = vrot.lane.b32.xlu0 %v854, 104
      %v903 = vpop.permute.xlu0 %902
      %vm904 = vcmask 31744
      %v906 = vsel %vm904, %v864, 0
      %v909 = vsel %vm904, %v865, 0
      %v912 = vsel %vm904, %v866, 0
      %v915 = vsel %vm904, %v867, 0
      %v918 = vsel %vm904, %v868, 0
      %v921 = vsel %vm904, %v869, 0
      %v924 = vsel %vm904, %v870, 0
      %v927 = vsel %vm904, %v871, 0
      %v929 = vsel %vm904, %v889, 0
      %v931 = vsel %vm904, %v891, 0
      %v933 = vsel %vm904, %v893, 0
      %v935 = vsel %vm904, %v895, 0
      %v937 = vsel %vm904, %v897, 0
      %v939 = vsel %vm904, %v899, 0
      %v941 = vsel %vm904, %v901, 0
      %v943 = vsel %vm904, %v903, 0
      %945 = vmatpush.xpose.msra.mxu0 0.0
      %946 = vmatpush.xpose.msra.mxu0 0.0
      %947 = vmatpush.xpose.msra.mxu0 0.0
      %948 = vmatpush.xpose.msra.mxu0 0.0
      %949 = vmatpush.xpose.msra.mxu0 0.0
      %950 = vmatpush.xpose.msra.mxu0 0.0
      %951 = vmatpush.xpose.msra.mxu0 0.0
      %952 = vmatpush.xpose.msra.mxu0 0.0
      %953 = vmatpush.xpose.msra.mxu0 %v943
      %954 = vmatpush.xpose.msra.mxu0 %v941
      %955 = vmatpush.xpose.msra.mxu0 %v939
      %956 = vmatpush.xpose.msra.mxu0 %v937
      %957 = vmatpush.xpose.msra.mxu0 %v935
      %958 = vmatpush.xpose.msra.mxu0 %v933
      %959 = vmatpush.xpose.msra.mxu0 %v931
      %960 = vmatpush.xpose.msra.mxu0 %v929
      %961 = vmatmul.f32.gmra.mxu0 %v906
      %v962 = vpop.f32.mrf.mxu0
      %v963 = vadd.f32 %v872, %v962
      %964 = vmatmul.f32.gmra.mxu0 %v909
      %v965 = vpop.f32.mrf.mxu0
      %v966 = vadd.f32 %v873, %v965
      %967 = vmatmul.f32.gmra.mxu0 %v912
      %v968 = vpop.f32.mrf.mxu0
      %v969 = vadd.f32 %v874, %v968
      %970 = vmatmul.f32.gmra.mxu0 %v915
      %v971 = vpop.f32.mrf.mxu0
      %v972 = vadd.f32 %v875, %v971
      %973 = vmatmul.f32.gmra.mxu0 %v918
      %v974 = vpop.f32.mrf.mxu0
      %v975 = vadd.f32 %v876, %v974
      %976 = vmatmul.f32.gmra.mxu0 %v921
      %v977 = vpop.f32.mrf.mxu0
      %v978 = vadd.f32 %v877, %v977
      %979 = vmatmul.f32.gmra.mxu0 %v924
      %v980 = vpop.f32.mrf.mxu0
      %v981 = vadd.f32 %v878, %v980
      %982 = vmatmul.f32.gmra.mxu0 %v927
      %v983 = vpop.f32.mrf.mxu0
      %v984 = vadd.f32 %v879, %v983
      %985 = vdwg.mxu0
      %v986 = vadd.f32 %v963, %v856
      %v987 = vadd.f32 %v966, %v857
      %v988 = vadd.f32 %v969, %v858
      %v989 = vadd.f32 %v972, %v859
      %v990 = vadd.f32 %v975, %v860
      %v991 = vadd.f32 %v978, %v861
      %v992 = vadd.f32 %v981, %v862
      %v993 = vadd.f32 %v984, %v863
      %vm994 = vcmask 523264
      %v995 = vsel %vm994, %v986, -inf
      %996 = vmax.xlane.f32.xlu0 %v995
      %v997 = vpop.xlane.xlu0 %996
      %v998 = vsel %vm994, %v987, -inf
      %999 = vmax.xlane.f32.xlu0 %v998
      %v1000 = vpop.xlane.xlu0 %999
      %v1001 = vsel %vm994, %v988, -inf
      %1002 = vmax.xlane.f32.xlu0 %v1001
      %v1003 = vpop.xlane.xlu0 %1002
      %v1004 = vsel %vm994, %v989, -inf
      %1005 = vmax.xlane.f32.xlu0 %v1004
      %v1006 = vpop.xlane.xlu0 %1005
      %v1007 = vsel %vm994, %v990, -inf
      %1008 = vmax.xlane.f32.xlu0 %v1007
      %v1009 = vpop.xlane.xlu0 %1008
      %v1010 = vsel %vm994, %v991, -inf
      %1011 = vmax.xlane.f32.xlu0 %v1010
      %v1012 = vpop.xlane.xlu0 %1011
      %v1013 = vsel %vm994, %v992, -inf
      %1014 = vmax.xlane.f32.xlu0 %v1013
      %v1015 = vpop.xlane.xlu0 %1014
      %v1016 = vsel %vm994, %v993, -inf
      %1017 = vmax.xlane.f32.xlu0 %v1016
      %v1018 = vpop.xlane.xlu0 %1017
      %v1019 = vsub.f32 %v986, %v997
      %v1020 = vsub.f32 %v987, %v1000
      %v1021 = vsub.f32 %v988, %v1003
      %v1022 = vsub.f32 %v989, %v1006
      %v1023 = vsub.f32 %v990, %v1009
      %v1024 = vsub.f32 %v991, %v1012
      %v1025 = vsub.f32 %v992, %v1015
      %v1026 = vsub.f32 %v993, %v1018
      %v1027 = vmul.f32 %v1019, 1.442695
      %v1028 = vpow.pop %v1027
      %v1029 = vmul.f32 %v1020, 1.442695
      %v1030 = vpow.pop %v1029
      %v1031 = vmul.f32 %v1021, 1.442695
      %v1032 = vpow.pop %v1031
      %v1033 = vmul.f32 %v1022, 1.442695
      %v1034 = vpow.pop %v1033
      %v1035 = vmul.f32 %v1023, 1.442695
      %v1036 = vpow.pop %v1035
      %v1037 = vmul.f32 %v1024, 1.442695
      %v1038 = vpow.pop %v1037
      %v1039 = vmul.f32 %v1025, 1.442695
      %v1040 = vpow.pop %v1039
      %v1041 = vmul.f32 %v1026, 1.442695
      %v1042 = vpow.pop %v1041
      %v1043 = vsel %vm994, %v1028, 0.0
      %1044 = vadd.xlane.f32.xlu0 %v1043
      %v1045 = vpop.xlane.xlu0 %1044
      %v1046 = vsel %vm994, %v1030, 0.0
      %1047 = vadd.xlane.f32.xlu0 %v1046
      %v1048 = vpop.xlane.xlu0 %1047
      %v1049 = vsel %vm994, %v1032, 0.0
      %1050 = vadd.xlane.f32.xlu0 %v1049
      %v1051 = vpop.xlane.xlu0 %1050
      %v1052 = vsel %vm994, %v1034, 0.0
      %1053 = vadd.xlane.f32.xlu0 %v1052
      %v1054 = vpop.xlane.xlu0 %1053
      %v1055 = vsel %vm994, %v1036, 0.0
      %1056 = vadd.xlane.f32.xlu0 %v1055
      %v1057 = vpop.xlane.xlu0 %1056
      %v1058 = vsel %vm994, %v1038, 0.0
      %1059 = vadd.xlane.f32.xlu0 %v1058
      %v1060 = vpop.xlane.xlu0 %1059
      %v1061 = vsel %vm994, %v1040, 0.0
      %1062 = vadd.xlane.f32.xlu0 %v1061
      %v1063 = vpop.xlane.xlu0 %1062
      %v1064 = vsel %vm994, %v1042, 0.0
      %1065 = vadd.xlane.f32.xlu0 %v1064
      %v1066 = vpop.xlane.xlu0 %1065
      %v1067 = vrcp.pop %v1045
      %v1068 = vrcp.pop %v1048
      %v1069 = vrcp.pop %v1051
      %v1070 = vrcp.pop %v1054
      %v1071 = vrcp.pop %v1057
      %v1072 = vrcp.pop %v1060
      %v1073 = vrcp.pop %v1063
      %v1074 = vrcp.pop %v1066
      %v1075 = vmul.f32 %v1028, %v1067
      %v1076 = vmul.f32 %v1030, %v1068
      %v1077 = vmul.f32 %v1032, %v1069
      %v1078 = vmul.f32 %v1034, %v1070
      %v1079 = vmul.f32 %v1036, %v1071
      %v1080 = vmul.f32 %v1038, %v1072
      %v1081 = vmul.f32 %v1040, %v1073
      %v1082 = vmul.f32 %v1042, %v1074
      %1083 = vrot.lane.b32.xlu0 %v833, 80
      %v1084 = vpop.permute.xlu0 %1083
      %1085 = vrot.lane.b32.xlu0 %v836, 80
      %v1086 = vpop.permute.xlu0 %1085
      %1087 = vrot.lane.b32.xlu0 %v839, 80
      %v1088 = vpop.permute.xlu0 %1087
      %1089 = vrot.lane.b32.xlu0 %v842, 80
      %v1090 = vpop.permute.xlu0 %1089
      %1091 = vrot.lane.b32.xlu0 %v845, 80
      %v1092 = vpop.permute.xlu0 %1091
      %1093 = vrot.lane.b32.xlu0 %v848, 80
      %v1094 = vpop.permute.xlu0 %1093
      %1095 = vrot.lane.b32.xlu0 %v851, 80
      %v1096 = vpop.permute.xlu0 %1095
      %1097 = vrot.lane.b32.xlu0 %v854, 80
      %v1098 = vpop.permute.xlu0 %1097
      %v1108 = vsel %vm994, %v1075, 0
      %v1111 = vsel %vm994, %v1076, 0
      %v1114 = vsel %vm994, %v1077, 0
      %v1117 = vsel %vm994, %v1078, 0
      %v1120 = vsel %vm994, %v1079, 0
      %v1123 = vsel %vm994, %v1080, 0
      %v1126 = vsel %vm994, %v1081, 0
      %v1129 = vsel %vm994, %v1082, 0
      %1131 = vmatpush.msra.mxu0 0.0
      %1132 = vmatpush.msra.mxu0 0.0
      %1133 = vmatpush.msra.mxu0 0.0
      %1134 = vmatpush.msra.mxu0 0.0
      %1135 = vmatpush.msra.mxu0 0.0
      %1136 = vmatpush.msra.mxu0 0.0
      %1137 = vmatpush.msra.mxu0 0.0
      %1138 = vmatpush.msra.mxu0 0.0
      %1139 = vmatpush.msra.mxu0 %v1098
      %1140 = vmatpush.msra.mxu0 %v1096
      %1141 = vmatpush.msra.mxu0 %v1094
      %1142 = vmatpush.msra.mxu0 %v1092
      %1143 = vmatpush.msra.mxu0 %v1090
      %1144 = vmatpush.msra.mxu0 %v1088
      %1145 = vmatpush.msra.mxu0 %v1086
      %1146 = vmatpush.msra.mxu0 %v1084
      %1147 = vmatmul.f32.gmra.mxu0 %v1108
      %v1148 = vpop.f32.mrf.mxu0
      %v1149 = vadd.f32 0.0, %v1148
      %1150 = vmatmul.f32.gmra.mxu0 %v1111
      %v1151 = vpop.f32.mrf.mxu0
      %v1152 = vadd.f32 0.0, %v1151
      %1153 = vmatmul.f32.gmra.mxu0 %v1114
      %v1154 = vpop.f32.mrf.mxu0
      %v1155 = vadd.f32 0.0, %v1154
      %1156 = vmatmul.f32.gmra.mxu0 %v1117
      %v1157 = vpop.f32.mrf.mxu0
      %v1158 = vadd.f32 0.0, %v1157
      %1159 = vmatmul.f32.gmra.mxu0 %v1120
      %v1160 = vpop.f32.mrf.mxu0
      %v1161 = vadd.f32 0.0, %v1160
      %1162 = vmatmul.f32.gmra.mxu0 %v1123
      %v1163 = vpop.f32.mrf.mxu0
      %v1164 = vadd.f32 0.0, %v1163
      %1165 = vmatmul.f32.gmra.mxu0 %v1126
      %v1166 = vpop.f32.mrf.mxu0
      %v1167 = vadd.f32 0.0, %v1166
      %1168 = vmatmul.f32.gmra.mxu0 %v1129
      %v1169 = vpop.f32.mrf.mxu0
      %v1170 = vadd.f32 0.0, %v1169
      %1171 = vdwg.mxu0
      %v1172 = vld [vmem:[%s6] sm:$0xf]
      %s1173 = scalar_lea.vmem %s2, 64
      %v1174 = vld [vmem:[%s1173] sm:$0xff]
      %v1175 = vld [vmem:[%s1173 + $0x8] sm:$0xff]
      %v1176 = vld [vmem:[%s1173 + $0x10] sm:$0xff]
      %v1177 = vld [vmem:[%s1173 + $0x18] sm:$0xff]
      %v1178 = vld [vmem:[%s1173 + $0x20] sm:$0xff]
      %v1179 = vld [vmem:[%s1173 + $0x28] sm:$0xff]
      %v1180 = vld [vmem:[%s1173 + $0x30] sm:$0xff]
      %v1181 = vld [vmem:[%s1173 + $0x38] sm:$0xff]
      %1182 = vrot.lane.b32.xlu0 %v864, 124
      %v1183 = vpop.permute.xlu0 %1182
      %1184 = vrot.lane.b32.xlu0 %v865, 124
      %v1185 = vpop.permute.xlu0 %1184
      %1186 = vrot.lane.b32.xlu0 %v866, 124
      %v1187 = vpop.permute.xlu0 %1186
      %1188 = vrot.lane.b32.xlu0 %v867, 124
      %v1189 = vpop.permute.xlu0 %1188
      %1190 = vrot.lane.b32.xlu0 %v868, 124
      %v1191 = vpop.permute.xlu0 %1190
      %1192 = vrot.lane.b32.xlu0 %v869, 124
      %v1193 = vpop.permute.xlu0 %1192
      %1194 = vrot.lane.b32.xlu0 %v870, 124
      %v1195 = vpop.permute.xlu0 %1194
      %1196 = vrot.lane.b32.xlu0 %v871, 124
      %v1197 = vpop.permute.xlu0 %1196
      %1198 = vrot.lane.b32.xlu0 %v833, 100
      %v1199 = vpop.permute.xlu0 %1198
      %1200 = vrot.lane.b32.xlu0 %v836, 100
      %v1201 = vpop.permute.xlu0 %1200
      %1202 = vrot.lane.b32.xlu0 %v839, 100
      %v1203 = vpop.permute.xlu0 %1202
      %1204 = vrot.lane.b32.xlu0 %v842, 100
      %v1205 = vpop.permute.xlu0 %1204
      %1206 = vrot.lane.b32.xlu0 %v845, 100
      %v1207 = vpop.permute.xlu0 %1206
      %1208 = vrot.lane.b32.xlu0 %v848, 100
      %v1209 = vpop.permute.xlu0 %1208
      %1210 = vrot.lane.b32.xlu0 %v851, 100
      %v1211 = vpop.permute.xlu0 %1210
      %1212 = vrot.lane.b32.xlu0 %v854, 100
      %v1213 = vpop.permute.xlu0 %1212
      %v1214 = vsel %vm904, %v1183, 0
      %v1216 = vsel %vm904, %v1185, 0
      %v1218 = vsel %vm904, %v1187, 0
      %v1220 = vsel %vm904, %v1189, 0
      %v1222 = vsel %vm904, %v1191, 0
      %v1224 = vsel %vm904, %v1193, 0
      %v1226 = vsel %vm904, %v1195, 0
      %v1228 = vsel %vm904, %v1197, 0
      %v1230 = vsel %vm904, %v1199, 0
      %v1232 = vsel %vm904, %v1201, 0
      %v1234 = vsel %vm904, %v1203, 0
      %v1236 = vsel %vm904, %v1205, 0
      %v1238 = vsel %vm904, %v1207, 0
      %v1240 = vsel %vm904, %v1209, 0
      %v1242 = vsel %vm904, %v1211, 0
      %v1244 = vsel %vm904, %v1213, 0
      %1246 = vmatpush.xpose.msra.mxu0 0.0
      %1247 = vmatpush.xpose.msra.mxu0 0.0
      %1248 = vmatpush.xpose.msra.mxu0 0.0
      %1249 = vmatpush.xpose.msra.mxu0 0.0
      %1250 = vmatpush.xpose.msra.mxu0 0.0
      %1251 = vmatpush.xpose.msra.mxu0 0.0
      %1252 = vmatpush.xpose.msra.mxu0 0.0
      %1253 = vmatpush.xpose.msra.mxu0 0.0
      %1254 = vmatpush.xpose.msra.mxu0 %v1244
      %1255 = vmatpush.xpose.msra.mxu0 %v1242
      %1256 = vmatpush.xpose.msra.mxu0 %v1240
      %1257 = vmatpush.xpose.msra.mxu0 %v1238
      %1258 = vmatpush.xpose.msra.mxu0 %v1236
      %1259 = vmatpush.xpose.msra.mxu0 %v1234
      %1260 = vmatpush.xpose.msra.mxu0 %v1232
      %1261 = vmatpush.xpose.msra.mxu0 %v1230
      %1262 = vmatmul.f32.gmra.mxu0 %v1214
      %v1263 = vpop.f32.mrf.mxu0
      %v1264 = vadd.f32 %v1174, %v1263
      %1265 = vmatmul.f32.gmra.mxu0 %v1216
      %v1266 = vpop.f32.mrf.mxu0
      %v1267 = vadd.f32 %v1175, %v1266
      %1268 = vmatmul.f32.gmra.mxu0 %v1218
      %v1269 = vpop.f32.mrf.mxu0
      %v1270 = vadd.f32 %v1176, %v1269
      %1271 = vmatmul.f32.gmra.mxu0 %v1220
      %v1272 = vpop.f32.mrf.mxu0
      %v1273 = vadd.f32 %v1177, %v1272
      %1274 = vmatmul.f32.gmra.mxu0 %v1222
      %v1275 = vpop.f32.mrf.mxu0
      %v1276 = vadd.f32 %v1178, %v1275
      %1277 = vmatmul.f32.gmra.mxu0 %v1224
      %v1278 = vpop.f32.mrf.mxu0
      %v1279 = vadd.f32 %v1179, %v1278
      %1280 = vmatmul.f32.gmra.mxu0 %v1226
      %v1281 = vpop.f32.mrf.mxu0
      %v1282 = vadd.f32 %v1180, %v1281
      %1283 = vmatmul.f32.gmra.mxu0 %v1228
      %v1284 = vpop.f32.mrf.mxu0
      %v1285 = vadd.f32 %v1181, %v1284
      %1286 = vdwg.mxu0
      %v1287 = vadd.f32 %v1264, %v856
      %v1288 = vadd.f32 %v1267, %v857
      %v1289 = vadd.f32 %v1270, %v858
      %v1290 = vadd.f32 %v1273, %v859
      %v1291 = vadd.f32 %v1276, %v860
      %v1292 = vadd.f32 %v1279, %v861
      %v1293 = vadd.f32 %v1282, %v862
      %v1294 = vadd.f32 %v1285, %v863
      %v1295 = vsel %vm994, %v1287, -inf
      %1296 = vmax.xlane.f32.xlu0 %v1295
      %v1297 = vpop.xlane.xlu0 %1296
      %v1298 = vsel %vm994, %v1288, -inf
      %1299 = vmax.xlane.f32.xlu0 %v1298
      %v1300 = vpop.xlane.xlu0 %1299
      %v1301 = vsel %vm994, %v1289, -inf
      %1302 = vmax.xlane.f32.xlu0 %v1301
      %v1303 = vpop.xlane.xlu0 %1302
      %v1304 = vsel %vm994, %v1290, -inf
      %1305 = vmax.xlane.f32.xlu0 %v1304
      %v1306 = vpop.xlane.xlu0 %1305
      %v1307 = vsel %vm994, %v1291, -inf
      %1308 = vmax.xlane.f32.xlu0 %v1307
      %v1309 = vpop.xlane.xlu0 %1308
      %v1310 = vsel %vm994, %v1292, -inf
      %1311 = vmax.xlane.f32.xlu0 %v1310
      %v1312 = vpop.xlane.xlu0 %1311
      %v1313 = vsel %vm994, %v1293, -inf
      %1314 = vmax.xlane.f32.xlu0 %v1313
      %v1315 = vpop.xlane.xlu0 %1314
      %v1316 = vsel %vm994, %v1294, -inf
      %1317 = vmax.xlane.f32.xlu0 %v1316
      %v1318 = vpop.xlane.xlu0 %1317
      %v1319 = vsub.f32 %v1287, %v1297
      %v1320 = vsub.f32 %v1288, %v1300
      %v1321 = vsub.f32 %v1289, %v1303
      %v1322 = vsub.f32 %v1290, %v1306
      %v1323 = vsub.f32 %v1291, %v1309
      %v1324 = vsub.f32 %v1292, %v1312
      %v1325 = vsub.f32 %v1293, %v1315
      %v1326 = vsub.f32 %v1294, %v1318
      %v1327 = vmul.f32 %v1319, 1.442695
      %v1328 = vpow.pop %v1327
      %v1329 = vmul.f32 %v1320, 1.442695
      %v1330 = vpow.pop %v1329
      %v1331 = vmul.f32 %v1321, 1.442695
      %v1332 = vpow.pop %v1331
      %v1333 = vmul.f32 %v1322, 1.442695
      %v1334 = vpow.pop %v1333
      %v1335 = vmul.f32 %v1323, 1.442695
      %v1336 = vpow.pop %v1335
      %v1337 = vmul.f32 %v1324, 1.442695
      %v1338 = vpow.pop %v1337
      %v1339 = vmul.f32 %v1325, 1.442695
      %v1340 = vpow.pop %v1339
      %v1341 = vmul.f32 %v1326, 1.442695
      %v1342 = vpow.pop %v1341
      %v1343 = vsel %vm994, %v1328, 0.0
      %1344 = vadd.xlane.f32.xlu0 %v1343
      %v1345 = vpop.xlane.xlu0 %1344
      %v1346 = vsel %vm994, %v1330, 0.0
      %1347 = vadd.xlane.f32.xlu0 %v1346
      %v1348 = vpop.xlane.xlu0 %1347
      %v1349 = vsel %vm994, %v1332, 0.0
      %1350 = vadd.xlane.f32.xlu0 %v1349
      %v1351 = vpop.xlane.xlu0 %1350
      %v1352 = vsel %vm994, %v1334, 0.0
      %1353 = vadd.xlane.f32.xlu0 %v1352
      %v1354 = vpop.xlane.xlu0 %1353
      %v1355 = vsel %vm994, %v1336, 0.0
      %1356 = vadd.xlane.f32.xlu0 %v1355
      %v1357 = vpop.xlane.xlu0 %1356
      %v1358 = vsel %vm994, %v1338, 0.0
      %1359 = vadd.xlane.f32.xlu0 %v1358
      %v1360 = vpop.xlane.xlu0 %1359
      %v1361 = vsel %vm994, %v1340, 0.0
      %1362 = vadd.xlane.f32.xlu0 %v1361
      %v1363 = vpop.xlane.xlu0 %1362
      %v1364 = vsel %vm994, %v1342, 0.0
      %1365 = vadd.xlane.f32.xlu0 %v1364
      %v1366 = vpop.xlane.xlu0 %1365
      %v1367 = vrcp.pop %v1345
      %v1368 = vrcp.pop %v1348
      %v1369 = vrcp.pop %v1351
      %v1370 = vrcp.pop %v1354
      %v1371 = vrcp.pop %v1357
      %v1372 = vrcp.pop %v1360
      %v1373 = vrcp.pop %v1363
      %v1374 = vrcp.pop %v1366
      %v1375 = vmul.f32 %v1328, %v1367
      %v1376 = vmul.f32 %v1330, %v1368
      %v1377 = vmul.f32 %v1332, %v1369
      %v1378 = vmul.f32 %v1334, %v1370
      %v1379 = vmul.f32 %v1336, %v1371
      %v1380 = vmul.f32 %v1338, %v1372
      %v1381 = vmul.f32 %v1340, %v1373
      %v1382 = vmul.f32 %v1342, %v1374
      %1383 = vrot.lane.b32.xlu0 %v833, 76
      %v1384 = vpop.permute.xlu0 %1383
      %1385 = vrot.lane.b32.xlu0 %v836, 76
      %v1386 = vpop.permute.xlu0 %1385
      %1387 = vrot.lane.b32.xlu0 %v839, 76
      %v1388 = vpop.permute.xlu0 %1387
      %1389 = vrot.lane.b32.xlu0 %v842, 76
      %v1390 = vpop.permute.xlu0 %1389
      %1391 = vrot.lane.b32.xlu0 %v845, 76
      %v1392 = vpop.permute.xlu0 %1391
      %1393 = vrot.lane.b32.xlu0 %v848, 76
      %v1394 = vpop.permute.xlu0 %1393
      %1395 = vrot.lane.b32.xlu0 %v851, 76
      %v1396 = vpop.permute.xlu0 %1395
      %1397 = vrot.lane.b32.xlu0 %v854, 76
      %v1398 = vpop.permute.xlu0 %1397
      %v1408 = vsel %vm994, %v1375, 0
      %v1411 = vsel %vm994, %v1376, 0
      %v1414 = vsel %vm994, %v1377, 0
      %v1417 = vsel %vm994, %v1378, 0
      %v1420 = vsel %vm994, %v1379, 0
      %v1423 = vsel %vm994, %v1380, 0
      %v1426 = vsel %vm994, %v1381, 0
      %v1429 = vsel %vm994, %v1382, 0
      %1431 = vmatpush.msra.mxu0 0.0
      %1432 = vmatpush.msra.mxu0 0.0
      %1433 = vmatpush.msra.mxu0 0.0
      %1434 = vmatpush.msra.mxu0 0.0
      %1435 = vmatpush.msra.mxu0 0.0
      %1436 = vmatpush.msra.mxu0 0.0
      %1437 = vmatpush.msra.mxu0 0.0
      %1438 = vmatpush.msra.mxu0 0.0
      %1439 = vmatpush.msra.mxu0 %v1398
      %1440 = vmatpush.msra.mxu0 %v1396
      %1441 = vmatpush.msra.mxu0 %v1394
      %1442 = vmatpush.msra.mxu0 %v1392
      %1443 = vmatpush.msra.mxu0 %v1390
      %1444 = vmatpush.msra.mxu0 %v1388
      %1445 = vmatpush.msra.mxu0 %v1386
      %1446 = vmatpush.msra.mxu0 %v1384
      %1447 = vmatmul.f32.gmra.mxu0 %v1408
      %v1448 = vpop.f32.mrf.mxu0
      %v1449 = vadd.f32 0.0, %v1448
      %1450 = vmatmul.f32.gmra.mxu0 %v1411
      %v1451 = vpop.f32.mrf.mxu0
      %v1452 = vadd.f32 0.0, %v1451
      %1453 = vmatmul.f32.gmra.mxu0 %v1414
      %v1454 = vpop.f32.mrf.mxu0
      %v1455 = vadd.f32 0.0, %v1454
      %1456 = vmatmul.f32.gmra.mxu0 %v1417
      %v1457 = vpop.f32.mrf.mxu0
      %v1458 = vadd.f32 0.0, %v1457
      %1459 = vmatmul.f32.gmra.mxu0 %v1420
      %v1460 = vpop.f32.mrf.mxu0
      %v1461 = vadd.f32 0.0, %v1460
      %1462 = vmatmul.f32.gmra.mxu0 %v1423
      %v1463 = vpop.f32.mrf.mxu0
      %v1464 = vadd.f32 0.0, %v1463
      %1465 = vmatmul.f32.gmra.mxu0 %v1426
      %v1466 = vpop.f32.mrf.mxu0
      %v1467 = vadd.f32 0.0, %v1466
      %1468 = vmatmul.f32.gmra.mxu0 %v1429
      %v1469 = vpop.f32.mrf.mxu0
      %v1470 = vadd.f32 0.0, %v1469
      %1471 = vdwg.mxu0
      %s1472 = scalar_lea.vmem %s6, 4
      %v1473 = vld [vmem:[%s1472] sm:$0xf]
      %v1475 = vsel %vm904, %v1449, 0
      %v1478 = vsel %vm904, %v1452, 0
      %v1481 = vsel %vm904, %v1455, 0
      %v1484 = vsel %vm904, %v1458, 0
      %v1487 = vsel %vm904, %v1461, 0
      %v1490 = vsel %vm904, %v1464, 0
      %v1493 = vsel %vm904, %v1467, 0
      %v1496 = vsel %vm904, %v1470, 0
      %vm1498 = vcmask 1043456
      %v1500 = vsel %vm1498, %v1473, 0
      %1502 = vmatpush.msra.mxu0 0.0
      %1503 = vmatpush.msra.mxu0 0.0
      %1504 = vmatpush.msra.mxu0 0.0
      %1505 = vmatpush.msra.mxu0 0.0
      %1506 = vmatpush.msra.mxu0 0.0
      %1507 = vmatpush.msra.mxu0 0.0
      %1508 = vmatpush.msra.mxu0 0.0
      %1509 = vmatpush.msra.mxu0 0.0
      %1510 = vmatpush.msra.mxu0 0.0
      %1511 = vmatpush.msra.mxu0 0.0
      %1512 = vmatpush.msra.mxu0 0.0
      %1513 = vmatpush.msra.mxu0 0.0
      %1514 = vmatpush.msra.mxu0 0.0
      %1515 = vmatpush.msra.mxu0 0.0
      %1516 = vmatpush.msra.mxu0 0.0
      %1517 = vmatpush.msra.mxu0 %v1500
      %1518 = vmatmul.f32.gmra.mxu0 %v1475
      %v1519 = vpop.f32.mrf.mxu0
      %v1520 = vadd.f32 0.0, %v1519
      %1521 = vmatmul.f32.gmra.mxu0 %v1478
      %v1522 = vpop.f32.mrf.mxu0
      %v1523 = vadd.f32 0.0, %v1522
      %1524 = vmatmul.f32.gmra.mxu0 %v1481
      %v1525 = vpop.f32.mrf.mxu0
      %v1526 = vadd.f32 0.0, %v1525
      %1527 = vmatmul.f32.gmra.mxu0 %v1484
      %v1528 = vpop.f32.mrf.mxu0
      %v1529 = vadd.f32 0.0, %v1528
      %1530 = vmatmul.f32.gmra.mxu0 %v1487
      %v1531 = vpop.f32.mrf.mxu0
      %v1532 = vadd.f32 0.0, %v1531
      %1533 = vmatmul.f32.gmra.mxu0 %v1490
      %v1534 = vpop.f32.mrf.mxu0
      %v1535 = vadd.f32 0.0, %v1534
      %1536 = vmatmul.f32.gmra.mxu0 %v1493
      %v1537 = vpop.f32.mrf.mxu0
      %v1538 = vadd.f32 0.0, %v1537
      %1539 = vmatmul.f32.gmra.mxu0 %v1496
      %v1540 = vpop.f32.mrf.mxu0
      %v1541 = vadd.f32 0.0, %v1540
      %1542 = vdwg.mxu0
      %v1544 = vsel %vm904, %v1149, 0
      %v1547 = vsel %vm904, %v1152, 0
      %v1550 = vsel %vm904, %v1155, 0
      %v1553 = vsel %vm904, %v1158, 0
      %v1556 = vsel %vm904, %v1161, 0
      %v1559 = vsel %vm904, %v1164, 0
      %v1562 = vsel %vm904, %v1167, 0
      %v1565 = vsel %vm904, %v1170, 0
      %v1568 = vsel %vm1498, %v1172, 0
      %1570 = vmatpush.msra.mxu0 0.0
      %1571 = vmatpush.msra.mxu0 0.0
      %1572 = vmatpush.msra.mxu0 0.0
      %1573 = vmatpush.msra.mxu0 0.0
      %1574 = vmatpush.msra.mxu0 0.0
      %1575 = vmatpush.msra.mxu0 0.0
      %1576 = vmatpush.msra.mxu0 0.0
      %1577 = vmatpush.msra.mxu0 0.0
      %1578 = vmatpush.msra.mxu0 0.0
      %1579 = vmatpush.msra.mxu0 0.0
      %1580 = vmatpush.msra.mxu0 0.0
      %1581 = vmatpush.msra.mxu0 0.0
      %1582 = vmatpush.msra.mxu0 0.0
      %1583 = vmatpush.msra.mxu0 0.0
      %1584 = vmatpush.msra.mxu0 0.0
      %1585 = vmatpush.msra.mxu0 %v1568
      %1586 = vmatmul.f32.gmra.mxu0 %v1544
      %v1587 = vpop.f32.mrf.mxu0
      %v1588 = vadd.f32 %v1520, %v1587
      %1589 = vmatmul.f32.gmra.mxu0 %v1547
      %v1590 = vpop.f32.mrf.mxu0
      %v1591 = vadd.f32 %v1523, %v1590
      %1592 = vmatmul.f32.gmra.mxu0 %v1550
      %v1593 = vpop.f32.mrf.mxu0
      %v1594 = vadd.f32 %v1526, %v1593
      %1595 = vmatmul.f32.gmra.mxu0 %v1553
      %v1596 = vpop.f32.mrf.mxu0
      %v1597 = vadd.f32 %v1529, %v1596
      %1598 = vmatmul.f32.gmra.mxu0 %v1556
      %v1599 = vpop.f32.mrf.mxu0
      %v1600 = vadd.f32 %v1532, %v1599
      %1601 = vmatmul.f32.gmra.mxu0 %v1559
      %v1602 = vpop.f32.mrf.mxu0
      %v1603 = vadd.f32 %v1535, %v1602
      %1604 = vmatmul.f32.gmra.mxu0 %v1562
      %v1605 = vpop.f32.mrf.mxu0
      %v1606 = vadd.f32 %v1538, %v1605
      %1607 = vmatmul.f32.gmra.mxu0 %v1565
      %v1608 = vpop.f32.mrf.mxu0
      %v1609 = vadd.f32 %v1541, %v1608
      %1610 = vdwg.mxu0
      %s1611 = scalar_lea.vmem %s2, 128
      %v1612 = vld [vmem:[%s1611] sm:$0xff]
      %v1613 = vld [vmem:[%s1611 + $0x8] sm:$0xff]
      %v1614 = vld [vmem:[%s1611 + $0x10] sm:$0xff]
      %v1615 = vld [vmem:[%s1611 + $0x18] sm:$0xff]
      %v1616 = vld [vmem:[%s1611 + $0x20] sm:$0xff]
      %v1617 = vld [vmem:[%s1611 + $0x28] sm:$0xff]
      %v1618 = vld [vmem:[%s1611 + $0x30] sm:$0xff]
      %v1619 = vld [vmem:[%s1611 + $0x38] sm:$0xff]
      %1620 = vrot.lane.b32.xlu0 %v864, 120
      %v1621 = vpop.permute.xlu0 %1620
      %1622 = vrot.lane.b32.xlu0 %v865, 120
      %v1623 = vpop.permute.xlu0 %1622
      %1624 = vrot.lane.b32.xlu0 %v866, 120
      %v1625 = vpop.permute.xlu0 %1624
      %1626 = vrot.lane.b32.xlu0 %v867, 120
      %v1627 = vpop.permute.xlu0 %1626
      %1628 = vrot.lane.b32.xlu0 %v868, 120
      %v1629 = vpop.permute.xlu0 %1628
      %1630 = vrot.lane.b32.xlu0 %v869, 120
      %v1631 = vpop.permute.xlu0 %1630
      %1632 = vrot.lane.b32.xlu0 %v870, 120
      %v1633 = vpop.permute.xlu0 %1632
      %1634 = vrot.lane.b32.xlu0 %v871, 120
      %v1635 = vpop.permute.xlu0 %1634
      %1636 = vrot.lane.b32.xlu0 %v833, 96
      %v1637 = vpop.permute.xlu0 %1636
      %1638 = vrot.lane.b32.xlu0 %v836, 96
      %v1639 = vpop.permute.xlu0 %1638
      %1640 = vrot.lane.b32.xlu0 %v839, 96
      %v1641 = vpop.permute.xlu0 %1640
      %1642 = vrot.lane.b32.xlu0 %v842, 96
      %v1643 = vpop.permute.xlu0 %1642
      %1644 = vrot.lane.b32.xlu0 %v845, 96
      %v1645 = vpop.permute.xlu0 %1644
      %1646 = vrot.lane.b32.xlu0 %v848, 96
      %v1647 = vpop.permute.xlu0 %1646
      %1648 = vrot.lane.b32.xlu0 %v851, 96
      %v1649 = vpop.permute.xlu0 %1648
      %1650 = vrot.lane.b32.xlu0 %v854, 96
      %v1651 = vpop.permute.xlu0 %1650
      %v1652 = vsel %vm904, %v1621, 0
      %v1654 = vsel %vm904, %v1623, 0
      %v1656 = vsel %vm904, %v1625, 0
      %v1658 = vsel %vm904, %v1627, 0
      %v1660 = vsel %vm904, %v1629, 0
      %v1662 = vsel %vm904, %v1631, 0
      %v1664 = vsel %vm904, %v1633, 0
      %v1666 = vsel %vm904, %v1635, 0
      %v1668 = vsel %vm904, %v1637, 0
      %v1670 = vsel %vm904, %v1639, 0
      %v1672 = vsel %vm904, %v1641, 0
      %v1674 = vsel %vm904, %v1643, 0
      %v1676 = vsel %vm904, %v1645, 0
      %v1678 = vsel %vm904, %v1647, 0
      %v1680 = vsel %vm904, %v1649, 0
      %v1682 = vsel %vm904, %v1651, 0
      %1684 = vmatpush.xpose.msra.mxu0 0.0
      %1685 = vmatpush.xpose.msra.mxu0 0.0
      %1686 = vmatpush.xpose.msra.mxu0 0.0
      %1687 = vmatpush.xpose.msra.mxu0 0.0
      %1688 = vmatpush.xpose.msra.mxu0 0.0
      %1689 = vmatpush.xpose.msra.mxu0 0.0
      %1690 = vmatpush.xpose.msra.mxu0 0.0
      %1691 = vmatpush.xpose.msra.mxu0 0.0
      %1692 = vmatpush.xpose.msra.mxu0 %v1682
      %1693 = vmatpush.xpose.msra.mxu0 %v1680
      %1694 = vmatpush.xpose.msra.mxu0 %v1678
      %1695 = vmatpush.xpose.msra.mxu0 %v1676
      %1696 = vmatpush.xpose.msra.mxu0 %v1674
      %1697 = vmatpush.xpose.msra.mxu0 %v1672
      %1698 = vmatpush.xpose.msra.mxu0 %v1670
      %1699 = vmatpush.xpose.msra.mxu0 %v1668
      %1700 = vmatmul.f32.gmra.mxu0 %v1652
      %v1701 = vpop.f32.mrf.mxu0
      %v1702 = vadd.f32 %v1612, %v1701
      %1703 = vmatmul.f32.gmra.mxu0 %v1654
      %v1704 = vpop.f32.mrf.mxu0
      %v1705 = vadd.f32 %v1613, %v1704
      %1706 = vmatmul.f32.gmra.mxu0 %v1656
      %v1707 = vpop.f32.mrf.mxu0
      %v1708 = vadd.f32 %v1614, %v1707
      %1709 = vmatmul.f32.gmra.mxu0 %v1658
      %v1710 = vpop.f32.mrf.mxu0
      %v1711 = vadd.f32 %v1615, %v1710
      %1712 = vmatmul.f32.gmra.mxu0 %v1660
      %v1713 = vpop.f32.mrf.mxu0
      %v1714 = vadd.f32 %v1616, %v1713
      %1715 = vmatmul.f32.gmra.mxu0 %v1662
      %v1716 = vpop.f32.mrf.mxu0
      %v1717 = vadd.f32 %v1617, %v1716
      %1718 = vmatmul.f32.gmra.mxu0 %v1664
      %v1719 = vpop.f32.mrf.mxu0
      %v1720 = vadd.f32 %v1618, %v1719
      %1721 = vmatmul.f32.gmra.mxu0 %v1666
      %v1722 = vpop.f32.mrf.mxu0
      %v1723 = vadd.f32 %v1619, %v1722
      %1724 = vdwg.mxu0
      %v1725 = vadd.f32 %v1702, %v856
      %v1726 = vadd.f32 %v1705, %v857
      %v1727 = vadd.f32 %v1708, %v858
      %v1728 = vadd.f32 %v1711, %v859
      %v1729 = vadd.f32 %v1714, %v860
      %v1730 = vadd.f32 %v1717, %v861
      %v1731 = vadd.f32 %v1720, %v862
      %v1732 = vadd.f32 %v1723, %v863
      %v1733 = vsel %vm994, %v1725, -inf
      %1734 = vmax.xlane.f32.xlu0 %v1733
      %v1735 = vpop.xlane.xlu0 %1734
      %v1736 = vsel %vm994, %v1726, -inf
      %1737 = vmax.xlane.f32.xlu0 %v1736
      %v1738 = vpop.xlane.xlu0 %1737
      %v1739 = vsel %vm994, %v1727, -inf
      %1740 = vmax.xlane.f32.xlu0 %v1739
      %v1741 = vpop.xlane.xlu0 %1740
      %v1742 = vsel %vm994, %v1728, -inf
      %1743 = vmax.xlane.f32.xlu0 %v1742
      %v1744 = vpop.xlane.xlu0 %1743
      %v1745 = vsel %vm994, %v1729, -inf
      %1746 = vmax.xlane.f32.xlu0 %v1745
      %v1747 = vpop.xlane.xlu0 %1746
      %v1748 = vsel %vm994, %v1730, -inf
      %1749 = vmax.xlane.f32.xlu0 %v1748
      %v1750 = vpop.xlane.xlu0 %1749
      %v1751 = vsel %vm994, %v1731, -inf
      %1752 = vmax.xlane.f32.xlu0 %v1751
      %v1753 = vpop.xlane.xlu0 %1752
      %v1754 = vsel %vm994, %v1732, -inf
      %1755 = vmax.xlane.f32.xlu0 %v1754
      %v1756 = vpop.xlane.xlu0 %1755
      %v1757 = vsub.f32 %v1725, %v1735
      %v1758 = vsub.f32 %v1726, %v1738
      %v1759 = vsub.f32 %v1727, %v1741
      %v1760 = vsub.f32 %v1728, %v1744
      %v1761 = vsub.f32 %v1729, %v1747
      %v1762 = vsub.f32 %v1730, %v1750
      %v1763 = vsub.f32 %v1731, %v1753
      %v1764 = vsub.f32 %v1732, %v1756
      %v1765 = vmul.f32 %v1757, 1.442695
      %v1766 = vpow.pop %v1765
      %v1767 = vmul.f32 %v1758, 1.442695
      %v1768 = vpow.pop %v1767
      %v1769 = vmul.f32 %v1759, 1.442695
      %v1770 = vpow.pop %v1769
      %v1771 = vmul.f32 %v1760, 1.442695
      %v1772 = vpow.pop %v1771
      %v1773 = vmul.f32 %v1761, 1.442695
      %v1774 = vpow.pop %v1773
      %v1775 = vmul.f32 %v1762, 1.442695
      %v1776 = vpow.pop %v1775
      %v1777 = vmul.f32 %v1763, 1.442695
      %v1778 = vpow.pop %v1777
      %v1779 = vmul.f32 %v1764, 1.442695
      %v1780 = vpow.pop %v1779
      %v1781 = vsel %vm994, %v1766, 0.0
      %1782 = vadd.xlane.f32.xlu0 %v1781
      %v1783 = vpop.xlane.xlu0 %1782
      %v1784 = vsel %vm994, %v1768, 0.0
      %1785 = vadd.xlane.f32.xlu0 %v1784
      %v1786 = vpop.xlane.xlu0 %1785
      %v1787 = vsel %vm994, %v1770, 0.0
      %1788 = vadd.xlane.f32.xlu0 %v1787
      %v1789 = vpop.xlane.xlu0 %1788
      %v1790 = vsel %vm994, %v1772, 0.0
      %1791 = vadd.xlane.f32.xlu0 %v1790
      %v1792 = vpop.xlane.xlu0 %1791
      %v1793 = vsel %vm994, %v1774, 0.0
      %1794 = vadd.xlane.f32.xlu0 %v1793
      %v1795 = vpop.xlane.xlu0 %1794
      %v1796 = vsel %vm994, %v1776, 0.0
      %1797 = vadd.xlane.f32.xlu0 %v1796
      %v1798 = vpop.xlane.xlu0 %1797
      %v1799 = vsel %vm994, %v1778, 0.0
      %1800 = vadd.xlane.f32.xlu0 %v1799
      %v1801 = vpop.xlane.xlu0 %1800
      %v1802 = vsel %vm994, %v1780, 0.0
      %1803 = vadd.xlane.f32.xlu0 %v1802
      %v1804 = vpop.xlane.xlu0 %1803
      %v1805 = vrcp.pop %v1783
      %v1806 = vrcp.pop %v1786
      %v1807 = vrcp.pop %v1789
      %v1808 = vrcp.pop %v1792
      %v1809 = vrcp.pop %v1795
      %v1810 = vrcp.pop %v1798
      %v1811 = vrcp.pop %v1801
      %v1812 = vrcp.pop %v1804
      %v1813 = vmul.f32 %v1766, %v1805
      %v1814 = vmul.f32 %v1768, %v1806
      %v1815 = vmul.f32 %v1770, %v1807
      %v1816 = vmul.f32 %v1772, %v1808
      %v1817 = vmul.f32 %v1774, %v1809
      %v1818 = vmul.f32 %v1776, %v1810
      %v1819 = vmul.f32 %v1778, %v1811
      %v1820 = vmul.f32 %v1780, %v1812
      %1821 = vrot.lane.b32.xlu0 %v833, 72
      %v1822 = vpop.permute.xlu0 %1821
      %1823 = vrot.lane.b32.xlu0 %v836, 72
      %v1824 = vpop.permute.xlu0 %1823
      %1825 = vrot.lane.b32.xlu0 %v839, 72
      %v1826 = vpop.permute.xlu0 %1825
      %1827 = vrot.lane.b32.xlu0 %v842, 72
      %v1828 = vpop.permute.xlu0 %1827
      %1829 = vrot.lane.b32.xlu0 %v845, 72
      %v1830 = vpop.permute.xlu0 %1829
      %1831 = vrot.lane.b32.xlu0 %v848, 72
      %v1832 = vpop.permute.xlu0 %1831
      %1833 = vrot.lane.b32.xlu0 %v851, 72
      %v1834 = vpop.permute.xlu0 %1833
      %1835 = vrot.lane.b32.xlu0 %v854, 72
      %v1836 = vpop.permute.xlu0 %1835
      %v1846 = vsel %vm994, %v1813, 0
      %v1849 = vsel %vm994, %v1814, 0
      %v1852 = vsel %vm994, %v1815, 0
      %v1855 = vsel %vm994, %v1816, 0
      %v1858 = vsel %vm994, %v1817, 0
      %v1861 = vsel %vm994, %v1818, 0
      %v1864 = vsel %vm994, %v1819, 0
      %v1867 = vsel %vm994, %v1820, 0
      %1869 = vmatpush.msra.mxu0 0.0
      %1870 = vmatpush.msra.mxu0 0.0
      %1871 = vmatpush.msra.mxu0 0.0
      %1872 = vmatpush.msra.mxu0 0.0
      %1873 = vmatpush.msra.mxu0 0.0
      %1874 = vmatpush.msra.mxu0 0.0
      %1875 = vmatpush.msra.mxu0 0.0
      %1876 = vmatpush.msra.mxu0 0.0
      %1877 = vmatpush.msra.mxu0 %v1836
      %1878 = vmatpush.msra.mxu0 %v1834
      %1879 = vmatpush.msra.mxu0 %v1832
      %1880 = vmatpush.msra.mxu0 %v1830
      %1881 = vmatpush.msra.mxu0 %v1828
      %1882 = vmatpush.msra.mxu0 %v1826
      %1883 = vmatpush.msra.mxu0 %v1824
      %1884 = vmatpush.msra.mxu0 %v1822
      %1885 = vmatmul.f32.gmra.mxu0 %v1846
      %v1886 = vpop.f32.mrf.mxu0
      %v1887 = vadd.f32 0.0, %v1886
      %1888 = vmatmul.f32.gmra.mxu0 %v1849
      %v1889 = vpop.f32.mrf.mxu0
      %v1890 = vadd.f32 0.0, %v1889
      %1891 = vmatmul.f32.gmra.mxu0 %v1852
      %v1892 = vpop.f32.mrf.mxu0
      %v1893 = vadd.f32 0.0, %v1892
      %1894 = vmatmul.f32.gmra.mxu0 %v1855
      %v1895 = vpop.f32.mrf.mxu0
      %v1896 = vadd.f32 0.0, %v1895
      %1897 = vmatmul.f32.gmra.mxu0 %v1858
      %v1898 = vpop.f32.mrf.mxu0
      %v1899 = vadd.f32 0.0, %v1898
      %1900 = vmatmul.f32.gmra.mxu0 %v1861
      %v1901 = vpop.f32.mrf.mxu0
      %v1902 = vadd.f32 0.0, %v1901
      %1903 = vmatmul.f32.gmra.mxu0 %v1864
      %v1904 = vpop.f32.mrf.mxu0
      %v1905 = vadd.f32 0.0, %v1904
      %1906 = vmatmul.f32.gmra.mxu0 %v1867
      %v1907 = vpop.f32.mrf.mxu0
      %v1908 = vadd.f32 0.0, %v1907
      %1909 = vdwg.mxu0
      %s1910 = scalar_lea.vmem %s6, 8
      %v1911 = vld [vmem:[%s1910] sm:$0xf]
      %v1913 = vsel %vm904, %v1887, 0
      %v1916 = vsel %vm904, %v1890, 0
      %v1919 = vsel %vm904, %v1893, 0
      %v1922 = vsel %vm904, %v1896, 0
      %v1925 = vsel %vm904, %v1899, 0
      %v1928 = vsel %vm904, %v1902, 0
      %v1931 = vsel %vm904, %v1905, 0
      %v1934 = vsel %vm904, %v1908, 0
      %v1937 = vsel %vm1498, %v1911, 0
      %1939 = vmatpush.msra.mxu0 0.0
      %1940 = vmatpush.msra.mxu0 0.0
      %1941 = vmatpush.msra.mxu0 0.0
      %1942 = vmatpush.msra.mxu0 0.0
      %1943 = vmatpush.msra.mxu0 0.0
      %1944 = vmatpush.msra.mxu0 0.0
      %1945 = vmatpush.msra.mxu0 0.0
      %1946 = vmatpush.msra.mxu0 0.0
      %1947 = vmatpush.msra.mxu0 0.0
      %1948 = vmatpush.msra.mxu0 0.0
      %1949 = vmatpush.msra.mxu0 0.0
      %1950 = vmatpush.msra.mxu0 0.0
      %1951 = vmatpush.msra.mxu0 0.0
      %1952 = vmatpush.msra.mxu0 0.0
      %1953 = vmatpush.msra.mxu0 0.0
      %1954 = vmatpush.msra.mxu0 %v1937
      %1955 = vmatmul.f32.gmra.mxu0 %v1913
      %v1956 = vpop.f32.mrf.mxu0
      %v1957 = vadd.f32 0.0, %v1956
      %1958 = vmatmul.f32.gmra.mxu0 %v1916
      %v1959 = vpop.f32.mrf.mxu0
      %v1960 = vadd.f32 0.0, %v1959
      %1961 = vmatmul.f32.gmra.mxu0 %v1919
      %v1962 = vpop.f32.mrf.mxu0
      %v1963 = vadd.f32 0.0, %v1962
      %1964 = vmatmul.f32.gmra.mxu0 %v1922
      %v1965 = vpop.f32.mrf.mxu0
      %v1966 = vadd.f32 0.0, %v1965
      %1967 = vmatmul.f32.gmra.mxu0 %v1925
      %v1968 = vpop.f32.mrf.mxu0
      %v1969 = vadd.f32 0.0, %v1968
      %1970 = vmatmul.f32.gmra.mxu0 %v1928
      %v1971 = vpop.f32.mrf.mxu0
      %v1972 = vadd.f32 0.0, %v1971
      %1973 = vmatmul.f32.gmra.mxu0 %v1931
      %v1974 = vpop.f32.mrf.mxu0
      %v1975 = vadd.f32 0.0, %v1974
      %1976 = vmatmul.f32.gmra.mxu0 %v1934
      %v1977 = vpop.f32.mrf.mxu0
      %v1978 = vadd.f32 0.0, %v1977
      %1979 = vdwg.mxu0
      %v1980 = vadd.f32 %v1588, %v1957
      %v1981 = vadd.f32 %v1591, %v1960
      %v1982 = vadd.f32 %v1594, %v1963
      %v1983 = vadd.f32 %v1597, %v1966
      %v1984 = vadd.f32 %v1600, %v1969
      %v1985 = vadd.f32 %v1603, %v1972
      %v1986 = vadd.f32 %v1606, %v1975
      %v1987 = vadd.f32 %v1609, %v1978
      %s1988 = scalar_lea.vmem %s2, 192
      %v1989 = vld [vmem:[%s1988] sm:$0xff]
      %v1990 = vld [vmem:[%s1988 + $0x8] sm:$0xff]
      %v1991 = vld [vmem:[%s1988 + $0x10] sm:$0xff]
      %v1992 = vld [vmem:[%s1988 + $0x18] sm:$0xff]
      %v1993 = vld [vmem:[%s1988 + $0x20] sm:$0xff]
      %v1994 = vld [vmem:[%s1988 + $0x28] sm:$0xff]
      %v1995 = vld [vmem:[%s1988 + $0x30] sm:$0xff]
      %v1996 = vld [vmem:[%s1988 + $0x38] sm:$0xff]
      %1997 = vrot.lane.b32.xlu0 %v864, 116
      %v1998 = vpop.permute.xlu0 %1997
      %1999 = vrot.lane.b32.xlu0 %v865, 116
      %v2000 = vpop.permute.xlu0 %1999
      %2001 = vrot.lane.b32.xlu0 %v866, 116
      %v2002 = vpop.permute.xlu0 %2001
      %2003 = vrot.lane.b32.xlu0 %v867, 116
      %v2004 = vpop.permute.xlu0 %2003
      %2005 = vrot.lane.b32.xlu0 %v868, 116
      %v2006 = vpop.permute.xlu0 %2005
      %2007 = vrot.lane.b32.xlu0 %v869, 116
      %v2008 = vpop.permute.xlu0 %2007
      %2009 = vrot.lane.b32.xlu0 %v870, 116
      %v2010 = vpop.permute.xlu0 %2009
      %2011 = vrot.lane.b32.xlu0 %v871, 116
      %v2012 = vpop.permute.xlu0 %2011
      %2013 = vrot.lane.b32.xlu0 %v833, 92
      %v2014 = vpop.permute.xlu0 %2013
      %2015 = vrot.lane.b32.xlu0 %v836, 92
      %v2016 = vpop.permute.xlu0 %2015
      %2017 = vrot.lane.b32.xlu0 %v839, 92
      %v2018 = vpop.permute.xlu0 %2017
      %2019 = vrot.lane.b32.xlu0 %v842, 92
      %v2020 = vpop.permute.xlu0 %2019
      %2021 = vrot.lane.b32.xlu0 %v845, 92
      %v2022 = vpop.permute.xlu0 %2021
      %2023 = vrot.lane.b32.xlu0 %v848, 92
      %v2024 = vpop.permute.xlu0 %2023
      %2025 = vrot.lane.b32.xlu0 %v851, 92
      %v2026 = vpop.permute.xlu0 %2025
      %2027 = vrot.lane.b32.xlu0 %v854, 92
      %v2028 = vpop.permute.xlu0 %2027
      %v2029 = vsel %vm904, %v1998, 0
      %v2031 = vsel %vm904, %v2000, 0
      %v2033 = vsel %vm904, %v2002, 0
      %v2035 = vsel %vm904, %v2004, 0
      %v2037 = vsel %vm904, %v2006, 0
      %v2039 = vsel %vm904, %v2008, 0
      %v2041 = vsel %vm904, %v2010, 0
      %v2043 = vsel %vm904, %v2012, 0
      %v2045 = vsel %vm904, %v2014, 0
      %v2047 = vsel %vm904, %v2016, 0
      %v2049 = vsel %vm904, %v2018, 0
      %v2051 = vsel %vm904, %v2020, 0
      %v2053 = vsel %vm904, %v2022, 0
      %v2055 = vsel %vm904, %v2024, 0
      %v2057 = vsel %vm904, %v2026, 0
      %v2059 = vsel %vm904, %v2028, 0
      %2061 = vmatpush.xpose.msra.mxu0 0.0
      %2062 = vmatpush.xpose.msra.mxu0 0.0
      %2063 = vmatpush.xpose.msra.mxu0 0.0
      %2064 = vmatpush.xpose.msra.mxu0 0.0
      %2065 = vmatpush.xpose.msra.mxu0 0.0
      %2066 = vmatpush.xpose.msra.mxu0 0.0
      %2067 = vmatpush.xpose.msra.mxu0 0.0
      %2068 = vmatpush.xpose.msra.mxu0 0.0
      %2069 = vmatpush.xpose.msra.mxu0 %v2059
      %2070 = vmatpush.xpose.msra.mxu0 %v2057
      %2071 = vmatpush.xpose.msra.mxu0 %v2055
      %2072 = vmatpush.xpose.msra.mxu0 %v2053
      %2073 = vmatpush.xpose.msra.mxu0 %v2051
      %2074 = vmatpush.xpose.msra.mxu0 %v2049
      %2075 = vmatpush.xpose.msra.mxu0 %v2047
      %2076 = vmatpush.xpose.msra.mxu0 %v2045
      %2077 = vmatmul.f32.gmra.mxu0 %v2029
      %v2078 = vpop.f32.mrf.mxu0
      %v2079 = vadd.f32 %v1989, %v2078
      %2080 = vmatmul.f32.gmra.mxu0 %v2031
      %v2081 = vpop.f32.mrf.mxu0
      %v2082 = vadd.f32 %v1990, %v2081
      %2083 = vmatmul.f32.gmra.mxu0 %v2033
      %v2084 = vpop.f32.mrf.mxu0
      %v2085 = vadd.f32 %v1991, %v2084
      %2086 = vmatmul.f32.gmra.mxu0 %v2035
      %v2087 = vpop.f32.mrf.mxu0
      %v2088 = vadd.f32 %v1992, %v2087
      %2089 = vmatmul.f32.gmra.mxu0 %v2037
      %v2090 = vpop.f32.mrf.mxu0
      %v2091 = vadd.f32 %v1993, %v2090
      %2092 = vmatmul.f32.gmra.mxu0 %v2039
      %v2093 = vpop.f32.mrf.mxu0
      %v2094 = vadd.f32 %v1994, %v2093
      %2095 = vmatmul.f32.gmra.mxu0 %v2041
      %v2096 = vpop.f32.mrf.mxu0
      %v2097 = vadd.f32 %v1995, %v2096
      %2098 = vmatmul.f32.gmra.mxu0 %v2043
      %v2099 = vpop.f32.mrf.mxu0
      %v2100 = vadd.f32 %v1996, %v2099
      %2101 = vdwg.mxu0
      %v2102 = vadd.f32 %v2079, %v856
      %v2103 = vadd.f32 %v2082, %v857
      %v2104 = vadd.f32 %v2085, %v858
      %v2105 = vadd.f32 %v2088, %v859
      %v2106 = vadd.f32 %v2091, %v860
      %v2107 = vadd.f32 %v2094, %v861
      %v2108 = vadd.f32 %v2097, %v862
      %v2109 = vadd.f32 %v2100, %v863
      %v2110 = vsel %vm994, %v2102, -inf
      %2111 = vmax.xlane.f32.xlu0 %v2110
      %v2112 = vpop.xlane.xlu0 %2111
      %v2113 = vsel %vm994, %v2103, -inf
      %2114 = vmax.xlane.f32.xlu0 %v2113
      %v2115 = vpop.xlane.xlu0 %2114
      %v2116 = vsel %vm994, %v2104, -inf
      %2117 = vmax.xlane.f32.xlu0 %v2116
      %v2118 = vpop.xlane.xlu0 %2117
      %v2119 = vsel %vm994, %v2105, -inf
      %2120 = vmax.xlane.f32.xlu0 %v2119
      %v2121 = vpop.xlane.xlu0 %2120
      %v2122 = vsel %vm994, %v2106, -inf
      %2123 = vmax.xlane.f32.xlu0 %v2122
      %v2124 = vpop.xlane.xlu0 %2123
      %v2125 = vsel %vm994, %v2107, -inf
      %2126 = vmax.xlane.f32.xlu0 %v2125
      %v2127 = vpop.xlane.xlu0 %2126
      %v2128 = vsel %vm994, %v2108, -inf
      %2129 = vmax.xlane.f32.xlu0 %v2128
      %v2130 = vpop.xlane.xlu0 %2129
      %v2131 = vsel %vm994, %v2109, -inf
      %2132 = vmax.xlane.f32.xlu0 %v2131
      %v2133 = vpop.xlane.xlu0 %2132
      %v2134 = vsub.f32 %v2102, %v2112
      %v2135 = vsub.f32 %v2103, %v2115
      %v2136 = vsub.f32 %v2104, %v2118
      %v2137 = vsub.f32 %v2105, %v2121
      %v2138 = vsub.f32 %v2106, %v2124
      %v2139 = vsub.f32 %v2107, %v2127
      %v2140 = vsub.f32 %v2108, %v2130
      %v2141 = vsub.f32 %v2109, %v2133
      %v2142 = vmul.f32 %v2134, 1.442695
      %v2143 = vpow.pop %v2142
      %v2144 = vmul.f32 %v2135, 1.442695
      %v2145 = vpow.pop %v2144
      %v2146 = vmul.f32 %v2136, 1.442695
      %v2147 = vpow.pop %v2146
      %v2148 = vmul.f32 %v2137, 1.442695
      %v2149 = vpow.pop %v2148
      %v2150 = vmul.f32 %v2138, 1.442695
      %v2151 = vpow.pop %v2150
      %v2152 = vmul.f32 %v2139, 1.442695
      %v2153 = vpow.pop %v2152
      %v2154 = vmul.f32 %v2140, 1.442695
      %v2155 = vpow.pop %v2154
      %v2156 = vmul.f32 %v2141, 1.442695
      %v2157 = vpow.pop %v2156
      %v2158 = vsel %vm994, %v2143, 0.0
      %2159 = vadd.xlane.f32.xlu0 %v2158
      %v2160 = vpop.xlane.xlu0 %2159
      %v2161 = vsel %vm994, %v2145, 0.0
      %2162 = vadd.xlane.f32.xlu0 %v2161
      %v2163 = vpop.xlane.xlu0 %2162
      %v2164 = vsel %vm994, %v2147, 0.0
      %2165 = vadd.xlane.f32.xlu0 %v2164
      %v2166 = vpop.xlane.xlu0 %2165
      %v2167 = vsel %vm994, %v2149, 0.0
      %2168 = vadd.xlane.f32.xlu0 %v2167
      %v2169 = vpop.xlane.xlu0 %2168
      %v2170 = vsel %vm994, %v2151, 0.0
      %2171 = vadd.xlane.f32.xlu0 %v2170
      %v2172 = vpop.xlane.xlu0 %2171
      %v2173 = vsel %vm994, %v2153, 0.0
      %2174 = vadd.xlane.f32.xlu0 %v2173
      %v2175 = vpop.xlane.xlu0 %2174
      %v2176 = vsel %vm994, %v2155, 0.0
      %2177 = vadd.xlane.f32.xlu0 %v2176
      %v2178 = vpop.xlane.xlu0 %2177
      %v2179 = vsel %vm994, %v2157, 0.0
      %2180 = vadd.xlane.f32.xlu0 %v2179
      %v2181 = vpop.xlane.xlu0 %2180
      %v2182 = vrcp.pop %v2160
      %v2183 = vrcp.pop %v2163
      %v2184 = vrcp.pop %v2166
      %v2185 = vrcp.pop %v2169
      %v2186 = vrcp.pop %v2172
      %v2187 = vrcp.pop %v2175
      %v2188 = vrcp.pop %v2178
      %v2189 = vrcp.pop %v2181
      %v2190 = vmul.f32 %v2143, %v2182
      %v2191 = vmul.f32 %v2145, %v2183
      %v2192 = vmul.f32 %v2147, %v2184
      %v2193 = vmul.f32 %v2149, %v2185
      %v2194 = vmul.f32 %v2151, %v2186
      %v2195 = vmul.f32 %v2153, %v2187
      %v2196 = vmul.f32 %v2155, %v2188
      %v2197 = vmul.f32 %v2157, %v2189
      %2198 = vrot.lane.b32.xlu0 %v833, 68
      %v2199 = vpop.permute.xlu0 %2198
      %2200 = vrot.lane.b32.xlu0 %v836, 68
      %v2201 = vpop.permute.xlu0 %2200
      %2202 = vrot.lane.b32.xlu0 %v839, 68
      %v2203 = vpop.permute.xlu0 %2202
      %2204 = vrot.lane.b32.xlu0 %v842, 68
      %v2205 = vpop.permute.xlu0 %2204
      %2206 = vrot.lane.b32.xlu0 %v845, 68
      %v2207 = vpop.permute.xlu0 %2206
      %2208 = vrot.lane.b32.xlu0 %v848, 68
      %v2209 = vpop.permute.xlu0 %2208
      %2210 = vrot.lane.b32.xlu0 %v851, 68
      %v2211 = vpop.permute.xlu0 %2210
      %2212 = vrot.lane.b32.xlu0 %v854, 68
      %v2213 = vpop.permute.xlu0 %2212
      %v2223 = vsel %vm994, %v2190, 0
      %v2226 = vsel %vm994, %v2191, 0
      %v2229 = vsel %vm994, %v2192, 0
      %v2232 = vsel %vm994, %v2193, 0
      %v2235 = vsel %vm994, %v2194, 0
      %v2238 = vsel %vm994, %v2195, 0
      %v2241 = vsel %vm994, %v2196, 0
      %v2244 = vsel %vm994, %v2197, 0
      %2246 = vmatpush.msra.mxu0 0.0
      %2247 = vmatpush.msra.mxu0 0.0
      %2248 = vmatpush.msra.mxu0 0.0
      %2249 = vmatpush.msra.mxu0 0.0
      %2250 = vmatpush.msra.mxu0 0.0
      %2251 = vmatpush.msra.mxu0 0.0
      %2252 = vmatpush.msra.mxu0 0.0
      %2253 = vmatpush.msra.mxu0 0.0
      %2254 = vmatpush.msra.mxu0 %v2213
      %2255 = vmatpush.msra.mxu0 %v2211
      %2256 = vmatpush.msra.mxu0 %v2209
      %2257 = vmatpush.msra.mxu0 %v2207
      %2258 = vmatpush.msra.mxu0 %v2205
      %2259 = vmatpush.msra.mxu0 %v2203
      %2260 = vmatpush.msra.mxu0 %v2201
      %2261 = vmatpush.msra.mxu0 %v2199
      %2262 = vmatmul.f32.gmra.mxu0 %v2223
      %v2263 = vpop.f32.mrf.mxu0
      %v2264 = vadd.f32 0.0, %v2263
      %2265 = vmatmul.f32.gmra.mxu0 %v2226
      %v2266 = vpop.f32.mrf.mxu0
      %v2267 = vadd.f32 0.0, %v2266
      %2268 = vmatmul.f32.gmra.mxu0 %v2229
      %v2269 = vpop.f32.mrf.mxu0
      %v2270 = vadd.f32 0.0, %v2269
      %2271 = vmatmul.f32.gmra.mxu0 %v2232
      %v2272 = vpop.f32.mrf.mxu0
      %v2273 = vadd.f32 0.0, %v2272
      %2274 = vmatmul.f32.gmra.mxu0 %v2235
      %v2275 = vpop.f32.mrf.mxu0
      %v2276 = vadd.f32 0.0, %v2275
      %2277 = vmatmul.f32.gmra.mxu0 %v2238
      %v2278 = vpop.f32.mrf.mxu0
      %v2279 = vadd.f32 0.0, %v2278
      %2280 = vmatmul.f32.gmra.mxu0 %v2241
      %v2281 = vpop.f32.mrf.mxu0
      %v2282 = vadd.f32 0.0, %v2281
      %2283 = vmatmul.f32.gmra.mxu0 %v2244
      %v2284 = vpop.f32.mrf.mxu0
      %v2285 = vadd.f32 0.0, %v2284
      %2286 = vdwg.mxu0
      %s2287 = scalar_lea.vmem %s6, 12
      %v2288 = vld [vmem:[%s2287] sm:$0xf]
      %v2290 = vsel %vm904, %v2264, 0
      %v2293 = vsel %vm904, %v2267, 0
      %v2296 = vsel %vm904, %v2270, 0
      %v2299 = vsel %vm904, %v2273, 0
      %v2302 = vsel %vm904, %v2276, 0
      %v2305 = vsel %vm904, %v2279, 0
      %v2308 = vsel %vm904, %v2282, 0
      %v2311 = vsel %vm904, %v2285, 0
      %v2314 = vsel %vm1498, %v2288, 0
      %2316 = vmatpush.msra.mxu0 0.0
      %2317 = vmatpush.msra.mxu0 0.0
      %2318 = vmatpush.msra.mxu0 0.0
      %2319 = vmatpush.msra.mxu0 0.0
      %2320 = vmatpush.msra.mxu0 0.0
      %2321 = vmatpush.msra.mxu0 0.0
      %2322 = vmatpush.msra.mxu0 0.0
      %2323 = vmatpush.msra.mxu0 0.0
      %2324 = vmatpush.msra.mxu0 0.0
      %2325 = vmatpush.msra.mxu0 0.0
      %2326 = vmatpush.msra.mxu0 0.0
      %2327 = vmatpush.msra.mxu0 0.0
      %2328 = vmatpush.msra.mxu0 0.0
      %2329 = vmatpush.msra.mxu0 0.0
      %2330 = vmatpush.msra.mxu0 0.0
      %2331 = vmatpush.msra.mxu0 %v2314
      %2332 = vmatmul.f32.gmra.mxu0 %v2290
      %v2333 = vpop.f32.mrf.mxu0
      %v2334 = vadd.f32 0.0, %v2333
      %2335 = vmatmul.f32.gmra.mxu0 %v2293
      %v2336 = vpop.f32.mrf.mxu0
      %v2337 = vadd.f32 0.0, %v2336
      %2338 = vmatmul.f32.gmra.mxu0 %v2296
      %v2339 = vpop.f32.mrf.mxu0
      %v2340 = vadd.f32 0.0, %v2339
      %2341 = vmatmul.f32.gmra.mxu0 %v2299
      %v2342 = vpop.f32.mrf.mxu0
      %v2343 = vadd.f32 0.0, %v2342
      %2344 = vmatmul.f32.gmra.mxu0 %v2302
      %v2345 = vpop.f32.mrf.mxu0
      %v2346 = vadd.f32 0.0, %v2345
      %2347 = vmatmul.f32.gmra.mxu0 %v2305
      %v2348 = vpop.f32.mrf.mxu0
      %v2349 = vadd.f32 0.0, %v2348
      %2350 = vmatmul.f32.gmra.mxu0 %v2308
      %v2351 = vpop.f32.mrf.mxu0
      %v2352 = vadd.f32 0.0, %v2351
      %2353 = vmatmul.f32.gmra.mxu0 %v2311
      %v2354 = vpop.f32.mrf.mxu0
      %v2355 = vadd.f32 0.0, %v2354
      %2356 = vdwg.mxu0
      %v2357 = vadd.f32 %v1980, %v2334
      %v2358 = vadd.f32 %v1981, %v2337
      %v2359 = vadd.f32 %v1982, %v2340
      %v2360 = vadd.f32 %v1983, %v2343
      %v2361 = vadd.f32 %v1984, %v2346
      %v2362 = vadd.f32 %v1985, %v2349
      %v2363 = vadd.f32 %v1986, %v2352
      %v2364 = vadd.f32 %v1987, %v2355
      %s2365 = scalar_lea.vmem %s2, 256
      %v2366 = vld [vmem:[%s2365] sm:$0xff]
      %v2367 = vld [vmem:[%s2365 + $0x8] sm:$0xff]
      %v2368 = vld [vmem:[%s2365 + $0x10] sm:$0xff]
      %v2369 = vld [vmem:[%s2365 + $0x18] sm:$0xff]
      %v2370 = vld [vmem:[%s2365 + $0x20] sm:$0xff]
      %v2371 = vld [vmem:[%s2365 + $0x28] sm:$0xff]
      %v2372 = vld [vmem:[%s2365 + $0x30] sm:$0xff]
      %v2373 = vld [vmem:[%s2365 + $0x38] sm:$0xff]
      %2374 = vrot.lane.b32.xlu0 %v864, 112
      %v2375 = vpop.permute.xlu0 %2374
      %2376 = vrot.lane.b32.xlu0 %v865, 112
      %v2377 = vpop.permute.xlu0 %2376
      %2378 = vrot.lane.b32.xlu0 %v866, 112
      %v2379 = vpop.permute.xlu0 %2378
      %2380 = vrot.lane.b32.xlu0 %v867, 112
      %v2381 = vpop.permute.xlu0 %2380
      %2382 = vrot.lane.b32.xlu0 %v868, 112
      %v2383 = vpop.permute.xlu0 %2382
      %2384 = vrot.lane.b32.xlu0 %v869, 112
      %v2385 = vpop.permute.xlu0 %2384
      %2386 = vrot.lane.b32.xlu0 %v870, 112
      %v2387 = vpop.permute.xlu0 %2386
      %2388 = vrot.lane.b32.xlu0 %v871, 112
      %v2389 = vpop.permute.xlu0 %2388
      %2390 = vrot.lane.b32.xlu0 %v833, 88
      %v2391 = vpop.permute.xlu0 %2390
      %2392 = vrot.lane.b32.xlu0 %v836, 88
      %v2393 = vpop.permute.xlu0 %2392
      %2394 = vrot.lane.b32.xlu0 %v839, 88
      %v2395 = vpop.permute.xlu0 %2394
      %2396 = vrot.lane.b32.xlu0 %v842, 88
      %v2397 = vpop.permute.xlu0 %2396
      %2398 = vrot.lane.b32.xlu0 %v845, 88
      %v2399 = vpop.permute.xlu0 %2398
      %2400 = vrot.lane.b32.xlu0 %v848, 88
      %v2401 = vpop.permute.xlu0 %2400
      %2402 = vrot.lane.b32.xlu0 %v851, 88
      %v2403 = vpop.permute.xlu0 %2402
      %2404 = vrot.lane.b32.xlu0 %v854, 88
      %v2405 = vpop.permute.xlu0 %2404
      %v2406 = vsel %vm904, %v2375, 0
      %v2408 = vsel %vm904, %v2377, 0
      %v2410 = vsel %vm904, %v2379, 0
      %v2412 = vsel %vm904, %v2381, 0
      %v2414 = vsel %vm904, %v2383, 0
      %v2416 = vsel %vm904, %v2385, 0
      %v2418 = vsel %vm904, %v2387, 0
      %v2420 = vsel %vm904, %v2389, 0
      %v2422 = vsel %vm904, %v2391, 0
      %v2424 = vsel %vm904, %v2393, 0
      %v2426 = vsel %vm904, %v2395, 0
      %v2428 = vsel %vm904, %v2397, 0
      %v2430 = vsel %vm904, %v2399, 0
      %v2432 = vsel %vm904, %v2401, 0
      %v2434 = vsel %vm904, %v2403, 0
      %v2436 = vsel %vm904, %v2405, 0
      %2438 = vmatpush.xpose.msra.mxu0 0.0
      %2439 = vmatpush.xpose.msra.mxu0 0.0
      %2440 = vmatpush.xpose.msra.mxu0 0.0
      %2441 = vmatpush.xpose.msra.mxu0 0.0
      %2442 = vmatpush.xpose.msra.mxu0 0.0
      %2443 = vmatpush.xpose.msra.mxu0 0.0
      %2444 = vmatpush.xpose.msra.mxu0 0.0
      %2445 = vmatpush.xpose.msra.mxu0 0.0
      %2446 = vmatpush.xpose.msra.mxu0 %v2436
      %2447 = vmatpush.xpose.msra.mxu0 %v2434
      %2448 = vmatpush.xpose.msra.mxu0 %v2432
      %2449 = vmatpush.xpose.msra.mxu0 %v2430
      %2450 = vmatpush.xpose.msra.mxu0 %v2428
      %2451 = vmatpush.xpose.msra.mxu0 %v2426
      %2452 = vmatpush.xpose.msra.mxu0 %v2424
      %2453 = vmatpush.xpose.msra.mxu0 %v2422
      %2454 = vmatmul.f32.gmra.mxu0 %v2406
      %v2455 = vpop.f32.mrf.mxu0
      %v2456 = vadd.f32 %v2366, %v2455
      %2457 = vmatmul.f32.gmra.mxu0 %v2408
      %v2458 = vpop.f32.mrf.mxu0
      %v2459 = vadd.f32 %v2367, %v2458
      %2460 = vmatmul.f32.gmra.mxu0 %v2410
      %v2461 = vpop.f32.mrf.mxu0
      %v2462 = vadd.f32 %v2368, %v2461
      %2463 = vmatmul.f32.gmra.mxu0 %v2412
      %v2464 = vpop.f32.mrf.mxu0
      %v2465 = vadd.f32 %v2369, %v2464
      %2466 = vmatmul.f32.gmra.mxu0 %v2414
      %v2467 = vpop.f32.mrf.mxu0
      %v2468 = vadd.f32 %v2370, %v2467
      %2469 = vmatmul.f32.gmra.mxu0 %v2416
      %v2470 = vpop.f32.mrf.mxu0
      %v2471 = vadd.f32 %v2371, %v2470
      %2472 = vmatmul.f32.gmra.mxu0 %v2418
      %v2473 = vpop.f32.mrf.mxu0
      %v2474 = vadd.f32 %v2372, %v2473
      %2475 = vmatmul.f32.gmra.mxu0 %v2420
      %v2476 = vpop.f32.mrf.mxu0
      %v2477 = vadd.f32 %v2373, %v2476
      %2478 = vdwg.mxu0
      %v2479 = vadd.f32 %v2456, %v856
      %v2480 = vadd.f32 %v2459, %v857
      %v2481 = vadd.f32 %v2462, %v858
      %v2482 = vadd.f32 %v2465, %v859
      %v2483 = vadd.f32 %v2468, %v860
      %v2484 = vadd.f32 %v2471, %v861
      %v2485 = vadd.f32 %v2474, %v862
      %v2486 = vadd.f32 %v2477, %v863
      %v2487 = vsel %vm994, %v2479, -inf
      %2488 = vmax.xlane.f32.xlu0 %v2487
      %v2489 = vpop.xlane.xlu0 %2488
      %v2490 = vsel %vm994, %v2480, -inf
      %2491 = vmax.xlane.f32.xlu0 %v2490
      %v2492 = vpop.xlane.xlu0 %2491
      %v2493 = vsel %vm994, %v2481, -inf
      %2494 = vmax.xlane.f32.xlu0 %v2493
      %v2495 = vpop.xlane.xlu0 %2494
      %v2496 = vsel %vm994, %v2482, -inf
      %2497 = vmax.xlane.f32.xlu0 %v2496
      %v2498 = vpop.xlane.xlu0 %2497
      %v2499 = vsel %vm994, %v2483, -inf
      %2500 = vmax.xlane.f32.xlu0 %v2499
      %v2501 = vpop.xlane.xlu0 %2500
      %v2502 = vsel %vm994, %v2484, -inf
      %2503 = vmax.xlane.f32.xlu0 %v2502
      %v2504 = vpop.xlane.xlu0 %2503
      %v2505 = vsel %vm994, %v2485, -inf
      %2506 = vmax.xlane.f32.xlu0 %v2505
      %v2507 = vpop.xlane.xlu0 %2506
      %v2508 = vsel %vm994, %v2486, -inf
      %2509 = vmax.xlane.f32.xlu0 %v2508
      %v2510 = vpop.xlane.xlu0 %2509
      %v2511 = vsub.f32 %v2479, %v2489
      %v2512 = vsub.f32 %v2480, %v2492
      %v2513 = vsub.f32 %v2481, %v2495
      %v2514 = vsub.f32 %v2482, %v2498
      %v2515 = vsub.f32 %v2483, %v2501
      %v2516 = vsub.f32 %v2484, %v2504
      %v2517 = vsub.f32 %v2485, %v2507
      %v2518 = vsub.f32 %v2486, %v2510
      %v2519 = vmul.f32 %v2511, 1.442695
      %v2520 = vpow.pop %v2519
      %v2521 = vmul.f32 %v2512, 1.442695
      %v2522 = vpow.pop %v2521
      %v2523 = vmul.f32 %v2513, 1.442695
      %v2524 = vpow.pop %v2523
      %v2525 = vmul.f32 %v2514, 1.442695
      %v2526 = vpow.pop %v2525
      %v2527 = vmul.f32 %v2515, 1.442695
      %v2528 = vpow.pop %v2527
      %v2529 = vmul.f32 %v2516, 1.442695
      %v2530 = vpow.pop %v2529
      %v2531 = vmul.f32 %v2517, 1.442695
      %v2532 = vpow.pop %v2531
      %v2533 = vmul.f32 %v2518, 1.442695
      %v2534 = vpow.pop %v2533
      %v2535 = vsel %vm994, %v2520, 0.0
      %2536 = vadd.xlane.f32.xlu0 %v2535
      %v2537 = vpop.xlane.xlu0 %2536
      %v2538 = vsel %vm994, %v2522, 0.0
      %2539 = vadd.xlane.f32.xlu0 %v2538
      %v2540 = vpop.xlane.xlu0 %2539
      %v2541 = vsel %vm994, %v2524, 0.0
      %2542 = vadd.xlane.f32.xlu0 %v2541
      %v2543 = vpop.xlane.xlu0 %2542
      %v2544 = vsel %vm994, %v2526, 0.0
      %2545 = vadd.xlane.f32.xlu0 %v2544
      %v2546 = vpop.xlane.xlu0 %2545
      %v2547 = vsel %vm994, %v2528, 0.0
      %2548 = vadd.xlane.f32.xlu0 %v2547
      %v2549 = vpop.xlane.xlu0 %2548
      %v2550 = vsel %vm994, %v2530, 0.0
      %2551 = vadd.xlane.f32.xlu0 %v2550
      %v2552 = vpop.xlane.xlu0 %2551
      %v2553 = vsel %vm994, %v2532, 0.0
      %2554 = vadd.xlane.f32.xlu0 %v2553
      %v2555 = vpop.xlane.xlu0 %2554
      %v2556 = vsel %vm994, %v2534, 0.0
      %2557 = vadd.xlane.f32.xlu0 %v2556
      %v2558 = vpop.xlane.xlu0 %2557
      %v2559 = vrcp.pop %v2537
      %v2560 = vrcp.pop %v2540
      %v2561 = vrcp.pop %v2543
      %v2562 = vrcp.pop %v2546
      %v2563 = vrcp.pop %v2549
      %v2564 = vrcp.pop %v2552
      %v2565 = vrcp.pop %v2555
      %v2566 = vrcp.pop %v2558
      %v2567 = vmul.f32 %v2520, %v2559
      %v2568 = vmul.f32 %v2522, %v2560
      %v2569 = vmul.f32 %v2524, %v2561
      %v2570 = vmul.f32 %v2526, %v2562
      %v2571 = vmul.f32 %v2528, %v2563
      %v2572 = vmul.f32 %v2530, %v2564
      %v2573 = vmul.f32 %v2532, %v2565
      %v2574 = vmul.f32 %v2534, %v2566
      %2575 = vrot.lane.b32.xlu0 %v833, 64
      %v2576 = vpop.permute.xlu0 %2575
      %2577 = vrot.lane.b32.xlu0 %v836, 64
      %v2578 = vpop.permute.xlu0 %2577
      %2579 = vrot.lane.b32.xlu0 %v839, 64
      %v2580 = vpop.permute.xlu0 %2579
      %2581 = vrot.lane.b32.xlu0 %v842, 64
      %v2582 = vpop.permute.xlu0 %2581
      %2583 = vrot.lane.b32.xlu0 %v845, 64
      %v2584 = vpop.permute.xlu0 %2583
      %2585 = vrot.lane.b32.xlu0 %v848, 64
      %v2586 = vpop.permute.xlu0 %2585
      %2587 = vrot.lane.b32.xlu0 %v851, 64
      %v2588 = vpop.permute.xlu0 %2587
      %2589 = vrot.lane.b32.xlu0 %v854, 64
      %v2590 = vpop.permute.xlu0 %2589
      %v2600 = vsel %vm994, %v2567, 0
      %v2603 = vsel %vm994, %v2568, 0
      %v2606 = vsel %vm994, %v2569, 0
      %v2609 = vsel %vm994, %v2570, 0
      %v2612 = vsel %vm994, %v2571, 0
      %v2615 = vsel %vm994, %v2572, 0
      %v2618 = vsel %vm994, %v2573, 0
      %v2621 = vsel %vm994, %v2574, 0
      %2623 = vmatpush.msra.mxu0 0.0
      %2624 = vmatpush.msra.mxu0 0.0
      %2625 = vmatpush.msra.mxu0 0.0
      %2626 = vmatpush.msra.mxu0 0.0
      %2627 = vmatpush.msra.mxu0 0.0
      %2628 = vmatpush.msra.mxu0 0.0
      %2629 = vmatpush.msra.mxu0 0.0
      %2630 = vmatpush.msra.mxu0 0.0
      %2631 = vmatpush.msra.mxu0 %v2590
      %2632 = vmatpush.msra.mxu0 %v2588
      %2633 = vmatpush.msra.mxu0 %v2586
      %2634 = vmatpush.msra.mxu0 %v2584
      %2635 = vmatpush.msra.mxu0 %v2582
      %2636 = vmatpush.msra.mxu0 %v2580
      %2637 = vmatpush.msra.mxu0 %v2578
      %2638 = vmatpush.msra.mxu0 %v2576
      %2639 = vmatmul.f32.gmra.mxu0 %v2600
      %v2640 = vpop.f32.mrf.mxu0
      %v2641 = vadd.f32 0.0, %v2640
      %2642 = vmatmul.f32.gmra.mxu0 %v2603
      %v2643 = vpop.f32.mrf.mxu0
      %v2644 = vadd.f32 0.0, %v2643
      %2645 = vmatmul.f32.gmra.mxu0 %v2606
      %v2646 = vpop.f32.mrf.mxu0
      %v2647 = vadd.f32 0.0, %v2646
      %2648 = vmatmul.f32.gmra.mxu0 %v2609
      %v2649 = vpop.f32.mrf.mxu0
      %v2650 = vadd.f32 0.0, %v2649
      %2651 = vmatmul.f32.gmra.mxu0 %v2612
      %v2652 = vpop.f32.mrf.mxu0
      %v2653 = vadd.f32 0.0, %v2652
      %2654 = vmatmul.f32.gmra.mxu0 %v2615
      %v2655 = vpop.f32.mrf.mxu0
      %v2656 = vadd.f32 0.0, %v2655
      %2657 = vmatmul.f32.gmra.mxu0 %v2618
      %v2658 = vpop.f32.mrf.mxu0
      %v2659 = vadd.f32 0.0, %v2658
      %2660 = vmatmul.f32.gmra.mxu0 %v2621
      %v2661 = vpop.f32.mrf.mxu0
      %v2662 = vadd.f32 0.0, %v2661
      %2663 = vdwg.mxu0
      %s2664 = scalar_lea.vmem %s6, 16
      %v2665 = vld [vmem:[%s2664] sm:$0xf]
      %v2667 = vsel %vm904, %v2641, 0
      %v2670 = vsel %vm904, %v2644, 0
      %v2673 = vsel %vm904, %v2647, 0
      %v2676 = vsel %vm904, %v2650, 0
      %v2679 = vsel %vm904, %v2653, 0
      %v2682 = vsel %vm904, %v2656, 0
      %v2685 = vsel %vm904, %v2659, 0
      %v2688 = vsel %vm904, %v2662, 0
      %v2691 = vsel %vm1498, %v2665, 0
      %2693 = vmatpush.msra.mxu0 0.0
      %2694 = vmatpush.msra.mxu0 0.0
      %2695 = vmatpush.msra.mxu0 0.0
      %2696 = vmatpush.msra.mxu0 0.0
      %2697 = vmatpush.msra.mxu0 0.0
      %2698 = vmatpush.msra.mxu0 0.0
      %2699 = vmatpush.msra.mxu0 0.0
      %2700 = vmatpush.msra.mxu0 0.0
      %2701 = vmatpush.msra.mxu0 0.0
      %2702 = vmatpush.msra.mxu0 0.0
      %2703 = vmatpush.msra.mxu0 0.0
      %2704 = vmatpush.msra.mxu0 0.0
      %2705 = vmatpush.msra.mxu0 0.0
      %2706 = vmatpush.msra.mxu0 0.0
      %2707 = vmatpush.msra.mxu0 0.0
      %2708 = vmatpush.msra.mxu0 %v2691
      %2709 = vmatmul.f32.gmra.mxu0 %v2667
      %v2710 = vpop.f32.mrf.mxu0
      %v2711 = vadd.f32 0.0, %v2710
      %2712 = vmatmul.f32.gmra.mxu0 %v2670
      %v2713 = vpop.f32.mrf.mxu0
      %v2714 = vadd.f32 0.0, %v2713
      %2715 = vmatmul.f32.gmra.mxu0 %v2673
      %v2716 = vpop.f32.mrf.mxu0
      %v2717 = vadd.f32 0.0, %v2716
      %2718 = vmatmul.f32.gmra.mxu0 %v2676
      %v2719 = vpop.f32.mrf.mxu0
      %v2720 = vadd.f32 0.0, %v2719
      %2721 = vmatmul.f32.gmra.mxu0 %v2679
      %v2722 = vpop.f32.mrf.mxu0
      %v2723 = vadd.f32 0.0, %v2722
      %2724 = vmatmul.f32.gmra.mxu0 %v2682
      %v2725 = vpop.f32.mrf.mxu0
      %v2726 = vadd.f32 0.0, %v2725
      %2727 = vmatmul.f32.gmra.mxu0 %v2685
      %v2728 = vpop.f32.mrf.mxu0
      %v2729 = vadd.f32 0.0, %v2728
      %2730 = vmatmul.f32.gmra.mxu0 %v2688
      %v2731 = vpop.f32.mrf.mxu0
      %v2732 = vadd.f32 0.0, %v2731
      %2733 = vdwg.mxu0
      %v2734 = vadd.f32 %v2357, %v2711
      %v2735 = vadd.f32 %v2358, %v2714
      %v2736 = vadd.f32 %v2359, %v2717
      %v2737 = vadd.f32 %v2360, %v2720
      %v2738 = vadd.f32 %v2361, %v2723
      %v2739 = vadd.f32 %v2362, %v2726
      %v2740 = vadd.f32 %v2363, %v2729
      %v2741 = vadd.f32 %v2364, %v2732
      %s2742 = scalar_lea.vmem %s2, 320
      %v2743 = vld [vmem:[%s2742] sm:$0xff]
      %v2744 = vld [vmem:[%s2742 + $0x8] sm:$0xff]
      %v2745 = vld [vmem:[%s2742 + $0x10] sm:$0xff]
      %v2746 = vld [vmem:[%s2742 + $0x18] sm:$0xff]
      %v2747 = vld [vmem:[%s2742 + $0x20] sm:$0xff]
      %v2748 = vld [vmem:[%s2742 + $0x28] sm:$0xff]
      %v2749 = vld [vmem:[%s2742 + $0x30] sm:$0xff]
      %v2750 = vld [vmem:[%s2742 + $0x38] sm:$0xff]
      %2751 = vrot.lane.b32.xlu0 %v864, 108
      %v2752 = vpop.permute.xlu0 %2751
      %2753 = vrot.lane.b32.xlu0 %v865, 108
      %v2754 = vpop.permute.xlu0 %2753
      %2755 = vrot.lane.b32.xlu0 %v866, 108
      %v2756 = vpop.permute.xlu0 %2755
      %2757 = vrot.lane.b32.xlu0 %v867, 108
      %v2758 = vpop.permute.xlu0 %2757
      %2759 = vrot.lane.b32.xlu0 %v868, 108
      %v2760 = vpop.permute.xlu0 %2759
      %2761 = vrot.lane.b32.xlu0 %v869, 108
      %v2762 = vpop.permute.xlu0 %2761
      %2763 = vrot.lane.b32.xlu0 %v870, 108
      %v2764 = vpop.permute.xlu0 %2763
      %2765 = vrot.lane.b32.xlu0 %v871, 108
      %v2766 = vpop.permute.xlu0 %2765
      %2767 = vrot.lane.b32.xlu0 %v833, 84
      %v2768 = vpop.permute.xlu0 %2767
      %2769 = vrot.lane.b32.xlu0 %v836, 84
      %v2770 = vpop.permute.xlu0 %2769
      %2771 = vrot.lane.b32.xlu0 %v839, 84
      %v2772 = vpop.permute.xlu0 %2771
      %2773 = vrot.lane.b32.xlu0 %v842, 84
      %v2774 = vpop.permute.xlu0 %2773
      %2775 = vrot.lane.b32.xlu0 %v845, 84
      %v2776 = vpop.permute.xlu0 %2775
      %2777 = vrot.lane.b32.xlu0 %v848, 84
      %v2778 = vpop.permute.xlu0 %2777
      %2779 = vrot.lane.b32.xlu0 %v851, 84
      %v2780 = vpop.permute.xlu0 %2779
      %2781 = vrot.lane.b32.xlu0 %v854, 84
      %v2782 = vpop.permute.xlu0 %2781
      %v2783 = vsel %vm904, %v2752, 0
      %v2785 = vsel %vm904, %v2754, 0
      %v2787 = vsel %vm904, %v2756, 0
      %v2789 = vsel %vm904, %v2758, 0
      %v2791 = vsel %vm904, %v2760, 0
      %v2793 = vsel %vm904, %v2762, 0
      %v2795 = vsel %vm904, %v2764, 0
      %v2797 = vsel %vm904, %v2766, 0
      %v2799 = vsel %vm904, %v2768, 0
      %v2801 = vsel %vm904, %v2770, 0
      %v2803 = vsel %vm904, %v2772, 0
      %v2805 = vsel %vm904, %v2774, 0
      %v2807 = vsel %vm904, %v2776, 0
      %v2809 = vsel %vm904, %v2778, 0
      %v2811 = vsel %vm904, %v2780, 0
      %v2813 = vsel %vm904, %v2782, 0
      %2815 = vmatpush.xpose.msra.mxu0 0.0
      %2816 = vmatpush.xpose.msra.mxu0 0.0
      %2817 = vmatpush.xpose.msra.mxu0 0.0
      %2818 = vmatpush.xpose.msra.mxu0 0.0
      %2819 = vmatpush.xpose.msra.mxu0 0.0
      %2820 = vmatpush.xpose.msra.mxu0 0.0
      %2821 = vmatpush.xpose.msra.mxu0 0.0
      %2822 = vmatpush.xpose.msra.mxu0 0.0
      %2823 = vmatpush.xpose.msra.mxu0 %v2813
      %2824 = vmatpush.xpose.msra.mxu0 %v2811
      %2825 = vmatpush.xpose.msra.mxu0 %v2809
      %2826 = vmatpush.xpose.msra.mxu0 %v2807
      %2827 = vmatpush.xpose.msra.mxu0 %v2805
      %2828 = vmatpush.xpose.msra.mxu0 %v2803
      %2829 = vmatpush.xpose.msra.mxu0 %v2801
      %2830 = vmatpush.xpose.msra.mxu0 %v2799
      %2831 = vmatmul.f32.gmra.mxu0 %v2783
      %v2832 = vpop.f32.mrf.mxu0
      %v2833 = vadd.f32 %v2743, %v2832
      %2834 = vmatmul.f32.gmra.mxu0 %v2785
      %v2835 = vpop.f32.mrf.mxu0
      %v2836 = vadd.f32 %v2744, %v2835
      %2837 = vmatmul.f32.gmra.mxu0 %v2787
      %v2838 = vpop.f32.mrf.mxu0
      %v2839 = vadd.f32 %v2745, %v2838
      %2840 = vmatmul.f32.gmra.mxu0 %v2789
      %v2841 = vpop.f32.mrf.mxu0
      %v2842 = vadd.f32 %v2746, %v2841
      %2843 = vmatmul.f32.gmra.mxu0 %v2791
      %v2844 = vpop.f32.mrf.mxu0
      %v2845 = vadd.f32 %v2747, %v2844
      %2846 = vmatmul.f32.gmra.mxu0 %v2793
      %v2847 = vpop.f32.mrf.mxu0
      %v2848 = vadd.f32 %v2748, %v2847
      %2849 = vmatmul.f32.gmra.mxu0 %v2795
      %v2850 = vpop.f32.mrf.mxu0
      %v2851 = vadd.f32 %v2749, %v2850
      %2852 = vmatmul.f32.gmra.mxu0 %v2797
      %v2853 = vpop.f32.mrf.mxu0
      %v2854 = vadd.f32 %v2750, %v2853
      %2855 = vdwg.mxu0
      %v2856 = vadd.f32 %v2833, %v856
      %v2857 = vadd.f32 %v2836, %v857
      %v2858 = vadd.f32 %v2839, %v858
      %v2859 = vadd.f32 %v2842, %v859
      %v2860 = vadd.f32 %v2845, %v860
      %v2861 = vadd.f32 %v2848, %v861
      %v2862 = vadd.f32 %v2851, %v862
      %v2863 = vadd.f32 %v2854, %v863
      %v2864 = vsel %vm994, %v2856, -inf
      %2865 = vmax.xlane.f32.xlu0 %v2864
      %v2866 = vpop.xlane.xlu0 %2865
      %v2867 = vsel %vm994, %v2857, -inf
      %2868 = vmax.xlane.f32.xlu0 %v2867
      %v2869 = vpop.xlane.xlu0 %2868
      %v2870 = vsel %vm994, %v2858, -inf
      %2871 = vmax.xlane.f32.xlu0 %v2870
      %v2872 = vpop.xlane.xlu0 %2871
      %v2873 = vsel %vm994, %v2859, -inf
      %2874 = vmax.xlane.f32.xlu0 %v2873
      %v2875 = vpop.xlane.xlu0 %2874
      %v2876 = vsel %vm994, %v2860, -inf
      %2877 = vmax.xlane.f32.xlu0 %v2876
      %v2878 = vpop.xlane.xlu0 %2877
      %v2879 = vsel %vm994, %v2861, -inf
      %2880 = vmax.xlane.f32.xlu0 %v2879
      %v2881 = vpop.xlane.xlu0 %2880
      %v2882 = vsel %vm994, %v2862, -inf
      %2883 = vmax.xlane.f32.xlu0 %v2882
      %v2884 = vpop.xlane.xlu0 %2883
      %v2885 = vsel %vm994, %v2863, -inf
      %2886 = vmax.xlane.f32.xlu0 %v2885
      %v2887 = vpop.xlane.xlu0 %2886
      %v2888 = vsub.f32 %v2856, %v2866
      %v2889 = vsub.f32 %v2857, %v2869
      %v2890 = vsub.f32 %v2858, %v2872
      %v2891 = vsub.f32 %v2859, %v2875
      %v2892 = vsub.f32 %v2860, %v2878
      %v2893 = vsub.f32 %v2861, %v2881
      %v2894 = vsub.f32 %v2862, %v2884
      %v2895 = vsub.f32 %v2863, %v2887
      %v2896 = vmul.f32 %v2888, 1.442695
      %v2897 = vpow.pop %v2896
      %v2898 = vmul.f32 %v2889, 1.442695
      %v2899 = vpow.pop %v2898
      %v2900 = vmul.f32 %v2890, 1.442695
      %v2901 = vpow.pop %v2900
      %v2902 = vmul.f32 %v2891, 1.442695
      %v2903 = vpow.pop %v2902
      %v2904 = vmul.f32 %v2892, 1.442695
      %v2905 = vpow.pop %v2904
      %v2906 = vmul.f32 %v2893, 1.442695
      %v2907 = vpow.pop %v2906
      %v2908 = vmul.f32 %v2894, 1.442695
      %v2909 = vpow.pop %v2908
      %v2910 = vmul.f32 %v2895, 1.442695
      %v2911 = vpow.pop %v2910
      %v2912 = vsel %vm994, %v2897, 0.0
      %2913 = vadd.xlane.f32.xlu0 %v2912
      %v2914 = vpop.xlane.xlu0 %2913
      %v2915 = vsel %vm994, %v2899, 0.0
      %2916 = vadd.xlane.f32.xlu0 %v2915
      %v2917 = vpop.xlane.xlu0 %2916
      %v2918 = vsel %vm994, %v2901, 0.0
      %2919 = vadd.xlane.f32.xlu0 %v2918
      %v2920 = vpop.xlane.xlu0 %2919
      %v2921 = vsel %vm994, %v2903, 0.0
      %2922 = vadd.xlane.f32.xlu0 %v2921
      %v2923 = vpop.xlane.xlu0 %2922
      %v2924 = vsel %vm994, %v2905, 0.0
      %2925 = vadd.xlane.f32.xlu0 %v2924
      %v2926 = vpop.xlane.xlu0 %2925
      %v2927 = vsel %vm994, %v2907, 0.0
      %2928 = vadd.xlane.f32.xlu0 %v2927
      %v2929 = vpop.xlane.xlu0 %2928
      %v2930 = vsel %vm994, %v2909, 0.0
      %2931 = vadd.xlane.f32.xlu0 %v2930
      %v2932 = vpop.xlane.xlu0 %2931
      %v2933 = vsel %vm994, %v2911, 0.0
      %2934 = vadd.xlane.f32.xlu0 %v2933
      %v2935 = vpop.xlane.xlu0 %2934
      %v2936 = vrcp.pop %v2914
      %v2937 = vrcp.pop %v2917
      %v2938 = vrcp.pop %v2920
      %v2939 = vrcp.pop %v2923
      %v2940 = vrcp.pop %v2926
      %v2941 = vrcp.pop %v2929
      %v2942 = vrcp.pop %v2932
      %v2943 = vrcp.pop %v2935
      %v2944 = vmul.f32 %v2897, %v2936
      %v2945 = vmul.f32 %v2899, %v2937
      %v2946 = vmul.f32 %v2901, %v2938
      %v2947 = vmul.f32 %v2903, %v2939
      %v2948 = vmul.f32 %v2905, %v2940
      %v2949 = vmul.f32 %v2907, %v2941
      %v2950 = vmul.f32 %v2909, %v2942
      %v2951 = vmul.f32 %v2911, %v2943
      %2952 = vrot.lane.b32.xlu0 %v833, 60
      %v2953 = vpop.permute.xlu0 %2952
      %2954 = vrot.lane.b32.xlu0 %v836, 60
      %v2955 = vpop.permute.xlu0 %2954
      %2956 = vrot.lane.b32.xlu0 %v839, 60
      %v2957 = vpop.permute.xlu0 %2956
      %2958 = vrot.lane.b32.xlu0 %v842, 60
      %v2959 = vpop.permute.xlu0 %2958
      %2960 = vrot.lane.b32.xlu0 %v845, 60
      %v2961 = vpop.permute.xlu0 %2960
      %2962 = vrot.lane.b32.xlu0 %v848, 60
      %v2963 = vpop.permute.xlu0 %2962
      %2964 = vrot.lane.b32.xlu0 %v851, 60
      %v2965 = vpop.permute.xlu0 %2964
      %2966 = vrot.lane.b32.xlu0 %v854, 60
      %v2967 = vpop.permute.xlu0 %2966
      %v2977 = vsel %vm994, %v2944, 0
      %v2980 = vsel %vm994, %v2945, 0
      %v2983 = vsel %vm994, %v2946, 0
      %v2986 = vsel %vm994, %v2947, 0
      %v2989 = vsel %vm994, %v2948, 0
      %v2992 = vsel %vm994, %v2949, 0
      %v2995 = vsel %vm994, %v2950, 0
      %v2998 = vsel %vm994, %v2951, 0
      %3000 = vmatpush.msra.mxu0 0.0
      %3001 = vmatpush.msra.mxu0 0.0
      %3002 = vmatpush.msra.mxu0 0.0
      %3003 = vmatpush.msra.mxu0 0.0
      %3004 = vmatpush.msra.mxu0 0.0
      %3005 = vmatpush.msra.mxu0 0.0
      %3006 = vmatpush.msra.mxu0 0.0
      %3007 = vmatpush.msra.mxu0 0.0
      %3008 = vmatpush.msra.mxu0 %v2967
      %3009 = vmatpush.msra.mxu0 %v2965
      %3010 = vmatpush.msra.mxu0 %v2963
      %3011 = vmatpush.msra.mxu0 %v2961
      %3012 = vmatpush.msra.mxu0 %v2959
      %3013 = vmatpush.msra.mxu0 %v2957
      %3014 = vmatpush.msra.mxu0 %v2955
      %3015 = vmatpush.msra.mxu0 %v2953
      %3016 = vmatmul.f32.gmra.mxu0 %v2977
      %v3017 = vpop.f32.mrf.mxu0
      %v3018 = vadd.f32 0.0, %v3017
      %3019 = vmatmul.f32.gmra.mxu0 %v2980
      %v3020 = vpop.f32.mrf.mxu0
      %v3021 = vadd.f32 0.0, %v3020
      %3022 = vmatmul.f32.gmra.mxu0 %v2983
      %v3023 = vpop.f32.mrf.mxu0
      %v3024 = vadd.f32 0.0, %v3023
      %3025 = vmatmul.f32.gmra.mxu0 %v2986
      %v3026 = vpop.f32.mrf.mxu0
      %v3027 = vadd.f32 0.0, %v3026
      %3028 = vmatmul.f32.gmra.mxu0 %v2989
      %v3029 = vpop.f32.mrf.mxu0
      %v3030 = vadd.f32 0.0, %v3029
      %3031 = vmatmul.f32.gmra.mxu0 %v2992
      %v3032 = vpop.f32.mrf.mxu0
      %v3033 = vadd.f32 0.0, %v3032
      %3034 = vmatmul.f32.gmra.mxu0 %v2995
      %v3035 = vpop.f32.mrf.mxu0
      %v3036 = vadd.f32 0.0, %v3035
      %3037 = vmatmul.f32.gmra.mxu0 %v2998
      %v3038 = vpop.f32.mrf.mxu0
      %v3039 = vadd.f32 0.0, %v3038
      %3040 = vdwg.mxu0
      %s3041 = scalar_lea.vmem %s6, 20
      %v3042 = vld [vmem:[%s3041] sm:$0xf]
      %v3044 = vsel %vm904, %v3018, 0
      %v3047 = vsel %vm904, %v3021, 0
      %v3050 = vsel %vm904, %v3024, 0
      %v3053 = vsel %vm904, %v3027, 0
      %v3056 = vsel %vm904, %v3030, 0
      %v3059 = vsel %vm904, %v3033, 0
      %v3062 = vsel %vm904, %v3036, 0
      %v3065 = vsel %vm904, %v3039, 0
      %v3068 = vsel %vm1498, %v3042, 0
      %3070 = vmatpush.msra.mxu0 0.0
      %3071 = vmatpush.msra.mxu0 0.0
      %3072 = vmatpush.msra.mxu0 0.0
      %3073 = vmatpush.msra.mxu0 0.0
      %3074 = vmatpush.msra.mxu0 0.0
      %3075 = vmatpush.msra.mxu0 0.0
      %3076 = vmatpush.msra.mxu0 0.0
      %3077 = vmatpush.msra.mxu0 0.0
      %3078 = vmatpush.msra.mxu0 0.0
      %3079 = vmatpush.msra.mxu0 0.0
      %3080 = vmatpush.msra.mxu0 0.0
      %3081 = vmatpush.msra.mxu0 0.0
      %3082 = vmatpush.msra.mxu0 0.0
      %3083 = vmatpush.msra.mxu0 0.0
      %3084 = vmatpush.msra.mxu0 0.0
      %3085 = vmatpush.msra.mxu0 %v3068
      %3086 = vmatmul.f32.gmra.mxu0 %v3044
      %v3087 = vpop.f32.mrf.mxu0
      %v3088 = vadd.f32 0.0, %v3087
      %3089 = vmatmul.f32.gmra.mxu0 %v3047
      %v3090 = vpop.f32.mrf.mxu0
      %v3091 = vadd.f32 0.0, %v3090
      %3092 = vmatmul.f32.gmra.mxu0 %v3050
      %v3093 = vpop.f32.mrf.mxu0
      %v3094 = vadd.f32 0.0, %v3093
      %3095 = vmatmul.f32.gmra.mxu0 %v3053
      %v3096 = vpop.f32.mrf.mxu0
      %v3097 = vadd.f32 0.0, %v3096
      %3098 = vmatmul.f32.gmra.mxu0 %v3056
      %v3099 = vpop.f32.mrf.mxu0
      %v3100 = vadd.f32 0.0, %v3099
      %3101 = vmatmul.f32.gmra.mxu0 %v3059
      %v3102 = vpop.f32.mrf.mxu0
      %v3103 = vadd.f32 0.0, %v3102
      %3104 = vmatmul.f32.gmra.mxu0 %v3062
      %v3105 = vpop.f32.mrf.mxu0
      %v3106 = vadd.f32 0.0, %v3105
      %3107 = vmatmul.f32.gmra.mxu0 %v3065
      %v3108 = vpop.f32.mrf.mxu0
      %v3109 = vadd.f32 0.0, %v3108
      %3110 = vdwg.mxu0
      %v3111 = vadd.f32 %v2734, %v3088
      %v3112 = vadd.f32 %v2735, %v3091
      %v3113 = vadd.f32 %v2736, %v3094
      %v3114 = vadd.f32 %v2737, %v3097
      %v3115 = vadd.f32 %v2738, %v3100
      %v3116 = vadd.f32 %v2739, %v3103
      %v3117 = vadd.f32 %v2740, %v3106
      %v3118 = vadd.f32 %v2741, %v3109
      %v3119 = vld [vmem:[%s7] sm:$0x1]
      %v3121 = vperm.slane %v3119, 0
      %v3123 = vadd.f32 %v3111, %v3121
      %v3124 = vadd.f32 %v3112, %v3121
      %v3125 = vadd.f32 %v3113, %v3121
      %v3126 = vadd.f32 %v3114, %v3121
      %v3127 = vadd.f32 %v3115, %v3121
      %v3128 = vadd.f32 %v3116, %v3121
      %v3129 = vadd.f32 %v3117, %v3121
      %v3130 = vadd.f32 %v3118, %v3121
      %v3131 = vadd.f32 %v3123, %v572
      %v3132 = vadd.f32 %v3124, %v573
      %v3133 = vadd.f32 %v3125, %v574
      %v3134 = vadd.f32 %v3126, %v575
      %v3135 = vadd.f32 %v3127, %v576
      %v3136 = vadd.f32 %v3128, %v577
      %v3137 = vadd.f32 %v3129, %v578
      %v3138 = vadd.f32 %v3130, %v579
      %v3139 = vsel %vm580, %v3131, 0.0
      %3140 = vadd.xlane.f32.xlu0 %v3139
      %v3141 = vpop.xlane.xlu0 %3140
      %v3142 = vsel %vm580, %v3132, 0.0
      %3143 = vadd.xlane.f32.xlu0 %v3142
      %v3144 = vpop.xlane.xlu0 %3143
      %v3145 = vsel %vm580, %v3133, 0.0
      %3146 = vadd.xlane.f32.xlu0 %v3145
      %v3147 = vpop.xlane.xlu0 %3146
      %v3148 = vsel %vm580, %v3134, 0.0
      %3149 = vadd.xlane.f32.xlu0 %v3148
      %v3150 = vpop.xlane.xlu0 %3149
      %v3151 = vsel %vm580, %v3135, 0.0
      %3152 = vadd.xlane.f32.xlu0 %v3151
      %v3153 = vpop.xlane.xlu0 %3152
      %v3154 = vsel %vm580, %v3136, 0.0
      %3155 = vadd.xlane.f32.xlu0 %v3154
      %v3156 = vpop.xlane.xlu0 %3155
      %v3157 = vsel %vm580, %v3137, 0.0
      %3158 = vadd.xlane.f32.xlu0 %v3157
      %v3159 = vpop.xlane.xlu0 %3158
      %v3160 = vsel %vm580, %v3138, 0.0
      %3161 = vadd.xlane.f32.xlu0 %v3160
      %v3162 = vpop.xlane.xlu0 %3161
      %v3163 = vmul.f32 %v3141, %v611
      %v3164 = vmul.f32 %v3144, %v611
      %v3165 = vmul.f32 %v3147, %v611
      %v3166 = vmul.f32 %v3150, %v611
      %v3167 = vmul.f32 %v3153, %v611
      %v3168 = vmul.f32 %v3156, %v611
      %v3169 = vmul.f32 %v3159, %v611
      %v3170 = vmul.f32 %v3162, %v611
      %v3171 = vsub.f32 %v3131, %v3163
      %v3172 = vsub.f32 %v3132, %v3164
      %v3173 = vsub.f32 %v3133, %v3165
      %v3174 = vsub.f32 %v3134, %v3166
      %v3175 = vsub.f32 %v3135, %v3167
      %v3176 = vsub.f32 %v3136, %v3168
      %v3177 = vsub.f32 %v3137, %v3169
      %v3178 = vsub.f32 %v3138, %v3170
      %v3179 = vmul.f32 %v3171, %v3171
      %v3180 = vmul.f32 %v3172, %v3172
      %v3181 = vmul.f32 %v3173, %v3173
      %v3182 = vmul.f32 %v3174, %v3174
      %v3183 = vmul.f32 %v3175, %v3175
      %v3184 = vmul.f32 %v3176, %v3176
      %v3185 = vmul.f32 %v3177, %v3177
      %v3186 = vmul.f32 %v3178, %v3178
      %v3187 = vsel %vm580, %v3179, 0.0
      %3188 = vadd.xlane.f32.xlu0 %v3187
      %v3189 = vpop.xlane.xlu0 %3188
      %v3190 = vsel %vm580, %v3180, 0.0
      %3191 = vadd.xlane.f32.xlu0 %v3190
      %v3192 = vpop.xlane.xlu0 %3191
      %v3193 = vsel %vm580, %v3181, 0.0
      %3194 = vadd.xlane.f32.xlu0 %v3193
      %v3195 = vpop.xlane.xlu0 %3194
      %v3196 = vsel %vm580, %v3182, 0.0
      %3197 = vadd.xlane.f32.xlu0 %v3196
      %v3198 = vpop.xlane.xlu0 %3197
      %v3199 = vsel %vm580, %v3183, 0.0
      %3200 = vadd.xlane.f32.xlu0 %v3199
      %v3201 = vpop.xlane.xlu0 %3200
      %v3202 = vsel %vm580, %v3184, 0.0
      %3203 = vadd.xlane.f32.xlu0 %v3202
      %v3204 = vpop.xlane.xlu0 %3203
      %v3205 = vsel %vm580, %v3185, 0.0
      %3206 = vadd.xlane.f32.xlu0 %v3205
      %v3207 = vpop.xlane.xlu0 %3206
      %v3208 = vsel %vm580, %v3186, 0.0
      %3209 = vadd.xlane.f32.xlu0 %v3208
      %v3210 = vpop.xlane.xlu0 %3209
      %v3211 = vmul.f32 %v3189, %v611
      %v3212 = vmul.f32 %v3192, %v611
      %v3213 = vmul.f32 %v3195, %v611
      %v3214 = vmul.f32 %v3198, %v611
      %v3215 = vmul.f32 %v3201, %v611
      %v3216 = vmul.f32 %v3204, %v611
      %v3217 = vmul.f32 %v3207, %v611
      %v3218 = vmul.f32 %v3210, %v611
      %v3219 = vadd.f32 %v3211, 1e-05
      %v3220 = vadd.f32 %v3212, 1e-05
      %v3221 = vadd.f32 %v3213, 1e-05
      %v3222 = vadd.f32 %v3214, 1e-05
      %v3223 = vadd.f32 %v3215, 1e-05
      %v3224 = vadd.f32 %v3216, 1e-05
      %v3225 = vadd.f32 %v3217, 1e-05
      %v3226 = vadd.f32 %v3218, 1e-05
      %v3227 = vrsqrt.pop %v3219
      %v3228 = vmul.f32 %v3227, %v3219
      %v3229 = vmul.f32 %v3228, %v3227
      %v3230 = vmul.f32 0.5, %v3229
      %v3231 = vsub.f32 1.5, %v3230
      %v3232 = vmul.f32 %v3227, %v3231
      %vm3233 = vweird.f32 %v3219
      %vm3234 = vweird.f32 %v3227
      %vm3235 = vmor %vm3233, %vm3234
      %v3236 = vsel %vm3235, %v3227, %v3232
      %v3237 = vrsqrt.pop %v3220
      %v3238 = vmul.f32 %v3237, %v3220
      %v3239 = vmul.f32 %v3238, %v3237
      %v3240 = vmul.f32 0.5, %v3239
      %v3241 = vsub.f32 1.5, %v3240
      %v3242 = vmul.f32 %v3237, %v3241
      %vm3243 = vweird.f32 %v3220
      %vm3244 = vweird.f32 %v3237
      %vm3245 = vmor %vm3243, %vm3244
      %v3246 = vsel %vm3245, %v3237, %v3242
      %v3247 = vrsqrt.pop %v3221
      %v3248 = vmul.f32 %v3247, %v3221
      %v3249 = vmul.f32 %v3248, %v3247
      %v3250 = vmul.f32 0.5, %v3249
      %v3251 = vsub.f32 1.5, %v3250
      %v3252 = vmul.f32 %v3247, %v3251
      %vm3253 = vweird.f32 %v3221
      %vm3254 = vweird.f32 %v3247
      %vm3255 = vmor %vm3253, %vm3254
      %v3256 = vsel %vm3255, %v3247, %v3252
      %v3257 = vrsqrt.pop %v3222
      %v3258 = vmul.f32 %v3257, %v3222
      %v3259 = vmul.f32 %v3258, %v3257
      %v3260 = vmul.f32 0.5, %v3259
      %v3261 = vsub.f32 1.5, %v3260
      %v3262 = vmul.f32 %v3257, %v3261
      %vm3263 = vweird.f32 %v3222
      %vm3264 = vweird.f32 %v3257
      %vm3265 = vmor %vm3263, %vm3264
      %v3266 = vsel %vm3265, %v3257, %v3262
      %v3267 = vrsqrt.pop %v3223
      %v3268 = vmul.f32 %v3267, %v3223
      %v3269 = vmul.f32 %v3268, %v3267
      %v3270 = vmul.f32 0.5, %v3269
      %v3271 = vsub.f32 1.5, %v3270
      %v3272 = vmul.f32 %v3267, %v3271
      %vm3273 = vweird.f32 %v3223
      %vm3274 = vweird.f32 %v3267
      %vm3275 = vmor %vm3273, %vm3274
      %v3276 = vsel %vm3275, %v3267, %v3272
      %v3277 = vrsqrt.pop %v3224
      %v3278 = vmul.f32 %v3277, %v3224
      %v3279 = vmul.f32 %v3278, %v3277
      %v3280 = vmul.f32 0.5, %v3279
      %v3281 = vsub.f32 1.5, %v3280
      %v3282 = vmul.f32 %v3277, %v3281
      %vm3283 = vweird.f32 %v3224
      %vm3284 = vweird.f32 %v3277
      %vm3285 = vmor %vm3283, %vm3284
      %v3286 = vsel %vm3285, %v3277, %v3282
      %v3287 = vrsqrt.pop %v3225
      %v3288 = vmul.f32 %v3287, %v3225
      %v3289 = vmul.f32 %v3288, %v3287
      %v3290 = vmul.f32 0.5, %v3289
      %v3291 = vsub.f32 1.5, %v3290
      %v3292 = vmul.f32 %v3287, %v3291
      %vm3293 = vweird.f32 %v3225
      %vm3294 = vweird.f32 %v3287
      %vm3295 = vmor %vm3293, %vm3294
      %v3296 = vsel %vm3295, %v3287, %v3292
      %v3297 = vrsqrt.pop %v3226
      %v3298 = vmul.f32 %v3297, %v3226
      %v3299 = vmul.f32 %v3298, %v3297
      %v3300 = vmul.f32 0.5, %v3299
      %v3301 = vsub.f32 1.5, %v3300
      %v3302 = vmul.f32 %v3297, %v3301
      %vm3303 = vweird.f32 %v3226
      %vm3304 = vweird.f32 %v3297
      %vm3305 = vmor %vm3303, %vm3304
      %v3306 = vsel %vm3305, %v3297, %v3302
      %v3307 = vmul.f32 %v3171, %v3236
      %v3308 = vmul.f32 %v3172, %v3246
      %v3309 = vmul.f32 %v3173, %v3256
      %v3310 = vmul.f32 %v3174, %v3266
      %v3311 = vmul.f32 %v3175, %v3276
      %v3312 = vmul.f32 %v3176, %v3286
      %v3313 = vmul.f32 %v3177, %v3296
      %v3314 = vmul.f32 %v3178, %v3306
      %v3315 = vld [vmem:[%s8] sm:$0x1]
      %v3317 = vperm.slane %v3315, 0
      %v3319 = vmul.f32 %v3307, %v3317
      %v3320 = vmul.f32 %v3308, %v3317
      %v3321 = vmul.f32 %v3309, %v3317
      %v3322 = vmul.f32 %v3310, %v3317
      %v3323 = vmul.f32 %v3311, %v3317
      %v3324 = vmul.f32 %v3312, %v3317
      %v3325 = vmul.f32 %v3313, %v3317
      %v3326 = vmul.f32 %v3314, %v3317
      %v3327 = vld [vmem:[%s9] sm:$0x1]
      %v3329 = vperm.slane %v3327, 0
      %v3331 = vadd.f32 %v3319, %v3329
      %v3332 = vadd.f32 %v3320, %v3329
      %v3333 = vadd.f32 %v3321, %v3329
      %v3334 = vadd.f32 %v3322, %v3329
      %v3335 = vadd.f32 %v3323, %v3329
      %v3336 = vadd.f32 %v3324, %v3329
      %v3337 = vadd.f32 %v3325, %v3329
      %v3338 = vadd.f32 %v3326, %v3329
      %v3339 = vld [vmem:[%s10] sm:$0xff]
      %v3340 = vld [vmem:[%s10 + $0x8] sm:$0xff]
      %v3341 = vld [vmem:[%s10 + $0x10] sm:$0xff]
      %v3342 = vld [vmem:[%s11] sm:$0x1]
      %v3344 = vperm.slane %v3342, 0
      %v3347 = vsel %vm580, %v3331, 0
      %v3350 = vsel %vm580, %v3332, 0
      %v3353 = vsel %vm580, %v3333, 0
      %v3356 = vsel %vm580, %v3334, 0
      %v3359 = vsel %vm580, %v3335, 0
      %v3362 = vsel %vm580, %v3336, 0
      %v3365 = vsel %vm580, %v3337, 0
      %v3368 = vsel %vm580, %v3338, 0
      %3370 = vmatpush.msra.mxu0 0.0
      %3371 = vmatpush.msra.mxu0 0.0
      %3372 = vmatpush.msra.mxu0 0.0
      %3373 = vmatpush.msra.mxu0 0.0
      %3374 = vmatpush.msra.mxu0 0.0
      %3375 = vmatpush.msra.mxu0 0.0
      %3376 = vmatpush.msra.mxu0 0.0
      %3377 = vmatpush.msra.mxu0 0.0
      %3378 = vmatpush.msra.mxu0 0.0
      %3379 = vmatpush.msra.mxu0 0.0
      %3380 = vmatpush.msra.mxu0 0.0
      %3381 = vmatpush.msra.mxu0 0.0
      %3382 = vmatpush.msra.mxu0 0.0
      %3383 = vmatpush.msra.mxu0 %v3341
      %3384 = vmatpush.msra.mxu0 %v3340
      %3385 = vmatpush.msra.mxu0 %v3339
      %3386 = vmatmul.f32.gmra.mxu0 %v3347
      %v3387 = vpop.f32.mrf.mxu0
      %v3388 = vadd.f32 %v3344, %v3387
      %3389 = vmatmul.f32.gmra.mxu0 %v3350
      %v3390 = vpop.f32.mrf.mxu0
      %v3391 = vadd.f32 %v3344, %v3390
      %3392 = vmatmul.f32.gmra.mxu0 %v3353
      %v3393 = vpop.f32.mrf.mxu0
      %v3394 = vadd.f32 %v3344, %v3393
      %3395 = vmatmul.f32.gmra.mxu0 %v3356
      %v3396 = vpop.f32.mrf.mxu0
      %v3397 = vadd.f32 %v3344, %v3396
      %3398 = vmatmul.f32.gmra.mxu0 %v3359
      %v3399 = vpop.f32.mrf.mxu0
      %v3400 = vadd.f32 %v3344, %v3399
      %3401 = vmatmul.f32.gmra.mxu0 %v3362
      %v3402 = vpop.f32.mrf.mxu0
      %v3403 = vadd.f32 %v3344, %v3402
      %3404 = vmatmul.f32.gmra.mxu0 %v3365
      %v3405 = vpop.f32.mrf.mxu0
      %v3406 = vadd.f32 %v3344, %v3405
      %3407 = vmatmul.f32.gmra.mxu0 %v3368
      %v3408 = vpop.f32.mrf.mxu0
      %v3409 = vadd.f32 %v3344, %v3408
      %3410 = vdwg.mxu0
      %v3411 = vmul.f32 %v3388, 0.5
      %v3412 = vmul.f32 %v3391, 0.5
      %v3413 = vmul.f32 %v3394, 0.5
      %v3414 = vmul.f32 %v3397, 0.5
      %v3415 = vmul.f32 %v3400, 0.5
      %v3416 = vmul.f32 %v3403, 0.5
      %v3417 = vmul.f32 %v3406, 0.5
      %v3418 = vmul.f32 %v3409, 0.5
      %v3419 = vmul.f32 %v3388, %v3388
      %v3420 = vmul.f32 %v3391, %v3391
      %v3421 = vmul.f32 %v3394, %v3394
      %v3422 = vmul.f32 %v3397, %v3397
      %v3423 = vmul.f32 %v3400, %v3400
      %v3424 = vmul.f32 %v3403, %v3403
      %v3425 = vmul.f32 %v3406, %v3406
      %v3426 = vmul.f32 %v3409, %v3409
      %v3427 = vmul.f32 %v3419, %v3388
      %v3428 = vmul.f32 %v3420, %v3391
      %v3429 = vmul.f32 %v3421, %v3394
      %v3430 = vmul.f32 %v3422, %v3397
      %v3431 = vmul.f32 %v3423, %v3400
      %v3432 = vmul.f32 %v3424, %v3403
      %v3433 = vmul.f32 %v3425, %v3406
      %v3434 = vmul.f32 %v3426, %v3409
      %v3435 = vmul.f32 %v3427, 0.044715
      %v3436 = vmul.f32 %v3428, 0.044715
      %v3437 = vmul.f32 %v3429, 0.044715
      %v3438 = vmul.f32 %v3430, 0.044715
      %v3439 = vmul.f32 %v3431, 0.044715
      %v3440 = vmul.f32 %v3432, 0.044715
      %v3441 = vmul.f32 %v3433, 0.044715
      %v3442 = vmul.f32 %v3434, 0.044715
      %v3443 = vadd.f32 %v3388, %v3435
      %v3444 = vadd.f32 %v3391, %v3436
      %v3445 = vadd.f32 %v3394, %v3437
      %v3446 = vadd.f32 %v3397, %v3438
      %v3447 = vadd.f32 %v3400, %v3439
      %v3448 = vadd.f32 %v3403, %v3440
      %v3449 = vadd.f32 %v3406, %v3441
      %v3450 = vadd.f32 %v3409, %v3442
      %v3451 = vmul.f32 %v3443, 0.7978846
      %v3452 = vmul.f32 %v3444, 0.7978846
      %v3453 = vmul.f32 %v3445, 0.7978846
      %v3454 = vmul.f32 %v3446, 0.7978846
      %v3455 = vmul.f32 %v3447, 0.7978846
      %v3456 = vmul.f32 %v3448, 0.7978846
      %v3457 = vmul.f32 %v3449, 0.7978846
      %v3458 = vmul.f32 %v3450, 0.7978846
      %v3459 = vtanh.pop %v3451
      %v3460 = vtanh.pop %v3452
      %v3461 = vtanh.pop %v3453
      %v3462 = vtanh.pop %v3454
      %v3463 = vtanh.pop %v3455
      %v3464 = vtanh.pop %v3456
      %v3465 = vtanh.pop %v3457
      %v3466 = vtanh.pop %v3458
      %v3467 = vadd.f32 %v3459, 1.0
      %v3468 = vadd.f32 %v3460, 1.0
      %v3469 = vadd.f32 %v3461, 1.0
      %v3470 = vadd.f32 %v3462, 1.0
      %v3471 = vadd.f32 %v3463, 1.0
      %v3472 = vadd.f32 %v3464, 1.0
      %v3473 = vadd.f32 %v3465, 1.0
      %v3474 = vadd.f32 %v3466, 1.0
      %v3475 = vmul.f32 %v3411, %v3467
      %v3476 = vmul.f32 %v3412, %v3468
      %v3477 = vmul.f32 %v3413, %v3469
      %v3478 = vmul.f32 %v3414, %v3470
      %v3479 = vmul.f32 %v3415, %v3471
      %v3480 = vmul.f32 %v3416, %v3472
      %v3481 = vmul.f32 %v3417, %v3473
      %v3482 = vmul.f32 %v3418, %v3474
      %v3483 = vld [vmem:[%s12] sm:$0xff]
      %v3484 = vld [vmem:[%s12 + $0x8] sm:$0xff]
      %v3485 = vld [vmem:[%s12 + $0x10] sm:$0xff]
      %v3486 = vld [vmem:[%s12 + $0x18] sm:$0xff]
      %v3487 = vld [vmem:[%s12 + $0x20] sm:$0xff]
      %v3488 = vld [vmem:[%s12 + $0x28] sm:$0xff]
      %v3489 = vld [vmem:[%s13] sm:$0x1]
      %v3491 = vperm.slane %v3489, 0
      %vm3493 = vcmask 392192
      %v3495 = vsel %vm3493, %v3475, 0
      %v3498 = vsel %vm3493, %v3476, 0
      %v3501 = vsel %vm3493, %v3477, 0
      %v3504 = vsel %vm3493, %v3478, 0
      %v3507 = vsel %vm3493, %v3479, 0
      %v3510 = vsel %vm3493, %v3480, 0
      %v3513 = vsel %vm3493, %v3481, 0
      %v3516 = vsel %vm3493, %v3482, 0
      %3518 = vmatpush.msra.mxu0 0.0
      %3519 = vmatpush.msra.mxu0 0.0
      %3520 = vmatpush.msra.mxu0 0.0
      %3521 = vmatpush.msra.mxu0 0.0
      %3522 = vmatpush.msra.mxu0 0.0
      %3523 = vmatpush.msra.mxu0 0.0
      %3524 = vmatpush.msra.mxu0 0.0
      %3525 = vmatpush.msra.mxu0 0.0
      %3526 = vmatpush.msra.mxu0 0.0
      %3527 = vmatpush.msra.mxu0 0.0
      %3528 = vmatpush.msra.mxu0 %v3488
      %3529 = vmatpush.msra.mxu0 %v3487
      %3530 = vmatpush.msra.mxu0 %v3486
      %3531 = vmatpush.msra.mxu0 %v3485
      %3532 = vmatpush.msra.mxu0 %v3484
      %3533 = vmatpush.msra.mxu0 %v3483
      %3534 = vmatmul.f32.gmra.mxu0 %v3495
      %v3535 = vpop.f32.mrf.mxu0
      %v3536 = vadd.f32 %v3491, %v3535
      %3537 = vmatmul.f32.gmra.mxu0 %v3498
      %v3538 = vpop.f32.mrf.mxu0
      %v3539 = vadd.f32 %v3491, %v3538
      %3540 = vmatmul.f32.gmra.mxu0 %v3501
      %v3541 = vpop.f32.mrf.mxu0
      %v3542 = vadd.f32 %v3491, %v3541
      %3543 = vmatmul.f32.gmra.mxu0 %v3504
      %v3544 = vpop.f32.mrf.mxu0
      %v3545 = vadd.f32 %v3491, %v3544
      %3546 = vmatmul.f32.gmra.mxu0 %v3507
      %v3547 = vpop.f32.mrf.mxu0
      %v3548 = vadd.f32 %v3491, %v3547
      %3549 = vmatmul.f32.gmra.mxu0 %v3510
      %v3550 = vpop.f32.mrf.mxu0
      %v3551 = vadd.f32 %v3491, %v3550
      %3552 = vmatmul.f32.gmra.mxu0 %v3513
      %v3553 = vpop.f32.mrf.mxu0
      %v3554 = vadd.f32 %v3491, %v3553
      %3555 = vmatmul.f32.gmra.mxu0 %v3516
      %v3556 = vpop.f32.mrf.mxu0
      %v3557 = vadd.f32 %v3491, %v3556
      %3558 = vdwg.mxu0
      %v3559 = vadd.f32 %v3536, %v3131
      %v3560 = vadd.f32 %v3539, %v3132
      %v3561 = vadd.f32 %v3542, %v3133
      %v3562 = vadd.f32 %v3545, %v3134
      %v3563 = vadd.f32 %v3548, %v3135
      %v3564 = vadd.f32 %v3551, %v3136
      %v3565 = vadd.f32 %v3554, %v3137
      %v3566 = vadd.f32 %v3557, %v3138
      %3567 = vst.msk [vmem:[%s571] sm:$0xff] %vm580, %v3559
      %3568 = vst.msk [vmem:[%s571 + $0x8] sm:$0xff] %vm580, %v3560
      %3569 = vst.msk [vmem:[%s571 + $0x10] sm:$0xff] %vm580, %v3561
      %3570 = vst.msk [vmem:[%s571 + $0x18] sm:$0xff] %vm580, %v3562
      %3571 = vst.msk [vmem:[%s571 + $0x20] sm:$0xff] %vm580, %v3563
      %3572 = vst.msk [vmem:[%s571 + $0x28] sm:$0xff] %vm580, %v3564
      %3573 = vst.msk [vmem:[%s571 + $0x30] sm:$0xff] %vm580, %v3565
      %3574 = vst.msk [vmem:[%s571 + $0x38] sm:$0xff] %vm580, %v3566
      %p3575 = scmp.lt.s32.totalorder %s25, 7
      %s3576 = scalar_select %p3575, %s25, 7
      %s3577 = smul.addr %s3576, 8
      %s3578 = smul.addr %s3577, 8
      %s3579 = scalar_lea.vmem %s14, %s3578
      // Predicated region
      $region77: #{stl_forward.1} parent=75 // pred_check
        %p3580 = pneg %p371
      $region78: #{stl_forward.1} parent=75 // pred_check_branch
        %3582 = sbr.rel (%p3580) target = $region80
      $region79: #{stl_forward.1} parent=75 // pred_region
        _
      $region80: #{stl_forward.1} parent=75 // pred_fallthru
        _
    $region76: #{stl_forward.1} parent=5 // pred_fallthru
      _
    %p3583 = scmp.le.s32.totalorder 2, %s20
    // Predicated region
    $region81: #{stl_forward.1} parent=5 // pred_check
      %p3584 = pneg %p3583
    $region82: #{stl_forward.1} parent=5 // pred_check_branch
      %3586 = sbr.rel (%p3584) target = $region84
    $region83: #{stl_forward.1} parent=5 // pred_region
      %s3587 = ssub.s32 %s20, 2
      // Predicated region
      $region85: #{stl_forward.1} parent=83 // pred_check
        %p3588 = pneg %p377
      $region86: #{stl_forward.1} parent=83 // pred_check_branch
        %3590 = sbr.rel (%p3588) target = $region88
      $region87: #{stl_forward.1} parent=83 // pred_region
        %p3591 = scmp.lt.s32.totalorder %s26, 7
        %s3592 = scalar_select %p3591, %s26, 7
        %s3593 = smul.addr %s3592, 8
        %s3594 = smul.addr %s3593, 8
        %s3595 = scalar_lea.vmem %s14, %s3594
      $region88: #{stl_forward.1} parent=83 // pred_fallthru
        _
    $region84: #{stl_forward.1} parent=5 // pred_fallthru
      _
  $region6: #{stl_forward.1} parent=0 // loop_footer
    %s24 = sadd.s32 1, %s20
  $region7: #{stl_forward.1} parent=0 // loop_footer_branch
    %19 = sbr.rel target = $region3
  $region8: #{stl_forward.1} parent=0 // loop_exit
    _

</llo_original>
